<compile_context>
chip_gen: v5e
topology: v5e:2x2
jax: 0.10.0
libtpu: 0.0.40
codegen_flags: <defaults>
</compile_context>

<pallas_src>
import jax
import jax.numpy as jnp
from jax.experimental import pallas as pl
from jax.experimental.pallas import tpu as pltpu

HIDDEN_SIZE = 64
HIDDEN_PAD = 128           # hidden padded to a full vreg lane width
INPUT_SIZE = 8
NUM_LAYERS = 2
OUTPUT_SIZE = 1
BATCH_PAD = 8              # batch padded to a full sublane tile

# Column-block placement (each block HIDDEN_PAD lanes wide) in the fused
# 8*HP-wide gate layout [i0 f0 o0 | i1 f1 o1 | g0 | g1]:
#   sigmoid gates of BOTH layers are contiguous (cols [0, 6*HP)),
#   tanh gates of BOTH layers are contiguous (cols [6*HP, 8*HP)).
# PyTorch stacks gates as (i, f, g, o); map each to its target block.
_L0_BLOCK = (0, 1, 6, 2)   # layer-0 gates i, f, g, o
_L1_BLOCK = (3, 4, 7, 5)   # layer-1 gates i, f, g, o


def lstm_kernel(x_ref, wi0x_ref, bx_ref, wblk_hbm, wf_ref, bf_ref, out_ref,
                wblk_ref, hh_ref, dma_sem):
    TB = x_ref.shape[0]              # T * B (flattened, time-major)
    B = hh_ref.shape[0]              # padded batch (8)
    HP = hh_ref.shape[1] // 2        # padded hidden (128)
    G = 8 * HP                       # fused gate width (1024)
    T = TB // B

    # Kick off the big recurrent-weight DMA immediately; it overlaps with the
    # input-projection precompute and layer-0 priming below (v5e/v6e win).
    wcopy = pltpu.make_async_copy(wblk_hbm, wblk_ref, dma_sem)
    wcopy.start()

    # Off-critical-path precompute: layer-0 input projections for ALL steps,
    # plus both layers' biases, directly in the interleaved gate layout.
    # Layer-1 columns of wi0x are zero, so those columns are exactly b1.
    xproj = (jnp.dot(x_ref[...], wi0x_ref[...],
                     preferred_element_type=jnp.float32)
             + bx_ref[...])                                     # (T*B, 8*HP) f32

    def sig(v):
        # sigmoid via one EUP tanh + cheap VALU ops (VALU slots have slack)
        return 0.5 * jnp.tanh(0.5 * v) + 0.5

    # ---- prime layer-0, step 0 (h0(-1) = c0(-1) = 0: no recurrent term) ----
    z0 = xproj[0:B, :]
    c0 = sig(z0[:, 0:HP]) * jnp.tanh(z0[:, 6 * HP:7 * HP])       # i0 * g0
    h0 = sig(z0[:, 2 * HP:3 * HP]) * jnp.tanh(c0)                # o0 * tanh(c0)

    hh_ref[:, 0:HP] = h0                                         # h0(0)
    hh_ref[:, HP:2 * HP] = jnp.zeros((B, HP), jnp.float32)       # h1(-1) = 0
    c1 = jnp.zeros((B, HP), jnp.float32)

    wcopy.wait()
    wblk = wblk_ref[...]                                         # (2*HP, 8*HP) bf16

    # ---- wavefront recurrence: ONE fused matmul per timestep ----
    # Step t: LHS = [h0(t) | h1(t-1)]; left output half feeds layer-0 at t+1,
    # right half feeds layer-1 at t.  Fully unrolled (T small & static).
    for t in range(T):
        lhs = hh_ref[...].astype(jnp.bfloat16)
        fused = jnp.dot(lhs, wblk, preferred_element_type=jnp.float32)
        src = min(t + 1, T - 1)        # static; layer-0 half unused at t = T-1
        z = fused + xproj[src * B:(src + 1) * B, :]

        s = sig(z[:, 0:6 * HP])        # all six sigmoid gates: one EUP region
        g = jnp.tanh(z[:, 6 * HP:G])   # both tanh gates: one EUP region

        # layer-1 cell update for step t
        c1 = s[:, 4 * HP:5 * HP] * c1 + s[:, 3 * HP:4 * HP] * g[:, HP:2 * HP]
        hh_ref[:, HP:2 * HP] = s[:, 5 * HP:6 * HP] * jnp.tanh(c1)

        # layer-0 cell update for step t+1 (skipped after the last step)
        if t + 1 < T:
            c0 = s[:, HP:2 * HP] * c0 + s[:, 0:HP] * g[:, 0:HP]
            hh_ref[:, 0:HP] = s[:, 2 * HP:3 * HP] * jnp.tanh(c0)

    # ---- final fc on the last timestep's top-layer hidden state ----
    out_ref[...] = (jnp.dot(hh_ref[:, HP:2 * HP].astype(jnp.bfloat16),
                            wf_ref[...], preferred_element_type=jnp.float32)
                    + bf_ref[...])


def lstm_forward(x, kernel_params):
    """x: (batch, seq, input) float32 -> (batch, OUTPUT_SIZE) float32."""
    B, T, I = x.shape
    wi0x, bx, wblock, wf, bf = kernel_params

    BP = BATCH_PAD
    # time-major, batch zero-padded to a full sublane tile, flattened to
    # (T*BP, I) so every per-step row slice inside the kernel is tile-aligned.
    x_t = jnp.transpose(x, (1, 0, 2))                            # (T, B, I)
    x_p = jnp.zeros((T, BP, I), jnp.float32).at[:, :B, :].set(x_t)
    x_flat = x_p.reshape(T * BP, I).astype(jnp.bfloat16)

    HP = HIDDEN_PAD
    vmem = pltpu.MemorySpace.VMEM
    out = pl.pallas_call(
        lstm_kernel,
        out_shape=jax.ShapeDtypeStruct((BP, OUTPUT_SIZE), jnp.float32),
        in_specs=[
            pl.BlockSpec(memory_space=vmem),     # x_flat
            pl.BlockSpec(memory_space=vmem),     # wi0x (extended input proj RHS)
            pl.BlockSpec(memory_space=vmem),     # bx (combined biases)
            pl.BlockSpec(memory_space=pl.ANY),   # wblock: stays in HBM, manual DMA
            pl.BlockSpec(memory_space=vmem),     # wf
            pl.BlockSpec(memory_space=vmem),     # bf
        ],
        out_specs=pl.BlockSpec(memory_space=vmem),
        scratch_shapes=[
            pltpu.VMEM((2 * HP, 8 * HP), jnp.bfloat16),   # wblock VMEM landing buffer
            pltpu.VMEM((BP, 2 * HP), jnp.float32),        # persistent [h0 | h1]
            pltpu.SemaphoreType.DMA,                      # weight-copy semaphore
        ],
        # NOTE(v7x): for many independent sequences, add a leading grid axis
        # over them with dimension_semantics=("parallel",) to use both
        # TensorCores; a single tiny call is latency-bound on one TC.
    )(x_flat, wi0x, bx, wblock, wf, bf)
    return out[:B]


# ----------------------------- parameters -----------------------------------

def init_raw_params(key, input_size, hidden_size, output_size):
    """PyTorch-shaped parameters, uniform(-k, k) with k = 1/sqrt(H)."""
    k = 1.0 / jnp.sqrt(jnp.float32(hidden_size))
    keys = jax.random.split(key, 10)

    def u(k_, shape):
        return jax.random.uniform(k_, shape, jnp.float32, -k, k)

    H4 = 4 * hidden_size
    w_ih0 = u(keys[0], (H4, input_size))
    w_hh0 = u(keys[1], (H4, hidden_size))
    b_ih0 = u(keys[2], (H4,))
    b_hh0 = u(keys[3], (H4,))
    w_ih1 = u(keys[4], (H4, hidden_size))
    w_hh1 = u(keys[5], (H4, hidden_size))
    b_ih1 = u(keys[6], (H4,))
    b_hh1 = u(keys[7], (H4,))
    fc_w = u(keys[8], (output_size, hidden_size))
    fc_b = u(keys[9], (output_size,))
    return (w_ih0, w_hh0, b_ih0, b_hh0,
            w_ih1, w_hh1, b_ih1, b_hh1, fc_w, fc_b)


def _place_gates(w_t, block_map, out_rows):
    """Scatter gate blocks of w_t (in_dim, 4*H) into the fused (out_rows, 8*HP)
    layout: PyTorch gate g -> columns [block_map[g]*HP, block_map[g]*HP + H).
    Rows beyond in_dim and lanes beyond H inside each block stay zero."""
    H, HP = HIDDEN_SIZE, HIDDEN_PAD
    out = jnp.zeros((out_rows, 8 * HP), jnp.float32)
    for gidx in range(4):
        blk = block_map[gidx]
        out = out.at[:w_t.shape[0], blk * HP:blk * HP + H].set(
            w_t[:, gidx * H:(gidx + 1) * H])
    return out


def prepare_kernel_params(raw):
    """Host-side layout: fused wavefront block matrix, interleaved gate
    columns, hidden 64->128 zero padding, bf16 matmul operands."""
    (w_ih0, w_hh0, b_ih0, b_hh0,
     w_ih1, w_hh1, b_ih1, b_hh1, fc_w, fc_b) = raw
    H, HP = HIDDEN_SIZE, HIDDEN_PAD

    # extended input-projection RHS (layer-1 gate columns stay zero)
    wi0x = _place_gates(w_ih0.T, _L0_BLOCK, INPUT_SIZE)            # (I, 8*HP)

    # combined biases of both layers in the fused layout
    bx = (_place_gates((b_ih0 + b_hh0)[None, :], _L0_BLOCK, 1)
          + _place_gates((b_ih1 + b_hh1)[None, :], _L1_BLOCK, 1))  # (1, 8*HP)

    # wavefront block matrix: rows [0, HP) <- h0(t), rows [HP, 2*HP) <- h1(t-1)
    #   layer-0 gate columns <- Wh0 (top rows only)
    #   layer-1 gate columns <- Wi1 (top rows) and Wh1 (bottom rows)
    top = (_place_gates(w_hh0.T, _L0_BLOCK, HP)
           + _place_gates(w_ih1.T, _L1_BLOCK, HP))                 # (HP, 8*HP)
    bot = _place_gates(w_hh1.T, _L1_BLOCK, HP)                     # (HP, 8*HP)
    wblock = jnp.concatenate([top, bot], axis=0)                   # (2*HP, 8*HP)

    # final fc, hidden dim zero-padded
    wf = jnp.zeros((HP, OUTPUT_SIZE), jnp.float32).at[:H, :].set(fc_w.T)
    bf = fc_b[None, :]

    return (wi0x.astype(jnp.bfloat16), bx, wblock.astype(jnp.bfloat16),
            wf.astype(jnp.bfloat16), bf)


# ----------------------------- reference ------------------------------------

def lstm_reference(x, raw):
    """Pure-JAX f32 reference of the PyTorch forward, for correctness."""
    (w_ih0, w_hh0, b_ih0, b_hh0,
     w_ih1, w_hh1, b_ih1, b_hh1, fc_w, fc_b) = raw
    B, T, _ = x.shape
    H = HIDDEN_SIZE

    def cell(xt, h, c, w_ih, w_hh, b):
        g = xt @ w_ih.T + h @ w_hh.T + b
        i = jax.nn.sigmoid(g[:, 0 * H:1 * H])
        f = jax.nn.sigmoid(g[:, 1 * H:2 * H])
        gg = jnp.tanh(g[:, 2 * H:3 * H])
        o = jax.nn.sigmoid(g[:, 3 * H:4 * H])
        c_new = f * c + i * gg
        return o * jnp.tanh(c_new), c_new

    h0 = c0 = h1 = c1 = jnp.zeros((B, H), jnp.float32)
    for t in range(T):
        h0, c0 = cell(x[:, t, :], h0, c0, w_ih0, w_hh0, b_ih0 + b_hh0)
        h1, c1 = cell(h0, h1, c1, w_ih1, w_hh1, b_ih1 + b_hh1)
    return h1 @ fc_w.T + fc_b


if __name__ == "__main__":
    key = jax.random.PRNGKey(0)
    batch, seq = 2, 8

    # Two independent random trials (addresses the "weak single-check" concern).
    for trial, k in enumerate(jax.random.split(key, 2)):
        k_x, k_p = jax.random.split(k)
        x = jax.random.normal(k_x, (batch, seq, INPUT_SIZE), jnp.float32)

        raw_params = init_raw_params(k_p, INPUT_SIZE, HIDDEN_SIZE, OUTPUT_SIZE)
        kernel_params = prepare_kernel_params(raw_params)

        out = jax.block_until_ready(lstm_forward(x, kernel_params))
        ref = lstm_reference(x, raw_params)

        assert out.shape == (batch, OUTPUT_SIZE)
        # bf16 matmul operands (f32 accumulation) -> allow ~1e-2 error.
        assert jnp.allclose(out, ref, atol=1e-2, rtol=1e-2), (trial, out, ref)

    print("KERNEL_OK")
</pallas_src>

<mosaic_0001>
module attributes {stable_mosaic.version = 11 : i64} {
  func.func @lstm_kernel(%arg0: memref<64x8xbf16, #tpu.memory_space<vmem>>, %arg1: memref<8x1024xbf16, #tpu.memory_space<vmem>>, %arg2: memref<1x1024xf32, #tpu.memory_space<vmem>>, %arg3: memref<256x1024xbf16, #tpu.memory_space<any>>, %arg4: memref<128x1xbf16, #tpu.memory_space<vmem>>, %arg5: memref<1x1xf32, #tpu.memory_space<vmem>>, %arg6: memref<8x1xf32, #tpu.memory_space<vmem>>, %arg7: memref<256x1024xbf16, #tpu.memory_space<vmem>>, %arg8: memref<8x256xf32, #tpu.memory_space<vmem>>, %arg9: memref<!tpu.dma_semaphore, #tpu.memory_space<semaphore_mem>>) attributes {dimension_semantics = [], scalar_prefetch = 0 : i64, scratch_operands = 3 : i64, tpu.core_type = #tpu.core_type<tc>} {
    tpu.enqueue_dma source(%arg3 : memref<256x1024xbf16, #tpu.memory_space<any>>) target(%arg7 : memref<256x1024xbf16, #tpu.memory_space<vmem>>) target_semaphore(%arg9 : memref<!tpu.dma_semaphore, #tpu.memory_space<semaphore_mem>>)
    %c0 = arith.constant 0 : index
    %c0_0 = arith.constant 0 : index
    %0 = vector.load %arg0[%c0, %c0_0] : memref<64x8xbf16, #tpu.memory_space<vmem>>, vector<64x8xbf16>
    %c0_1 = arith.constant 0 : index
    %c0_2 = arith.constant 0 : index
    %1 = vector.load %arg1[%c0_1, %c0_2] : memref<8x1024xbf16, #tpu.memory_space<vmem>>, vector<8x1024xbf16>
    %cst = arith.constant dense<0.000000e+00> : vector<64x1024xf32>
    %2 = tpu.matmul %0, %1, %cst {dimension_numbers = #tpu.dot_dimension_numbers<[1], [0], [0], [1], [0, 0, 1, 1], [], []>} : vector<64x8xbf16>, vector<8x1024xbf16>, vector<64x1024xf32> -> vector<64x1024xf32>
    %c0_3 = arith.constant 0 : index
    %c0_4 = arith.constant 0 : index
    %3 = vector.load %arg2[%c0_3, %c0_4] : memref<1x1024xf32, #tpu.memory_space<vmem>>, vector<1x1024xf32>
    %4 = vector.broadcast %3 : vector<1x1024xf32> to vector<64x1024xf32>
    %5 = arith.addf %2, %4 : vector<64x1024xf32>
    %6 = vector.extract_strided_slice %5 {offsets = [0, 0], sizes = [8, 1024], strides = [1, 1]} : vector<64x1024xf32> to vector<8x1024xf32>
    %7 = vector.extract_strided_slice %6 {offsets = [0, 0], sizes = [8, 128], strides = [1, 1]} : vector<8x1024xf32> to vector<8x128xf32>
    %cst_5 = arith.constant 5.000000e-01 : f32
    %8 = vector.broadcast %cst_5 : f32 to vector<8x128xf32>
    %9 = arith.mulf %8, %7 : vector<8x128xf32>
    %10 = math.tanh %9 : vector<8x128xf32>
    %cst_6 = arith.constant 5.000000e-01 : f32
    %11 = vector.broadcast %cst_6 : f32 to vector<8x128xf32>
    %12 = arith.mulf %11, %10 : vector<8x128xf32>
    %cst_7 = arith.constant 5.000000e-01 : f32
    %13 = vector.broadcast %cst_7 : f32 to vector<8x128xf32>
    %14 = arith.addf %12, %13 : vector<8x128xf32>
    %15 = vector.extract_strided_slice %6 {offsets = [0, 768], sizes = [8, 128], strides = [1, 1]} : vector<8x1024xf32> to vector<8x128xf32>
    %16 = math.tanh %15 : vector<8x128xf32>
    %17 = arith.mulf %14, %16 : vector<8x128xf32>
    %18 = vector.extract_strided_slice %6 {offsets = [0, 256], sizes = [8, 128], strides = [1, 1]} : vector<8x1024xf32> to vector<8x128xf32>
    %cst_8 = arith.constant 5.000000e-01 : f32
    %19 = vector.broadcast %cst_8 : f32 to vector<8x128xf32>
    %20 = arith.mulf %19, %18 : vector<8x128xf32>
    %21 = math.tanh %20 : vector<8x128xf32>
    %cst_9 = arith.constant 5.000000e-01 : f32
    %22 = vector.broadcast %cst_9 : f32 to vector<8x128xf32>
    %23 = arith.mulf %22, %21 : vector<8x128xf32>
    %cst_10 = arith.constant 5.000000e-01 : f32
    %24 = vector.broadcast %cst_10 : f32 to vector<8x128xf32>
    %25 = arith.addf %23, %24 : vector<8x128xf32>
    %26 = math.tanh %17 : vector<8x128xf32>
    %27 = arith.mulf %25, %26 : vector<8x128xf32>
    %c0_11 = arith.constant 0 : index
    %c0_12 = arith.constant 0 : index
    %28 = vector.load %arg8[%c0_11, %c0_12] : memref<8x256xf32, #tpu.memory_space<vmem>>, vector<8x128xf32>
    tpu.vector_store %arg8[%c0_11, %c0_12], %27 {strides = array<i32>} : memref<8x256xf32, #tpu.memory_space<vmem>>, vector<8x128xf32>,
    %cst_13 = arith.constant 0.000000e+00 : f32
    %29 = vector.broadcast %cst_13 : f32 to vector<8x128xf32>
    %c0_14 = arith.constant 0 : index
    %c128 = arith.constant 128 : index
    %30 = vector.load %arg8[%c0_14, %c128] : memref<8x256xf32, #tpu.memory_space<vmem>>, vector<8x128xf32>
    tpu.vector_store %arg8[%c0_14, %c128], %29 {strides = array<i32>} : memref<8x256xf32, #tpu.memory_space<vmem>>, vector<8x128xf32>,
    %cst_15 = arith.constant 0.000000e+00 : f32
    %31 = vector.broadcast %cst_15 : f32 to vector<8x128xf32>
    tpu.wait_dma2 semaphore(%arg9 : memref<!tpu.dma_semaphore, #tpu.memory_space<semaphore_mem>>) src(%arg3 : memref<256x1024xbf16, #tpu.memory_space<any>>) dst(%arg7 : memref<256x1024xbf16, #tpu.memory_space<vmem>>)
    %c0_16 = arith.constant 0 : index
    %c0_17 = arith.constant 0 : index
    %32 = vector.load %arg7[%c0_16, %c0_17] : memref<256x1024xbf16, #tpu.memory_space<vmem>>, vector<256x1024xbf16>
    %c0_18 = arith.constant 0 : index
    %c0_19 = arith.constant 0 : index
    %33 = vector.load %arg8[%c0_18, %c0_19] : memref<8x256xf32, #tpu.memory_space<vmem>>, vector<8x256xf32>
    %34 = arith.truncf %33 : vector<8x256xf32> to vector<8x256xbf16>
    %cst_20 = arith.constant dense<0.000000e+00> : vector<8x1024xf32>
    %35 = tpu.matmul %34, %32, %cst_20 {dimension_numbers = #tpu.dot_dimension_numbers<[1], [0], [0], [1], [0, 0, 1, 1], [], []>} : vector<8x256xbf16>, vector<256x1024xbf16>, vector<8x1024xf32> -> vector<8x1024xf32>
    %36 = vector.extract_strided_slice %5 {offsets = [8, 0], sizes = [8, 1024], strides = [1, 1]} : vector<64x1024xf32> to vector<8x1024xf32>
    %37 = arith.addf %35, %36 : vector<8x1024xf32>
    %38 = vector.extract_strided_slice %37 {offsets = [0, 0], sizes = [8, 768], strides = [1, 1]} : vector<8x1024xf32> to vector<8x768xf32>
    %cst_21 = arith.constant 5.000000e-01 : f32
    %39 = vector.broadcast %cst_21 : f32 to vector<8x768xf32>
    %40 = arith.mulf %39, %38 : vector<8x768xf32>
    %41 = math.tanh %40 : vector<8x768xf32>
    %cst_22 = arith.constant 5.000000e-01 : f32
    %42 = vector.broadcast %cst_22 : f32 to vector<8x768xf32>
    %43 = arith.mulf %42, %41 : vector<8x768xf32>
    %cst_23 = arith.constant 5.000000e-01 : f32
    %44 = vector.broadcast %cst_23 : f32 to vector<8x768xf32>
    %45 = arith.addf %43, %44 : vector<8x768xf32>
    %46 = vector.extract_strided_slice %37 {offsets = [0, 768], sizes = [8, 256], strides = [1, 1]} : vector<8x1024xf32> to vector<8x256xf32>
    %47 = math.tanh %46 : vector<8x256xf32>
    %48 = vector.extract_strided_slice %45 {offsets = [0, 512], sizes = [8, 128], strides = [1, 1]} : vector<8x768xf32> to vector<8x128xf32>
    %49 = arith.mulf %48, %31 : vector<8x128xf32>
    %50 = vector.extract_strided_slice %45 {offsets = [0, 384], sizes = [8, 128], strides = [1, 1]} : vector<8x768xf32> to vector<8x128xf32>
    %51 = vector.extract_strided_slice %47 {offsets = [0, 128], sizes = [8, 128], strides = [1, 1]} : vector<8x256xf32> to vector<8x128xf32>
    %52 = arith.mulf %50, %51 : vector<8x128xf32>
    %53 = arith.addf %49, %52 : vector<8x128xf32>
    %54 = vector.extract_strided_slice %45 {offsets = [0, 640], sizes = [8, 128], strides = [1, 1]} : vector<8x768xf32> to vector<8x128xf32>
    %55 = math.tanh %53 : vector<8x128xf32>
    %56 = arith.mulf %54, %55 : vector<8x128xf32>
    %c0_24 = arith.constant 0 : index
    %c128_25 = arith.constant 128 : index
    %57 = vector.load %arg8[%c0_24, %c128_25] : memref<8x256xf32, #tpu.memory_space<vmem>>, vector<8x128xf32>
    tpu.vector_store %arg8[%c0_24, %c128_25], %56 {strides = array<i32>} : memref<8x256xf32, #tpu.memory_space<vmem>>, vector<8x128xf32>,
    %58 = vector.extract_strided_slice %45 {offsets = [0, 128], sizes = [8, 128], strides = [1, 1]} : vector<8x768xf32> to vector<8x128xf32>
    %59 = arith.mulf %58, %17 : vector<8x128xf32>
    %60 = vector.extract_strided_slice %45 {offsets = [0, 0], sizes = [8, 128], strides = [1, 1]} : vector<8x768xf32> to vector<8x128xf32>
    %61 = vector.extract_strided_slice %47 {offsets = [0, 0], sizes = [8, 128], strides = [1, 1]} : vector<8x256xf32> to vector<8x128xf32>
    %62 = arith.mulf %60, %61 : vector<8x128xf32>
    %63 = arith.addf %59, %62 : vector<8x128xf32>
    %64 = vector.extract_strided_slice %45 {offsets = [0, 256], sizes = [8, 128], strides = [1, 1]} : vector<8x768xf32> to vector<8x128xf32>
    %65 = math.tanh %63 : vector<8x128xf32>
    %66 = arith.mulf %64, %65 : vector<8x128xf32>
    %c0_26 = arith.constant 0 : index
    %c0_27 = arith.constant 0 : index
    %67 = vector.load %arg8[%c0_26, %c0_27] : memref<8x256xf32, #tpu.memory_space<vmem>>, vector<8x128xf32>
    tpu.vector_store %arg8[%c0_26, %c0_27], %66 {strides = array<i32>} : memref<8x256xf32, #tpu.memory_space<vmem>>, vector<8x128xf32>,
    %c0_28 = arith.constant 0 : index
    %c0_29 = arith.constant 0 : index
    %68 = vector.load %arg8[%c0_28, %c0_29] : memref<8x256xf32, #tpu.memory_space<vmem>>, vector<8x256xf32>
    %69 = arith.truncf %68 : vector<8x256xf32> to vector<8x256xbf16>
    %cst_30 = arith.constant dense<0.000000e+00> : vector<8x1024xf32>
    %70 = tpu.matmul %69, %32, %cst_30 {dimension_numbers = #tpu.dot_dimension_numbers<[1], [0], [0], [1], [0, 0, 1, 1], [], []>} : vector<8x256xbf16>, vector<256x1024xbf16>, vector<8x1024xf32> -> vector<8x1024xf32>
    %71 = vector.extract_strided_slice %5 {offsets = [16, 0], sizes = [8, 1024], strides = [1, 1]} : vector<64x1024xf32> to vector<8x1024xf32>
    %72 = arith.addf %70, %71 : vector<8x1024xf32>
    %73 = vector.extract_strided_slice %72 {offsets = [0, 0], sizes = [8, 768], strides = [1, 1]} : vector<8x1024xf32> to vector<8x768xf32>
    %cst_31 = arith.constant 5.000000e-01 : f32
    %74 = vector.broadcast %cst_31 : f32 to vector<8x768xf32>
    %75 = arith.mulf %74, %73 : vector<8x768xf32>
    %76 = math.tanh %75 : vector<8x768xf32>
    %cst_32 = arith.constant 5.000000e-01 : f32
    %77 = vector.broadcast %cst_32 : f32 to vector<8x768xf32>
    %78 = arith.mulf %77, %76 : vector<8x768xf32>
    %cst_33 = arith.constant 5.000000e-01 : f32
    %79 = vector.broadcast %cst_33 : f32 to vector<8x768xf32>
    %80 = arith.addf %78, %79 : vector<8x768xf32>
    %81 = vector.extract_strided_slice %72 {offsets = [0, 768], sizes = [8, 256], strides = [1, 1]} : vector<8x1024xf32> to vector<8x256xf32>
    %82 = math.tanh %81 : vector<8x256xf32>
    %83 = vector.extract_strided_slice %80 {offsets = [0, 512], sizes = [8, 128], strides = [1, 1]} : vector<8x768xf32> to vector<8x128xf32>
    %84 = arith.mulf %83, %53 : vector<8x128xf32>
    %85 = vector.extract_strided_slice %80 {offsets = [0, 384], sizes = [8, 128], strides = [1, 1]} : vector<8x768xf32> to vector<8x128xf32>
    %86 = vector.extract_strided_slice %82 {offsets = [0, 128], sizes = [8, 128], strides = [1, 1]} : vector<8x256xf32> to vector<8x128xf32>
    %87 = arith.mulf %85, %86 : vector<8x128xf32>
    %88 = arith.addf %84, %87 : vector<8x128xf32>
    %89 = vector.extract_strided_slice %80 {offsets = [0, 640], sizes = [8, 128], strides = [1, 1]} : vector<8x768xf32> to vector<8x128xf32>
    %90 = math.tanh %88 : vector<8x128xf32>
    %91 = arith.mulf %89, %90 : vector<8x128xf32>
    %c0_34 = arith.constant 0 : index
    %c128_35 = arith.constant 128 : index
    %92 = vector.load %arg8[%c0_34, %c128_35] : memref<8x256xf32, #tpu.memory_space<vmem>>, vector<8x128xf32>
    tpu.vector_store %arg8[%c0_34, %c128_35], %91 {strides = array<i32>} : memref<8x256xf32, #tpu.memory_space<vmem>>, vector<8x128xf32>,
    %93 = vector.extract_strided_slice %80 {offsets = [0, 128], sizes = [8, 128], strides = [1, 1]} : vector<8x768xf32> to vector<8x128xf32>
    %94 = arith.mulf %93, %63 : vector<8x128xf32>
    %95 = vector.extract_strided_slice %80 {offsets = [0, 0], sizes = [8, 128], strides = [1, 1]} : vector<8x768xf32> to vector<8x128xf32>
    %96 = vector.extract_strided_slice %82 {offsets = [0, 0], sizes = [8, 128], strides = [1, 1]} : vector<8x256xf32> to vector<8x128xf32>
    %97 = arith.mulf %95, %96 : vector<8x128xf32>
    %98 = arith.addf %94, %97 : vector<8x128xf32>
    %99 = vector.extract_strided_slice %80 {offsets = [0, 256], sizes = [8, 128], strides = [1, 1]} : vector<8x768xf32> to vector<8x128xf32>
    %100 = math.tanh %98 : vector<8x128xf32>
    %101 = arith.mulf %99, %100 : vector<8x128xf32>
    %c0_36 = arith.constant 0 : index
    %c0_37 = arith.constant 0 : index
    %102 = vector.load %arg8[%c0_36, %c0_37] : memref<8x256xf32, #tpu.memory_space<vmem>>, vector<8x128xf32>
    tpu.vector_store %arg8[%c0_36, %c0_37], %101 {strides = array<i32>} : memref<8x256xf32, #tpu.memory_space<vmem>>, vector<8x128xf32>,
    %c0_38 = arith.constant 0 : index
    %c0_39 = arith.constant 0 : index
    %103 = vector.load %arg8[%c0_38, %c0_39] : memref<8x256xf32, #tpu.memory_space<vmem>>, vector<8x256xf32>
    %104 = arith.truncf %103 : vector<8x256xf32> to vector<8x256xbf16>
    %cst_40 = arith.constant dense<0.000000e+00> : vector<8x1024xf32>
    %105 = tpu.matmul %104, %32, %cst_40 {dimension_numbers = #tpu.dot_dimension_numbers<[1], [0], [0], [1], [0, 0, 1, 1], [], []>} : vector<8x256xbf16>, vector<256x1024xbf16>, vector<8x1024xf32> -> vector<8x1024xf32>
    %106 = vector.extract_strided_slice %5 {offsets = [24, 0], sizes = [8, 1024], strides = [1, 1]} : vector<64x1024xf32> to vector<8x1024xf32>
    %107 = arith.addf %105, %106 : vector<8x1024xf32>
    %108 = vector.extract_strided_slice %107 {offsets = [0, 0], sizes = [8, 768], strides = [1, 1]} : vector<8x1024xf32> to vector<8x768xf32>
    %cst_41 = arith.constant 5.000000e-01 : f32
    %109 = vector.broadcast %cst_41 : f32 to vector<8x768xf32>
    %110 = arith.mulf %109, %108 : vector<8x768xf32>
    %111 = math.tanh %110 : vector<8x768xf32>
    %cst_42 = arith.constant 5.000000e-01 : f32
    %112 = vector.broadcast %cst_42 : f32 to vector<8x768xf32>
    %113 = arith.mulf %112, %111 : vector<8x768xf32>
    %cst_43 = arith.constant 5.000000e-01 : f32
    %114 = vector.broadcast %cst_43 : f32 to vector<8x768xf32>
    %115 = arith.addf %113, %114 : vector<8x768xf32>
    %116 = vector.extract_strided_slice %107 {offsets = [0, 768], sizes = [8, 256], strides = [1, 1]} : vector<8x1024xf32> to vector<8x256xf32>
    %117 = math.tanh %116 : vector<8x256xf32>
    %118 = vector.extract_strided_slice %115 {offsets = [0, 512], sizes = [8, 128], strides = [1, 1]} : vector<8x768xf32> to vector<8x128xf32>
    %119 = arith.mulf %118, %88 : vector<8x128xf32>
    %120 = vector.extract_strided_slice %115 {offsets = [0, 384], sizes = [8, 128], strides = [1, 1]} : vector<8x768xf32> to vector<8x128xf32>
    %121 = vector.extract_strided_slice %117 {offsets = [0, 128], sizes = [8, 128], strides = [1, 1]} : vector<8x256xf32> to vector<8x128xf32>
    %122 = arith.mulf %120, %121 : vector<8x128xf32>
    %123 = arith.addf %119, %122 : vector<8x128xf32>
    %124 = vector.extract_strided_slice %115 {offsets = [0, 640], sizes = [8, 128], strides = [1, 1]} : vector<8x768xf32> to vector<8x128xf32>
    %125 = math.tanh %123 : vector<8x128xf32>
    %126 = arith.mulf %124, %125 : vector<8x128xf32>
    %c0_44 = arith.constant 0 : index
    %c128_45 = arith.constant 128 : index
    %127 = vector.load %arg8[%c0_44, %c128_45] : memref<8x256xf32, #tpu.memory_space<vmem>>, vector<8x128xf32>
    tpu.vector_store %arg8[%c0_44, %c128_45], %126 {strides = array<i32>} : memref<8x256xf32, #tpu.memory_space<vmem>>, vector<8x128xf32>,
    %128 = vector.extract_strided_slice %115 {offsets = [0, 128], sizes = [8, 128], strides = [1, 1]} : vector<8x768xf32> to vector<8x128xf32>
    %129 = arith.mulf %128, %98 : vector<8x128xf32>
    %130 = vector.extract_strided_slice %115 {offsets = [0, 0], sizes = [8, 128], strides = [1, 1]} : vector<8x768xf32> to vector<8x128xf32>
    %131 = vector.extract_strided_slice %117 {offsets = [0, 0], sizes = [8, 128], strides = [1, 1]} : vector<8x256xf32> to vector<8x128xf32>
    %132 = arith.mulf %130, %131 : vector<8x128xf32>
    %133 = arith.addf %129, %132 : vector<8x128xf32>
    %134 = vector.extract_strided_slice %115 {offsets = [0, 256], sizes = [8, 128], strides = [1, 1]} : vector<8x768xf32> to vector<8x128xf32>
    %135 = math.tanh %133 : vector<8x128xf32>
    %136 = arith.mulf %134, %135 : vector<8x128xf32>
    %c0_46 = arith.constant 0 : index
    %c0_47 = arith.constant 0 : index
    %137 = vector.load %arg8[%c0_46, %c0_47] : memref<8x256xf32, #tpu.memory_space<vmem>>, vector<8x128xf32>
    tpu.vector_store %arg8[%c0_46, %c0_47], %136 {strides = array<i32>} : memref<8x256xf32, #tpu.memory_space<vmem>>, vector<8x128xf32>,
    %c0_48 = arith.constant 0 : index
    %c0_49 = arith.constant 0 : index
    %138 = vector.load %arg8[%c0_48, %c0_49] : memref<8x256xf32, #tpu.memory_space<vmem>>, vector<8x256xf32>
    %139 = arith.truncf %138 : vector<8x256xf32> to vector<8x256xbf16>
    %cst_50 = arith.constant dense<0.000000e+00> : vector<8x1024xf32>
    %140 = tpu.matmul %139, %32, %cst_50 {dimension_numbers = #tpu.dot_dimension_numbers<[1], [0], [0], [1], [0, 0, 1, 1], [], []>} : vector<8x256xbf16>, vector<256x1024xbf16>, vector<8x1024xf32> -> vector<8x1024xf32>
    %141 = vector.extract_strided_slice %5 {offsets = [32, 0], sizes = [8, 1024], strides = [1, 1]} : vector<64x1024xf32> to vector<8x1024xf32>
    %142 = arith.addf %140, %141 : vector<8x1024xf32>
    %143 = vector.extract_strided_slice %142 {offsets = [0, 0], sizes = [8, 768], strides = [1, 1]} : vector<8x1024xf32> to vector<8x768xf32>
    %cst_51 = arith.constant 5.000000e-01 : f32
    %144 = vector.broadcast %cst_51 : f32 to vector<8x768xf32>
    %145 = arith.mulf %144, %143 : vector<8x768xf32>
    %146 = math.tanh %145 : vector<8x768xf32>
    %cst_52 = arith.constant 5.000000e-01 : f32
    %147 = vector.broadcast %cst_52 : f32 to vector<8x768xf32>
    %148 = arith.mulf %147, %146 : vector<8x768xf32>
    %cst_53 = arith.constant 5.000000e-01 : f32
    %149 = vector.broadcast %cst_53 : f32 to vector<8x768xf32>
    %150 = arith.addf %148, %149 : vector<8x768xf32>
    %151 = vector.extract_strided_slice %142 {offsets = [0, 768], sizes = [8, 256], strides = [1, 1]} : vector<8x1024xf32> to vector<8x256xf32>
    %152 = math.tanh %151 : vector<8x256xf32>
    %153 = vector.extract_strided_slice %150 {offsets = [0, 512], sizes = [8, 128], strides = [1, 1]} : vector<8x768xf32> to vector<8x128xf32>
    %154 = arith.mulf %153, %123 : vector<8x128xf32>
    %155 = vector.extract_strided_slice %150 {offsets = [0, 384], sizes = [8, 128], strides = [1, 1]} : vector<8x768xf32> to vector<8x128xf32>
    %156 = vector.extract_strided_slice %152 {offsets = [0, 128], sizes = [8, 128], strides = [1, 1]} : vector<8x256xf32> to vector<8x128xf32>
    %157 = arith.mulf %155, %156 : vector<8x128xf32>
    %158 = arith.addf %154, %157 : vector<8x128xf32>
    %159 = vector.extract_strided_slice %150 {offsets = [0, 640], sizes = [8, 128], strides = [1, 1]} : vector<8x768xf32> to vector<8x128xf32>
    %160 = math.tanh %158 : vector<8x128xf32>
    %161 = arith.mulf %159, %160 : vector<8x128xf32>
    %c0_54 = arith.constant 0 : index
    %c128_55 = arith.constant 128 : index
    %162 = vector.load %arg8[%c0_54, %c128_55] : memref<8x256xf32, #tpu.memory_space<vmem>>, vector<8x128xf32>
    tpu.vector_store %arg8[%c0_54, %c128_55], %161 {strides = array<i32>} : memref<8x256xf32, #tpu.memory_space<vmem>>, vector<8x128xf32>,
    %163 = vector.extract_strided_slice %150 {offsets = [0, 128], sizes = [8, 128], strides = [1, 1]} : vector<8x768xf32> to vector<8x128xf32>
    %164 = arith.mulf %163, %133 : vector<8x128xf32>
    %165 = vector.extract_strided_slice %150 {offsets = [0, 0], sizes = [8, 128], strides = [1, 1]} : vector<8x768xf32> to vector<8x128xf32>
    %166 = vector.extract_strided_slice %152 {offsets = [0, 0], sizes = [8, 128], strides = [1, 1]} : vector<8x256xf32> to vector<8x128xf32>
    %167 = arith.mulf %165, %166 : vector<8x128xf32>
    %168 = arith.addf %164, %167 : vector<8x128xf32>
    %169 = vector.extract_strided_slice %150 {offsets = [0, 256], sizes = [8, 128], strides = [1, 1]} : vector<8x768xf32> to vector<8x128xf32>
    %170 = math.tanh %168 : vector<8x128xf32>
    %171 = arith.mulf %169, %170 : vector<8x128xf32>
    %c0_56 = arith.constant 0 : index
    %c0_57 = arith.constant 0 : index
    %172 = vector.load %arg8[%c0_56, %c0_57] : memref<8x256xf32, #tpu.memory_space<vmem>>, vector<8x128xf32>
    tpu.vector_store %arg8[%c0_56, %c0_57], %171 {strides = array<i32>} : memref<8x256xf32, #tpu.memory_space<vmem>>, vector<8x128xf32>,
    %c0_58 = arith.constant 0 : index
    %c0_59 = arith.constant 0 : index
    %173 = vector.load %arg8[%c0_58, %c0_59] : memref<8x256xf32, #tpu.memory_space<vmem>>, vector<8x256xf32>
    %174 = arith.truncf %173 : vector<8x256xf32> to vector<8x256xbf16>
    %cst_60 = arith.constant dense<0.000000e+00> : vector<8x1024xf32>
    %175 = tpu.matmul %174, %32, %cst_60 {dimension_numbers = #tpu.dot_dimension_numbers<[1], [0], [0], [1], [0, 0, 1, 1], [], []>} : vector<8x256xbf16>, vector<256x1024xbf16>, vector<8x1024xf32> -> vector<8x1024xf32>
    %176 = vector.extract_strided_slice %5 {offsets = [40, 0], sizes = [8, 1024], strides = [1, 1]} : vector<64x1024xf32> to vector<8x1024xf32>
    %177 = arith.addf %175, %176 : vector<8x1024xf32>
    %178 = vector.extract_strided_slice %177 {offsets = [0, 0], sizes = [8, 768], strides = [1, 1]} : vector<8x1024xf32> to vector<8x768xf32>
    %cst_61 = arith.constant 5.000000e-01 : f32
    %179 = vector.broadcast %cst_61 : f32 to vector<8x768xf32>
    %180 = arith.mulf %179, %178 : vector<8x768xf32>
    %181 = math.tanh %180 : vector<8x768xf32>
    %cst_62 = arith.constant 5.000000e-01 : f32
    %182 = vector.broadcast %cst_62 : f32 to vector<8x768xf32>
    %183 = arith.mulf %182, %181 : vector<8x768xf32>
    %cst_63 = arith.constant 5.000000e-01 : f32
    %184 = vector.broadcast %cst_63 : f32 to vector<8x768xf32>
    %185 = arith.addf %183, %184 : vector<8x768xf32>
    %186 = vector.extract_strided_slice %177 {offsets = [0, 768], sizes = [8, 256], strides = [1, 1]} : vector<8x1024xf32> to vector<8x256xf32>
    %187 = math.tanh %186 : vector<8x256xf32>
    %188 = vector.extract_strided_slice %185 {offsets = [0, 512], sizes = [8, 128], strides = [1, 1]} : vector<8x768xf32> to vector<8x128xf32>
    %189 = arith.mulf %188, %158 : vector<8x128xf32>
    %190 = vector.extract_strided_slice %185 {offsets = [0, 384], sizes = [8, 128], strides = [1, 1]} : vector<8x768xf32> to vector<8x128xf32>
    %191 = vector.extract_strided_slice %187 {offsets = [0, 128], sizes = [8, 128], strides = [1, 1]} : vector<8x256xf32> to vector<8x128xf32>
    %192 = arith.mulf %190, %191 : vector<8x128xf32>
    %193 = arith.addf %189, %192 : vector<8x128xf32>
    %194 = vector.extract_strided_slice %185 {offsets = [0, 640], sizes = [8, 128], strides = [1, 1]} : vector<8x768xf32> to vector<8x128xf32>
    %195 = math.tanh %193 : vector<8x128xf32>
    %196 = arith.mulf %194, %195 : vector<8x128xf32>
    %c0_64 = arith.constant 0 : index
    %c128_65 = arith.constant 128 : index
    %197 = vector.load %arg8[%c0_64, %c128_65] : memref<8x256xf32, #tpu.memory_space<vmem>>, vector<8x128xf32>
    tpu.vector_store %arg8[%c0_64, %c128_65], %196 {strides = array<i32>} : memref<8x256xf32, #tpu.memory_space<vmem>>, vector<8x128xf32>,
    %198 = vector.extract_strided_slice %185 {offsets = [0, 128], sizes = [8, 128], strides = [1, 1]} : vector<8x768xf32> to vector<8x128xf32>
    %199 = arith.mulf %198, %168 : vector<8x128xf32>
    %200 = vector.extract_strided_slice %185 {offsets = [0, 0], sizes = [8, 128], strides = [1, 1]} : vector<8x768xf32> to vector<8x128xf32>
    %201 = vector.extract_strided_slice %187 {offsets = [0, 0], sizes = [8, 128], strides = [1, 1]} : vector<8x256xf32> to vector<8x128xf32>
    %202 = arith.mulf %200, %201 : vector<8x128xf32>
    %203 = arith.addf %199, %202 : vector<8x128xf32>
    %204 = vector.extract_strided_slice %185 {offsets = [0, 256], sizes = [8, 128], strides = [1, 1]} : vector<8x768xf32> to vector<8x128xf32>
    %205 = math.tanh %203 : vector<8x128xf32>
    %206 = arith.mulf %204, %205 : vector<8x128xf32>
    %c0_66 = arith.constant 0 : index
    %c0_67 = arith.constant 0 : index
    %207 = vector.load %arg8[%c0_66, %c0_67] : memref<8x256xf32, #tpu.memory_space<vmem>>, vector<8x128xf32>
    tpu.vector_store %arg8[%c0_66, %c0_67], %206 {strides = array<i32>} : memref<8x256xf32, #tpu.memory_space<vmem>>, vector<8x128xf32>,
    %c0_68 = arith.constant 0 : index
    %c0_69 = arith.constant 0 : index
    %208 = vector.load %arg8[%c0_68, %c0_69] : memref<8x256xf32, #tpu.memory_space<vmem>>, vector<8x256xf32>
    %209 = arith.truncf %208 : vector<8x256xf32> to vector<8x256xbf16>
    %cst_70 = arith.constant dense<0.000000e+00> : vector<8x1024xf32>
    %210 = tpu.matmul %209, %32, %cst_70 {dimension_numbers = #tpu.dot_dimension_numbers<[1], [0], [0], [1], [0, 0, 1, 1], [], []>} : vector<8x256xbf16>, vector<256x1024xbf16>, vector<8x1024xf32> -> vector<8x1024xf32>
    %211 = vector.extract_strided_slice %5 {offsets = [48, 0], sizes = [8, 1024], strides = [1, 1]} : vector<64x1024xf32> to vector<8x1024xf32>
    %212 = arith.addf %210, %211 : vector<8x1024xf32>
    %213 = vector.extract_strided_slice %212 {offsets = [0, 0], sizes = [8, 768], strides = [1, 1]} : vector<8x1024xf32> to vector<8x768xf32>
    %cst_71 = arith.constant 5.000000e-01 : f32
    %214 = vector.broadcast %cst_71 : f32 to vector<8x768xf32>
    %215 = arith.mulf %214, %213 : vector<8x768xf32>
    %216 = math.tanh %215 : vector<8x768xf32>
    %cst_72 = arith.constant 5.000000e-01 : f32
    %217 = vector.broadcast %cst_72 : f32 to vector<8x768xf32>
    %218 = arith.mulf %217, %216 : vector<8x768xf32>
    %cst_73 = arith.constant 5.000000e-01 : f32
    %219 = vector.broadcast %cst_73 : f32 to vector<8x768xf32>
    %220 = arith.addf %218, %219 : vector<8x768xf32>
    %221 = vector.extract_strided_slice %212 {offsets = [0, 768], sizes = [8, 256], strides = [1, 1]} : vector<8x1024xf32> to vector<8x256xf32>
    %222 = math.tanh %221 : vector<8x256xf32>
    %223 = vector.extract_strided_slice %220 {offsets = [0, 512], sizes = [8, 128], strides = [1, 1]} : vector<8x768xf32> to vector<8x128xf32>
    %224 = arith.mulf %223, %193 : vector<8x128xf32>
    %225 = vector.extract_strided_slice %220 {offsets = [0, 384], sizes = [8, 128], strides = [1, 1]} : vector<8x768xf32> to vector<8x128xf32>
    %226 = vector.extract_strided_slice %222 {offsets = [0, 128], sizes = [8, 128], strides = [1, 1]} : vector<8x256xf32> to vector<8x128xf32>
    %227 = arith.mulf %225, %226 : vector<8x128xf32>
    %228 = arith.addf %224, %227 : vector<8x128xf32>
    %229 = vector.extract_strided_slice %220 {offsets = [0, 640], sizes = [8, 128], strides = [1, 1]} : vector<8x768xf32> to vector<8x128xf32>
    %230 = math.tanh %228 : vector<8x128xf32>
    %231 = arith.mulf %229, %230 : vector<8x128xf32>
    %c0_74 = arith.constant 0 : index
    %c128_75 = arith.constant 128 : index
    %232 = vector.load %arg8[%c0_74, %c128_75] : memref<8x256xf32, #tpu.memory_space<vmem>>, vector<8x128xf32>
    tpu.vector_store %arg8[%c0_74, %c128_75], %231 {strides = array<i32>} : memref<8x256xf32, #tpu.memory_space<vmem>>, vector<8x128xf32>,
    %233 = vector.extract_strided_slice %220 {offsets = [0, 128], sizes = [8, 128], strides = [1, 1]} : vector<8x768xf32> to vector<8x128xf32>
    %234 = arith.mulf %233, %203 : vector<8x128xf32>
    %235 = vector.extract_strided_slice %220 {offsets = [0, 0], sizes = [8, 128], strides = [1, 1]} : vector<8x768xf32> to vector<8x128xf32>
    %236 = vector.extract_strided_slice %222 {offsets = [0, 0], sizes = [8, 128], strides = [1, 1]} : vector<8x256xf32> to vector<8x128xf32>
    %237 = arith.mulf %235, %236 : vector<8x128xf32>
    %238 = arith.addf %234, %237 : vector<8x128xf32>
    %239 = vector.extract_strided_slice %220 {offsets = [0, 256], sizes = [8, 128], strides = [1, 1]} : vector<8x768xf32> to vector<8x128xf32>
    %240 = math.tanh %238 : vector<8x128xf32>
    %241 = arith.mulf %239, %240 : vector<8x128xf32>
    %c0_76 = arith.constant 0 : index
    %c0_77 = arith.constant 0 : index
    %242 = vector.load %arg8[%c0_76, %c0_77] : memref<8x256xf32, #tpu.memory_space<vmem>>, vector<8x128xf32>
    tpu.vector_store %arg8[%c0_76, %c0_77], %241 {strides = array<i32>} : memref<8x256xf32, #tpu.memory_space<vmem>>, vector<8x128xf32>,
    %c0_78 = arith.constant 0 : index
    %c0_79 = arith.constant 0 : index
    %243 = vector.load %arg8[%c0_78, %c0_79] : memref<8x256xf32, #tpu.memory_space<vmem>>, vector<8x256xf32>
    %244 = arith.truncf %243 : vector<8x256xf32> to vector<8x256xbf16>
    %cst_80 = arith.constant dense<0.000000e+00> : vector<8x1024xf32>
    %245 = tpu.matmul %244, %32, %cst_80 {dimension_numbers = #tpu.dot_dimension_numbers<[1], [0], [0], [1], [0, 0, 1, 1], [], []>} : vector<8x256xbf16>, vector<256x1024xbf16>, vector<8x1024xf32> -> vector<8x1024xf32>
    %246 = vector.extract_strided_slice %5 {offsets = [56, 0], sizes = [8, 1024], strides = [1, 1]} : vector<64x1024xf32> to vector<8x1024xf32>
    %247 = arith.addf %245, %246 : vector<8x1024xf32>
    %248 = vector.extract_strided_slice %247 {offsets = [0, 0], sizes = [8, 768], strides = [1, 1]} : vector<8x1024xf32> to vector<8x768xf32>
    %cst_81 = arith.constant 5.000000e-01 : f32
    %249 = vector.broadcast %cst_81 : f32 to vector<8x768xf32>
    %250 = arith.mulf %249, %248 : vector<8x768xf32>
    %251 = math.tanh %250 : vector<8x768xf32>
    %cst_82 = arith.constant 5.000000e-01 : f32
    %252 = vector.broadcast %cst_82 : f32 to vector<8x768xf32>
    %253 = arith.mulf %252, %251 : vector<8x768xf32>
    %cst_83 = arith.constant 5.000000e-01 : f32
    %254 = vector.broadcast %cst_83 : f32 to vector<8x768xf32>
    %255 = arith.addf %253, %254 : vector<8x768xf32>
    %256 = vector.extract_strided_slice %247 {offsets = [0, 768], sizes = [8, 256], strides = [1, 1]} : vector<8x1024xf32> to vector<8x256xf32>
    %257 = math.tanh %256 : vector<8x256xf32>
    %258 = vector.extract_strided_slice %255 {offsets = [0, 512], sizes = [8, 128], strides = [1, 1]} : vector<8x768xf32> to vector<8x128xf32>
    %259 = arith.mulf %258, %228 : vector<8x128xf32>
    %260 = vector.extract_strided_slice %255 {offsets = [0, 384], sizes = [8, 128], strides = [1, 1]} : vector<8x768xf32> to vector<8x128xf32>
    %261 = vector.extract_strided_slice %257 {offsets = [0, 128], sizes = [8, 128], strides = [1, 1]} : vector<8x256xf32> to vector<8x128xf32>
    %262 = arith.mulf %260, %261 : vector<8x128xf32>
    %263 = arith.addf %259, %262 : vector<8x128xf32>
    %264 = vector.extract_strided_slice %255 {offsets = [0, 640], sizes = [8, 128], strides = [1, 1]} : vector<8x768xf32> to vector<8x128xf32>
    %265 = math.tanh %263 : vector<8x128xf32>
    %266 = arith.mulf %264, %265 : vector<8x128xf32>
    %c0_84 = arith.constant 0 : index
    %c128_85 = arith.constant 128 : index
    %267 = vector.load %arg8[%c0_84, %c128_85] : memref<8x256xf32, #tpu.memory_space<vmem>>, vector<8x128xf32>
    tpu.vector_store %arg8[%c0_84, %c128_85], %266 {strides = array<i32>} : memref<8x256xf32, #tpu.memory_space<vmem>>, vector<8x128xf32>,
    %268 = vector.extract_strided_slice %255 {offsets = [0, 128], sizes = [8, 128], strides = [1, 1]} : vector<8x768xf32> to vector<8x128xf32>
    %269 = arith.mulf %268, %238 : vector<8x128xf32>
    %270 = vector.extract_strided_slice %255 {offsets = [0, 0], sizes = [8, 128], strides = [1, 1]} : vector<8x768xf32> to vector<8x128xf32>
    %271 = vector.extract_strided_slice %257 {offsets = [0, 0], sizes = [8, 128], strides = [1, 1]} : vector<8x256xf32> to vector<8x128xf32>
    %272 = arith.mulf %270, %271 : vector<8x128xf32>
    %273 = arith.addf %269, %272 : vector<8x128xf32>
    %274 = vector.extract_strided_slice %255 {offsets = [0, 256], sizes = [8, 128], strides = [1, 1]} : vector<8x768xf32> to vector<8x128xf32>
    %275 = math.tanh %273 : vector<8x128xf32>
    %276 = arith.mulf %274, %275 : vector<8x128xf32>
    %c0_86 = arith.constant 0 : index
    %c0_87 = arith.constant 0 : index
    %277 = vector.load %arg8[%c0_86, %c0_87] : memref<8x256xf32, #tpu.memory_space<vmem>>, vector<8x128xf32>
    tpu.vector_store %arg8[%c0_86, %c0_87], %276 {strides = array<i32>} : memref<8x256xf32, #tpu.memory_space<vmem>>, vector<8x128xf32>,
    %c0_88 = arith.constant 0 : index
    %c0_89 = arith.constant 0 : index
    %278 = vector.load %arg8[%c0_88, %c0_89] : memref<8x256xf32, #tpu.memory_space<vmem>>, vector<8x256xf32>
    %279 = arith.truncf %278 : vector<8x256xf32> to vector<8x256xbf16>
    %cst_90 = arith.constant dense<0.000000e+00> : vector<8x1024xf32>
    %280 = tpu.matmul %279, %32, %cst_90 {dimension_numbers = #tpu.dot_dimension_numbers<[1], [0], [0], [1], [0, 0, 1, 1], [], []>} : vector<8x256xbf16>, vector<256x1024xbf16>, vector<8x1024xf32> -> vector<8x1024xf32>
    %281 = vector.extract_strided_slice %5 {offsets = [56, 0], sizes = [8, 1024], strides = [1, 1]} : vector<64x1024xf32> to vector<8x1024xf32>
    %282 = arith.addf %280, %281 : vector<8x1024xf32>
    %283 = vector.extract_strided_slice %282 {offsets = [0, 0], sizes = [8, 768], strides = [1, 1]} : vector<8x1024xf32> to vector<8x768xf32>
    %cst_91 = arith.constant 5.000000e-01 : f32
    %284 = vector.broadcast %cst_91 : f32 to vector<8x768xf32>
    %285 = arith.mulf %284, %283 : vector<8x768xf32>
    %286 = math.tanh %285 : vector<8x768xf32>
    %cst_92 = arith.constant 5.000000e-01 : f32
    %287 = vector.broadcast %cst_92 : f32 to vector<8x768xf32>
    %288 = arith.mulf %287, %286 : vector<8x768xf32>
    %cst_93 = arith.constant 5.000000e-01 : f32
    %289 = vector.broadcast %cst_93 : f32 to vector<8x768xf32>
    %290 = arith.addf %288, %289 : vector<8x768xf32>
    %291 = vector.extract_strided_slice %282 {offsets = [0, 768], sizes = [8, 256], strides = [1, 1]} : vector<8x1024xf32> to vector<8x256xf32>
    %292 = math.tanh %291 : vector<8x256xf32>
    %293 = vector.extract_strided_slice %290 {offsets = [0, 512], sizes = [8, 128], strides = [1, 1]} : vector<8x768xf32> to vector<8x128xf32>
    %294 = arith.mulf %293, %263 : vector<8x128xf32>
    %295 = vector.extract_strided_slice %290 {offsets = [0, 384], sizes = [8, 128], strides = [1, 1]} : vector<8x768xf32> to vector<8x128xf32>
    %296 = vector.extract_strided_slice %292 {offsets = [0, 128], sizes = [8, 128], strides = [1, 1]} : vector<8x256xf32> to vector<8x128xf32>
    %297 = arith.mulf %295, %296 : vector<8x128xf32>
    %298 = arith.addf %294, %297 : vector<8x128xf32>
    %299 = vector.extract_strided_slice %290 {offsets = [0, 640], sizes = [8, 128], strides = [1, 1]} : vector<8x768xf32> to vector<8x128xf32>
    %300 = math.tanh %298 : vector<8x128xf32>
    %301 = arith.mulf %299, %300 : vector<8x128xf32>
    %c0_94 = arith.constant 0 : index
    %c128_95 = arith.constant 128 : index
    %302 = vector.load %arg8[%c0_94, %c128_95] : memref<8x256xf32, #tpu.memory_space<vmem>>, vector<8x128xf32>
    tpu.vector_store %arg8[%c0_94, %c128_95], %301 {strides = array<i32>} : memref<8x256xf32, #tpu.memory_space<vmem>>, vector<8x128xf32>,
    %c0_96 = arith.constant 0 : index
    %c128_97 = arith.constant 128 : index
    %303 = vector.load %arg8[%c0_96, %c128_97] : memref<8x256xf32, #tpu.memory_space<vmem>>, vector<8x128xf32>
    %304 = arith.truncf %303 : vector<8x128xf32> to vector<8x128xbf16>
    %c0_98 = arith.constant 0 : index
    %c0_99 = arith.constant 0 : index
    %305 = vector.load %arg4[%c0_98, %c0_99] : memref<128x1xbf16, #tpu.memory_space<vmem>>, vector<128x1xbf16>
    %cst_100 = arith.constant dense<0.000000e+00> : vector<8x1xf32>
    %306 = tpu.matmul %304, %305, %cst_100 {dimension_numbers = #tpu.dot_dimension_numbers<[1], [0], [0], [1], [0, 0, 1, 1], [], []>} : vector<8x128xbf16>, vector<128x1xbf16>, vector<8x1xf32> -> vector<8x1xf32>
    %c0_101 = arith.constant 0 : index
    %c0_102 = arith.constant 0 : index
    %307 = vector.load %arg5[%c0_101, %c0_102] : memref<1x1xf32, #tpu.memory_space<vmem>>, vector<1x1xf32>
    %308 = vector.broadcast %307 : vector<1x1xf32> to vector<8x1xf32>
    %309 = arith.addf %306, %308 : vector<8x1xf32>
    %c0_103 = arith.constant 0 : index
    %c0_104 = arith.constant 0 : index
    %310 = vector.load %arg6[%c0_103, %c0_104] : memref<8x1xf32, #tpu.memory_space<vmem>>, vector<8x1xf32>
    tpu.vector_store %arg6[%c0_103, %c0_104], %309 {strides = array<i32>} : memref<8x1xf32, #tpu.memory_space<vmem>>, vector<8x1xf32>,
    return
  }
}

</mosaic_0001>

<llo_original>
// kernel: tpu_custom_call.1
$region0: #{tpu_custom_call.1}
  #allocation0 [shape = 'u32[]', space=smem, size = 0x4, offset = 0x4, fixed_abs, tag = 'smem constant byte address 0x4 - core index']
  #allocation1 [shape = 'u32[72,128]{1,0:T(1,128)}', space=vmem, size = 0x9000, scoped, tag = 'internal scratch']
  #allocation2 [shape = 'bf16[256,1024]{1,0:T(8,128)(2,1)}', space=vmem, size = 0x80000, scoped, tag = 'scratch operand']
  #allocation3 [shape = 'f32[8,256]{1,0:T(8,128)}', space=vmem, size = 0x2000, scoped, tag = 'scratch operand']
  #allocation4 [shape = 's32[1]{0}', space=sflag, size = 0x4, scoped, tag = 'scratch operand']
  #allocation5 [shape = 'f32[1,1]{1,0:T(1,128)S(1)}', space=vmem, size = 0x200, scoped, tag = 'scoped memory for tpu_custom_call.1']
  #allocation6 [shape = 's32[]', space=sflag, size = 0x4, offset = 0, fixed_abs, tag = 'sflag constant byte address 0x0 - dummy sync flag']
  #allocation7 [shape = 's32[]', space=sflag, size = 0x4, offset = 0, fixed_abs, tag = 'sflag constant byte address 0x0 - dummy sync flag']
  #allocation8 [shape = 'u32[]', space=smem, size = 0x4, offset = 0x44, fixed_abs, tag = 'smem constant byte address 0x44 - assertion arg 0']
  #allocation9 [shape = 'u32[]', space=smem, size = 0x4, offset = 0x48, fixed_abs, tag = 'smem constant byte address 0x48 - assertion arg 1']
  %s0 = inlined_call_operand.vmem [shape: bf16[64,8], index: 0, kind: input, shape index: {}]
  %s1 = inlined_call_operand.vmem [shape: bf16[8,1024], index: 1, kind: input, shape index: {}]
  %s2 = inlined_call_operand.vmem [shape: f32[1,1024], index: 2, kind: input, shape index: {}]
  %s3 = inlined_call_operand.hbm [shape: bf16[256,1024], index: 3, kind: input, shape index: {}]
  %s4 = inlined_call_operand.vmem [shape: bf16[128,1], index: 4, kind: input, shape index: {}]
  %s5 = inlined_call_operand.<no memory space> [shape: f32[1,1], index: 5, kind: input, shape index: {}]
  %s6 = inlined_call_operand.vmem [shape: f32[8,1], index: 6, kind: output, shape index: {}]
  %s7 = sld [smem:[#allocation0]]
  $region34: #{tpu_custom_call.1} parent=0
    _
  %s9 = ssub.s32 1, %s7
  %s10 = scalar_select 0, %s9, %s7
  %v11 = vstv %s5
  %12 = vst [vmem:[#allocation5] sm:$0x1] %v11
  // Predicated region
  $region2: #{tpu_custom_call.1} parent=0 // pred_check
    _
  $region3: #{tpu_custom_call.1} parent=0 // pred_check_branch
    %14 = sbr.rel (0) target = $region5
  $region4: #{tpu_custom_call.1} parent=0 // pred_region
    _
  $region5: #{tpu_custom_call.1} parent=0 // pred_fallthru
    _
  // Predicated region
  $region6: #{tpu_custom_call.1} parent=0 // pred_check
    _
  $region7: #{tpu_custom_call.1} parent=0 // pred_check_branch
    %16 = sbr.rel (0) target = $region9
  $region8: #{tpu_custom_call.1} parent=0 // pred_region
    _
  $region9: #{tpu_custom_call.1} parent=0 // pred_fallthru
    _
  // Predicated region
  $region10: #{tpu_custom_call.1} parent=0 // pred_check
    _
  $region11: #{tpu_custom_call.1} parent=0 // pred_check_branch
    %18 = sbr.rel (0) target = $region13
  $region12: #{tpu_custom_call.1} parent=0 // pred_region
    _
  $region13: #{tpu_custom_call.1} parent=0 // pred_fallthru
    _
  // Predicated region
  $region14: #{tpu_custom_call.1} parent=0 // pred_check
    _
  $region15: #{tpu_custom_call.1} parent=0 // pred_check_branch
    %20 = sbr.rel (0) target = $region17
  $region16: #{tpu_custom_call.1} parent=0 // pred_region
    _
  $region17: #{tpu_custom_call.1} parent=0 // pred_fallthru
    _
  // Predicated region
  $region18: #{tpu_custom_call.1} parent=0 // pred_check
    _
  $region19: #{tpu_custom_call.1} parent=0 // pred_check_branch
    %22 = sbr.rel (0) target = $region21
  $region20: #{tpu_custom_call.1} parent=0 // pred_region
    _
  $region21: #{tpu_custom_call.1} parent=0 // pred_fallthru
    _
  // Predicated region
  $region22: #{tpu_custom_call.1} parent=0 // pred_check
    _
  $region23: #{tpu_custom_call.1} parent=0 // pred_check_branch
    %25 = sbr.rel target = $region25
  $region24: #{tpu_custom_call.1} parent=0 // pred_region
    %26 = sst [smem:[#allocation8]] [#allocation7]
    %27 = sst [smem:[#allocation9]] [#allocation6]
  $region25: #{tpu_custom_call.1} parent=0 // pred_fallthru
    _
  %29 = shalt.err (0)
  %s31 = sshll.u32 %s3, 4
  %s32 = int_to_ptr.hbm [resolvable:$true] %s31
  %s33 = sshll.u32 [#allocation2], 4
  %s34 = int_to_ptr.vmem [resolvable:$true] %s33
  %36 = dma.hbm_to_vmem [thread:$0]  %s32, 16384, %s34, [#allocation4]
  %v37 = vld [vmem:[%s0] sm:$0xf]
  %v38 = vld [vmem:[%s0 + $0x4] sm:$0xf]
  %v39 = vld [vmem:[%s0 + $0x8] sm:$0xf]
  %v40 = vld [vmem:[%s0 + $0xc] sm:$0xf]
  %v41 = vld [vmem:[%s0 + $0x10] sm:$0xf]
  %v42 = vld [vmem:[%s0 + $0x14] sm:$0xf]
  %v43 = vld [vmem:[%s0 + $0x18] sm:$0xf]
  %v44 = vld [vmem:[%s0 + $0x1c] sm:$0xf]
  %v45 = vld [vmem:[%s1] sm:$0xff]
  %v46 = vld [vmem:[%s1 + $0x8] sm:$0xff]
  %v47 = vld [vmem:[%s1 + $0x10] sm:$0xff]
  %v48 = vld [vmem:[%s1 + $0x18] sm:$0xff]
  %v49 = vld [vmem:[%s2] sm:$0xff]
  %v51 = vperm.slane %v49, 0
  %v52 = vperm.slane %v49, 1
  %v53 = vperm.slane %v49, 2
  %v54 = vperm.slane %v49, 3
  %v55 = vperm.slane %v49, 4
  %v56 = vperm.slane %v49, 5
  %v57 = vperm.slane %v49, 6
  %v58 = vperm.slane %v49, 7
  %v75 = vunpack.c.l.b16 %v37
  %v76 = vunpack.c.l.b16 %v38
  %v77 = vunpack.c.l.b16 %v39
  %v78 = vunpack.c.l.b16 %v40
  %v79 = vunpack.c.l.b16 %v41
  %v80 = vunpack.c.l.b16 %v42
  %v81 = vunpack.c.l.b16 %v43
  %v82 = vunpack.c.l.b16 %v44
  %v83 = vpack.c.b16 %v76, %v75
  %v84 = vpack.c.b16 %v78, %v77
  %v85 = vpack.c.b16 %v80, %v79
  %v86 = vpack.c.b16 %v82, %v81
  %v91 = vunpack.c.l.b16 %v45
  %v92 = vunpack.c.h.b16 %v45
  %v93 = vunpack.c.l.b16 %v46
  %v94 = vunpack.c.h.b16 %v46
  %v95 = vunpack.c.l.b16 %v47
  %v96 = vunpack.c.h.b16 %v47
  %v97 = vunpack.c.l.b16 %v48
  %v98 = vunpack.c.h.b16 %v48
  %v99 = vpack.c.b16 %v91, %v91
  %v100 = vpack.c.b16 %v92, %v92
  %v101 = vpack.c.b16 %v93, %v93
  %v102 = vpack.c.b16 %v94, %v94
  %v103 = vpack.c.b16 %v95, %v95
  %v104 = vpack.c.b16 %v96, %v96
  %v105 = vpack.c.b16 %v97, %v97
  %v106 = vpack.c.b16 %v98, %v98
  %vm107 = vcmask 64512
  %v109 = vsel %vm107, %v83, 0
  %v112 = vsel %vm107, %v84, 0
  %v115 = vsel %vm107, %v85, 0
  %v118 = vsel %vm107, %v86, 0
  %vm120 = vcmask 1043456
  %v122 = vsel %vm120, %v99, 0
  %v125 = vsel %vm120, %v100, 0
  %v128 = vsel %vm120, %v101, 0
  %v131 = vsel %vm120, %v102, 0
  %v134 = vsel %vm120, %v103, 0
  %v137 = vsel %vm120, %v104, 0
  %v140 = vsel %vm120, %v105, 0
  %v143 = vsel %vm120, %v106, 0
  %145 = vmatpush.bf16.msra.mxu0 0
  %146 = vmatpush.bf16.msra.mxu0 0
  %147 = vmatpush.bf16.msra.mxu0 0
  %148 = vmatpush.bf16.msra.mxu0 0
  %149 = vmatpush.bf16.msra.mxu0 0
  %150 = vmatpush.bf16.msra.mxu0 0
  %151 = vmatpush.bf16.msra.mxu0 0
  %152 = vmatpush.bf16.msra.mxu0 %v122
  %153 = vmatmul.bf16.gmra.mxu0 %v109
  %v154 = vpop.f32.mrf.mxu0
  %v155 = vadd.f32 %v51, %v154
  %v156 = vpop.f32.mrf.mxu0
  %v157 = vadd.f32 %v51, %v156
  %158 = vmatmul.bf16.gmra.mxu0 %v112
  %v159 = vpop.f32.mrf.mxu0
  %v160 = vadd.f32 %v51, %v159
  %v161 = vpop.f32.mrf.mxu0
  %v162 = vadd.f32 %v51, %v161
  %163 = vmatmul.bf16.gmra.mxu0 %v115
  %v164 = vpop.f32.mrf.mxu0
  %v165 = vadd.f32 %v51, %v164
  %v166 = vpop.f32.mrf.mxu0
  %v167 = vadd.f32 %v51, %v166
  %168 = vmatmul.bf16.gmra.mxu0 %v118
  %v169 = vpop.f32.mrf.mxu0
  %v170 = vadd.f32 %v51, %v169
  %v171 = vpop.f32.mrf.mxu0
  %v172 = vadd.f32 %v51, %v171
  %173 = vdwg.mxu0
  %174 = vmatpush.bf16.msra.mxu0 0
  %175 = vmatpush.bf16.msra.mxu0 0
  %176 = vmatpush.bf16.msra.mxu0 0
  %177 = vmatpush.bf16.msra.mxu0 0
  %178 = vmatpush.bf16.msra.mxu0 0
  %179 = vmatpush.bf16.msra.mxu0 0
  %180 = vmatpush.bf16.msra.mxu0 0
  %181 = vmatpush.bf16.msra.mxu0 %v125
  %182 = vmatmul.bf16.gmra.mxu0 %v109
  %v183 = vpop.f32.mrf.mxu0
  %v184 = vpop.f32.mrf.mxu0
  %v185 = vadd.f32 %v52, %v184
  %186 = vmatmul.bf16.gmra.mxu0 %v112
  %v187 = vpop.f32.mrf.mxu0
  %v188 = vadd.f32 %v52, %v187
  %v189 = vpop.f32.mrf.mxu0
  %v190 = vadd.f32 %v52, %v189
  %191 = vmatmul.bf16.gmra.mxu0 %v115
  %v192 = vpop.f32.mrf.mxu0
  %v193 = vadd.f32 %v52, %v192
  %v194 = vpop.f32.mrf.mxu0
  %v195 = vadd.f32 %v52, %v194
  %196 = vmatmul.bf16.gmra.mxu0 %v118
  %v197 = vpop.f32.mrf.mxu0
  %v198 = vadd.f32 %v52, %v197
  %v199 = vpop.f32.mrf.mxu0
  %v200 = vadd.f32 %v52, %v199
  %201 = vdwg.mxu0
  %202 = vmatpush.bf16.msra.mxu0 0
  %203 = vmatpush.bf16.msra.mxu0 0
  %204 = vmatpush.bf16.msra.mxu0 0
  %205 = vmatpush.bf16.msra.mxu0 0
  %206 = vmatpush.bf16.msra.mxu0 0
  %207 = vmatpush.bf16.msra.mxu0 0
  %208 = vmatpush.bf16.msra.mxu0 0
  %209 = vmatpush.bf16.msra.mxu0 %v128
  %210 = vmatmul.bf16.gmra.mxu0 %v109
  %v211 = vpop.f32.mrf.mxu0
  %v212 = vadd.f32 %v53, %v211
  %v213 = vpop.f32.mrf.mxu0
  %v214 = vadd.f32 %v53, %v213
  %215 = vmatmul.bf16.gmra.mxu0 %v112
  %v216 = vpop.f32.mrf.mxu0
  %v217 = vadd.f32 %v53, %v216
  %v218 = vpop.f32.mrf.mxu0
  %v219 = vadd.f32 %v53, %v218
  %220 = vmatmul.bf16.gmra.mxu0 %v115
  %v221 = vpop.f32.mrf.mxu0
  %v222 = vadd.f32 %v53, %v221
  %v223 = vpop.f32.mrf.mxu0
  %v224 = vadd.f32 %v53, %v223
  %225 = vmatmul.bf16.gmra.mxu0 %v118
  %v226 = vpop.f32.mrf.mxu0
  %v227 = vadd.f32 %v53, %v226
  %v228 = vpop.f32.mrf.mxu0
  %v229 = vadd.f32 %v53, %v228
  %230 = vdwg.mxu0
  %231 = vmatpush.bf16.msra.mxu0 0
  %232 = vmatpush.bf16.msra.mxu0 0
  %233 = vmatpush.bf16.msra.mxu0 0
  %234 = vmatpush.bf16.msra.mxu0 0
  %235 = vmatpush.bf16.msra.mxu0 0
  %236 = vmatpush.bf16.msra.mxu0 0
  %237 = vmatpush.bf16.msra.mxu0 0
  %238 = vmatpush.bf16.msra.mxu0 %v131
  %239 = vmatmul.bf16.gmra.mxu0 %v109
  %v240 = vpop.f32.mrf.mxu0
  %v241 = vpop.f32.mrf.mxu0
  %v242 = vadd.f32 %v54, %v241
  %243 = vmatmul.bf16.gmra.mxu0 %v112
  %v244 = vpop.f32.mrf.mxu0
  %v245 = vadd.f32 %v54, %v244
  %v246 = vpop.f32.mrf.mxu0
  %v247 = vadd.f32 %v54, %v246
  %248 = vmatmul.bf16.gmra.mxu0 %v115
  %v249 = vpop.f32.mrf.mxu0
  %v250 = vadd.f32 %v54, %v249
  %v251 = vpop.f32.mrf.mxu0
  %v252 = vadd.f32 %v54, %v251
  %253 = vmatmul.bf16.gmra.mxu0 %v118
  %v254 = vpop.f32.mrf.mxu0
  %v255 = vadd.f32 %v54, %v254
  %v256 = vpop.f32.mrf.mxu0
  %v257 = vadd.f32 %v54, %v256
  %258 = vdwg.mxu0
  %259 = vmatpush.bf16.msra.mxu0 0
  %260 = vmatpush.bf16.msra.mxu0 0
  %261 = vmatpush.bf16.msra.mxu0 0
  %262 = vmatpush.bf16.msra.mxu0 0
  %263 = vmatpush.bf16.msra.mxu0 0
  %264 = vmatpush.bf16.msra.mxu0 0
  %265 = vmatpush.bf16.msra.mxu0 0
  %266 = vmatpush.bf16.msra.mxu0 %v134
  %267 = vmatmul.bf16.gmra.mxu0 %v109
  %v268 = vpop.f32.mrf.mxu0
  %v269 = vpop.f32.mrf.mxu0
  %v270 = vadd.f32 %v55, %v269
  %271 = vmatmul.bf16.gmra.mxu0 %v112
  %v272 = vpop.f32.mrf.mxu0
  %v273 = vadd.f32 %v55, %v272
  %v274 = vpop.f32.mrf.mxu0
  %v275 = vadd.f32 %v55, %v274
  %276 = vmatmul.bf16.gmra.mxu0 %v115
  %v277 = vpop.f32.mrf.mxu0
  %v278 = vadd.f32 %v55, %v277
  %v279 = vpop.f32.mrf.mxu0
  %v280 = vadd.f32 %v55, %v279
  %281 = vmatmul.bf16.gmra.mxu0 %v118
  %v282 = vpop.f32.mrf.mxu0
  %v283 = vadd.f32 %v55, %v282
  %v284 = vpop.f32.mrf.mxu0
  %v285 = vadd.f32 %v55, %v284
  %286 = vdwg.mxu0
  %287 = vmatpush.bf16.msra.mxu0 0
  %288 = vmatpush.bf16.msra.mxu0 0
  %289 = vmatpush.bf16.msra.mxu0 0
  %290 = vmatpush.bf16.msra.mxu0 0
  %291 = vmatpush.bf16.msra.mxu0 0
  %292 = vmatpush.bf16.msra.mxu0 0
  %293 = vmatpush.bf16.msra.mxu0 0
  %294 = vmatpush.bf16.msra.mxu0 %v137
  %295 = vmatmul.bf16.gmra.mxu0 %v109
  %v296 = vpop.f32.mrf.mxu0
  %v297 = vpop.f32.mrf.mxu0
  %v298 = vadd.f32 %v56, %v297
  %299 = vmatmul.bf16.gmra.mxu0 %v112
  %v300 = vpop.f32.mrf.mxu0
  %v301 = vadd.f32 %v56, %v300
  %v302 = vpop.f32.mrf.mxu0
  %v303 = vadd.f32 %v56, %v302
  %304 = vmatmul.bf16.gmra.mxu0 %v115
  %v305 = vpop.f32.mrf.mxu0
  %v306 = vadd.f32 %v56, %v305
  %v307 = vpop.f32.mrf.mxu0
  %v308 = vadd.f32 %v56, %v307
  %309 = vmatmul.bf16.gmra.mxu0 %v118
  %v310 = vpop.f32.mrf.mxu0
  %v311 = vadd.f32 %v56, %v310
  %v312 = vpop.f32.mrf.mxu0
  %v313 = vadd.f32 %v56, %v312
  %314 = vdwg.mxu0
  %315 = vmatpush.bf16.msra.mxu0 0
  %316 = vmatpush.bf16.msra.mxu0 0
  %317 = vmatpush.bf16.msra.mxu0 0
  %318 = vmatpush.bf16.msra.mxu0 0
  %319 = vmatpush.bf16.msra.mxu0 0
  %320 = vmatpush.bf16.msra.mxu0 0
  %321 = vmatpush.bf16.msra.mxu0 0
  %322 = vmatpush.bf16.msra.mxu0 %v140
  %323 = vmatmul.bf16.gmra.mxu0 %v109
  %v324 = vpop.f32.mrf.mxu0
  %v325 = vadd.f32 %v57, %v324
  %v326 = vpop.f32.mrf.mxu0
  %v327 = vadd.f32 %v57, %v326
  %328 = vmatmul.bf16.gmra.mxu0 %v112
  %v329 = vpop.f32.mrf.mxu0
  %v330 = vadd.f32 %v57, %v329
  %v331 = vpop.f32.mrf.mxu0
  %v332 = vadd.f32 %v57, %v331
  %333 = vmatmul.bf16.gmra.mxu0 %v115
  %v334 = vpop.f32.mrf.mxu0
  %v335 = vadd.f32 %v57, %v334
  %v336 = vpop.f32.mrf.mxu0
  %v337 = vadd.f32 %v57, %v336
  %338 = vmatmul.bf16.gmra.mxu0 %v118
  %v339 = vpop.f32.mrf.mxu0
  %v340 = vadd.f32 %v57, %v339
  %v341 = vpop.f32.mrf.mxu0
  %v342 = vadd.f32 %v57, %v341
  %343 = vdwg.mxu0
  %344 = vmatpush.bf16.msra.mxu0 0
  %345 = vmatpush.bf16.msra.mxu0 0
  %346 = vmatpush.bf16.msra.mxu0 0
  %347 = vmatpush.bf16.msra.mxu0 0
  %348 = vmatpush.bf16.msra.mxu0 0
  %349 = vmatpush.bf16.msra.mxu0 0
  %350 = vmatpush.bf16.msra.mxu0 0
  %351 = vmatpush.bf16.msra.mxu0 %v143
  %352 = vmatmul.bf16.gmra.mxu0 %v109
  %v353 = vpop.f32.mrf.mxu0
  %v354 = vpop.f32.mrf.mxu0
  %v355 = vadd.f32 %v58, %v354
  %356 = vmatmul.bf16.gmra.mxu0 %v112
  %v357 = vpop.f32.mrf.mxu0
  %v358 = vadd.f32 %v58, %v357
  %v359 = vpop.f32.mrf.mxu0
  %v360 = vadd.f32 %v58, %v359
  %361 = vmatmul.bf16.gmra.mxu0 %v115
  %v362 = vpop.f32.mrf.mxu0
  %v363 = vadd.f32 %v58, %v362
  %v364 = vpop.f32.mrf.mxu0
  %v365 = vadd.f32 %v58, %v364
  %366 = vmatmul.bf16.gmra.mxu0 %v118
  %v367 = vpop.f32.mrf.mxu0
  %v368 = vadd.f32 %v58, %v367
  %v369 = vpop.f32.mrf.mxu0
  %v370 = vadd.f32 %v58, %v369
  %371 = vdwg.mxu0
  %v372 = vmul.f32 %v155, 0.5
  %v373 = vtanh.pop %v372
  %v374 = vmul.f32 %v373, 0.5
  %v375 = vadd.f32 %v374, 0.5
  %v376 = vtanh.pop %v325
  %v377 = vmul.f32 %v375, %v376
  %v378 = vmul.f32 %v212, 0.5
  %v379 = vtanh.pop %v378
  %v380 = vmul.f32 %v379, 0.5
  %v381 = vadd.f32 %v380, 0.5
  %v382 = vtanh.pop %v377
  %v383 = vmul.f32 %v381, %v382
  %384 = vst [vmem:[#allocation3] sm:$0xff] %v383
  %385 = vst [vmem:[#allocation3 + $0x8] sm:$0xff] 0.0
  %s386 = smul.u32 4, 32
  %s387 = smul.u32 %s386, 8
  %s388 = sshll.u32 %s387, 4
  %389 = dma.done [#allocation4], %s388
  %v390 = vld [vmem:[#allocation2] sm:$0xff]
  %v391 = vld [vmem:[#allocation2 + $0x8] sm:$0xff]
  %v392 = vld [vmem:[#allocation2 + $0x10] sm:$0xff]
  %v393 = vld [vmem:[#allocation2 + $0x18] sm:$0xff]
  %v394 = vld [vmem:[#allocation2 + $0x20] sm:$0xff]
  %v395 = vld [vmem:[#allocation2 + $0x28] sm:$0xff]
  %v396 = vld [vmem:[#allocation2 + $0x30] sm:$0xff]
  %v397 = vld [vmem:[#allocation2 + $0x38] sm:$0xff]
  %v398 = vld [vmem:[#allocation2 + $0x40] sm:$0xff]
  %v399 = vld [vmem:[#allocation2 + $0x48] sm:$0xff]
  %v400 = vld [vmem:[#allocation2 + $0x50] sm:$0xff]
  %v401 = vld [vmem:[#allocation2 + $0x58] sm:$0xff]
  %v402 = vld [vmem:[#allocation2 + $0x60] sm:$0xff]
  %v403 = vld [vmem:[#allocation2 + $0x68] sm:$0xff]
  %v404 = vld [vmem:[#allocation2 + $0x70] sm:$0xff]
  %v405 = vld [vmem:[#allocation2 + $0x78] sm:$0xff]
  %v406 = vld [vmem:[#allocation2 + $0x80] sm:$0xff]
  %v407 = vld [vmem:[#allocation2 + $0x88] sm:$0xff]
  %v408 = vld [vmem:[#allocation2 + $0x90] sm:$0xff]
  %v409 = vld [vmem:[#allocation2 + $0x98] sm:$0xff]
  %v410 = vld [vmem:[#allocation2 + $0xa0] sm:$0xff]
  %v411 = vld [vmem:[#allocation2 + $0xa8] sm:$0xff]
  %v412 = vld [vmem:[#allocation2 + $0xb0] sm:$0xff]
  %v413 = vld [vmem:[#allocation2 + $0xb8] sm:$0xff]
  %v414 = vld [vmem:[#allocation2 + $0xc0] sm:$0xff]
  %v415 = vld [vmem:[#allocation2 + $0xc8] sm:$0xff]
  %v416 = vld [vmem:[#allocation2 + $0xd0] sm:$0xff]
  %v417 = vld [vmem:[#allocation2 + $0xd8] sm:$0xff]
  %v418 = vld [vmem:[#allocation2 + $0xe0] sm:$0xff]
  %v419 = vld [vmem:[#allocation2 + $0xe8] sm:$0xff]
  %v420 = vld [vmem:[#allocation2 + $0xf0] sm:$0xff]
  %v421 = vld [vmem:[#allocation2 + $0xf8] sm:$0xff]
  %v422 = vld [vmem:[#allocation2 + $0x100] sm:$0xff]
  %v423 = vld [vmem:[#allocation2 + $0x108] sm:$0xff]
  %v424 = vld [vmem:[#allocation2 + $0x110] sm:$0xff]
  %v425 = vld [vmem:[#allocation2 + $0x118] sm:$0xff]
  %v426 = vld [vmem:[#allocation2 + $0x120] sm:$0xff]
  %v427 = vld [vmem:[#allocation2 + $0x128] sm:$0xff]
  %v428 = vld [vmem:[#allocation2 + $0x130] sm:$0xff]
  %v429 = vld [vmem:[#allocation2 + $0x138] sm:$0xff]
  %v430 = vld [vmem:[#allocation2 + $0x140] sm:$0xff]
  %v431 = vld [vmem:[#allocation2 + $0x148] sm:$0xff]
  %v432 = vld [vmem:[#allocation2 + $0x150] sm:$0xff]
  %v433 = vld [vmem:[#allocation2 + $0x158] sm:$0xff]
  %v434 = vld [vmem:[#allocation2 + $0x160] sm:$0xff]
  %v435 = vld [vmem:[#allocation2 + $0x168] sm:$0xff]
  %v436 = vld [vmem:[#allocation2 + $0x170] sm:$0xff]
  %v437 = vld [vmem:[#allocation2 + $0x178] sm:$0xff]
  %v438 = vld [vmem:[#allocation2 + $0x180] sm:$0xff]
  %v439 = vld [vmem:[#allocation2 + $0x188] sm:$0xff]
  %v440 = vld [vmem:[#allocation2 + $0x190] sm:$0xff]
  %v441 = vld [vmem:[#allocation2 + $0x198] sm:$0xff]
  %v442 = vld [vmem:[#allocation2 + $0x1a0] sm:$0xff]
  %v443 = vld [vmem:[#allocation2 + $0x1a8] sm:$0xff]
  %v444 = vld [vmem:[#allocation2 + $0x1b0] sm:$0xff]
  %v445 = vld [vmem:[#allocation2 + $0x1b8] sm:$0xff]
  %v446 = vld [vmem:[#allocation2 + $0x1c0] sm:$0xff]
  %v447 = vld [vmem:[#allocation2 + $0x1c8] sm:$0xff]
  %v448 = vld [vmem:[#allocation2 + $0x1d0] sm:$0xff]
  %v449 = vld [vmem:[#allocation2 + $0x1d8] sm:$0xff]
  %v450 = vld [vmem:[#allocation2 + $0x1e0] sm:$0xff]
  %v451 = vld [vmem:[#allocation2 + $0x1e8] sm:$0xff]
  %v452 = vld [vmem:[#allocation2 + $0x1f0] sm:$0xff]
  %v453 = vld [vmem:[#allocation2 + $0x1f8] sm:$0xff]
  %v454 = vld [vmem:[#allocation2 + $0x200] sm:$0xff]
  %v455 = vld [vmem:[#allocation2 + $0x208] sm:$0xff]
  %v456 = vld [vmem:[#allocation2 + $0x210] sm:$0xff]
  %v457 = vld [vmem:[#allocation2 + $0x218] sm:$0xff]
  %v458 = vld [vmem:[#allocation2 + $0x220] sm:$0xff]
  %v459 = vld [vmem:[#allocation2 + $0x228] sm:$0xff]
  %v460 = vld [vmem:[#allocation2 + $0x230] sm:$0xff]
  %v461 = vld [vmem:[#allocation2 + $0x238] sm:$0xff]
  %v462 = vld [vmem:[#allocation2 + $0x240] sm:$0xff]
  %v463 = vld [vmem:[#allocation2 + $0x248] sm:$0xff]
  %v464 = vld [vmem:[#allocation2 + $0x250] sm:$0xff]
  %v465 = vld [vmem:[#allocation2 + $0x258] sm:$0xff]
  %v466 = vld [vmem:[#allocation2 + $0x260] sm:$0xff]
  %v467 = vld [vmem:[#allocation2 + $0x268] sm:$0xff]
  %v468 = vld [vmem:[#allocation2 + $0x270] sm:$0xff]
  %v469 = vld [vmem:[#allocation2 + $0x278] sm:$0xff]
  %v470 = vld [vmem:[#allocation2 + $0x280] sm:$0xff]
  %v471 = vld [vmem:[#allocation2 + $0x288] sm:$0xff]
  %v472 = vld [vmem:[#allocation2 + $0x290] sm:$0xff]
  %v473 = vld [vmem:[#allocation2 + $0x298] sm:$0xff]
  %v474 = vld [vmem:[#allocation2 + $0x2a0] sm:$0xff]
  %v475 = vld [vmem:[#allocation2 + $0x2a8] sm:$0xff]
  %v476 = vld [vmem:[#allocation2 + $0x2b0] sm:$0xff]
  %v477 = vld [vmem:[#allocation2 + $0x2b8] sm:$0xff]
  %v478 = vld [vmem:[#allocation2 + $0x2c0] sm:$0xff]
  %v479 = vld [vmem:[#allocation2 + $0x2c8] sm:$0xff]
  %v480 = vld [vmem:[#allocation2 + $0x2d0] sm:$0xff]
  %v481 = vld [vmem:[#allocation2 + $0x2d8] sm:$0xff]
  %v482 = vld [vmem:[#allocation2 + $0x2e0] sm:$0xff]
  %v483 = vld [vmem:[#allocation2 + $0x2e8] sm:$0xff]
  %v484 = vld [vmem:[#allocation2 + $0x2f0] sm:$0xff]
  %v485 = vld [vmem:[#allocation2 + $0x2f8] sm:$0xff]
  %v486 = vld [vmem:[#allocation2 + $0x300] sm:$0xff]
  %v487 = vld [vmem:[#allocation2 + $0x308] sm:$0xff]
  %v488 = vld [vmem:[#allocation2 + $0x310] sm:$0xff]
  %v489 = vld [vmem:[#allocation2 + $0x318] sm:$0xff]
  %v490 = vld [vmem:[#allocation2 + $0x320] sm:$0xff]
  %v491 = vld [vmem:[#allocation2 + $0x328] sm:$0xff]
  %v492 = vld [vmem:[#allocation2 + $0x330] sm:$0xff]
  %v493 = vld [vmem:[#allocation2 + $0x338] sm:$0xff]
  %v494 = vld [vmem:[#allocation2 + $0x340] sm:$0xff]
  %v495 = vld [vmem:[#allocation2 + $0x348] sm:$0xff]
  %v496 = vld [vmem:[#allocation2 + $0x350] sm:$0xff]
  %v497 = vld [vmem:[#allocation2 + $0x358] sm:$0xff]
  %v498 = vld [vmem:[#allocation2 + $0x360] sm:$0xff]
  %v499 = vld [vmem:[#allocation2 + $0x368] sm:$0xff]
  %v500 = vld [vmem:[#allocation2 + $0x370] sm:$0xff]
  %v501 = vld [vmem:[#allocation2 + $0x378] sm:$0xff]
  %v502 = vld [vmem:[#allocation2 + $0x380] sm:$0xff]
  %v503 = vld [vmem:[#allocation2 + $0x388] sm:$0xff]
  %v504 = vld [vmem:[#allocation2 + $0x390] sm:$0xff]
  %v505 = vld [vmem:[#allocation2 + $0x398] sm:$0xff]
  %v506 = vld [vmem:[#allocation2 + $0x3a0] sm:$0xff]
  %v507 = vld [vmem:[#allocation2 + $0x3a8] sm:$0xff]
  %v508 = vld [vmem:[#allocation2 + $0x3b0] sm:$0xff]
  %v509 = vld [vmem:[#allocation2 + $0x3b8] sm:$0xff]
  %v510 = vld [vmem:[#allocation2 + $0x3c0] sm:$0xff]
  %v511 = vld [vmem:[#allocation2 + $0x3c8] sm:$0xff]
  %v512 = vld [vmem:[#allocation2 + $0x3d0] sm:$0xff]
  %v513 = vld [vmem:[#allocation2 + $0x3d8] sm:$0xff]
  %v514 = vld [vmem:[#allocation2 + $0x3e0] sm:$0xff]
  %v515 = vld [vmem:[#allocation2 + $0x3e8] sm:$0xff]
  %v516 = vld [vmem:[#allocation2 + $0x3f0] sm:$0xff]
  %v517 = vld [vmem:[#allocation2 + $0x3f8] sm:$0xff]
  %v518 = vld [vmem:[#allocation3] sm:$0xff]
  %v519 = vld [vmem:[#allocation3 + $0x8] sm:$0xff]
  %v520 = vpack.c.bf16 %v518, %v518
  %v521 = vpack.c.bf16 %v519, %v519
  %v650 = vunpack.c.l.b16 %v390
  %v651 = vunpack.c.h.b16 %v390
  %v652 = vunpack.c.l.b16 %v391
  %v653 = vunpack.c.h.b16 %v391
  %v654 = vunpack.c.l.b16 %v392
  %v655 = vunpack.c.h.b16 %v392
  %v656 = vunpack.c.l.b16 %v393
  %v657 = vunpack.c.h.b16 %v393
  %v658 = vunpack.c.l.b16 %v394
  %v659 = vunpack.c.h.b16 %v394
  %v660 = vunpack.c.l.b16 %v395
  %v661 = vunpack.c.h.b16 %v395
  %v662 = vunpack.c.l.b16 %v396
  %v663 = vunpack.c.h.b16 %v396
  %v664 = vunpack.c.l.b16 %v397
  %v665 = vunpack.c.h.b16 %v397
  %v666 = vunpack.c.l.b16 %v398
  %v667 = vunpack.c.h.b16 %v398
  %v668 = vunpack.c.l.b16 %v399
  %v669 = vunpack.c.h.b16 %v399
  %v670 = vunpack.c.l.b16 %v400
  %v671 = vunpack.c.h.b16 %v400
  %v672 = vunpack.c.l.b16 %v401
  %v673 = vunpack.c.h.b16 %v401
  %v674 = vunpack.c.l.b16 %v402
  %v675 = vunpack.c.h.b16 %v402
  %v676 = vunpack.c.l.b16 %v403
  %v677 = vunpack.c.h.b16 %v403
  %v678 = vunpack.c.l.b16 %v404
  %v679 = vunpack.c.h.b16 %v404
  %v680 = vunpack.c.l.b16 %v405
  %v681 = vunpack.c.h.b16 %v405
  %v682 = vunpack.c.l.b16 %v406
  %v683 = vunpack.c.h.b16 %v406
  %v684 = vunpack.c.l.b16 %v407
  %v685 = vunpack.c.h.b16 %v407
  %v686 = vunpack.c.l.b16 %v408
  %v687 = vunpack.c.h.b16 %v408
  %v688 = vunpack.c.l.b16 %v409
  %v689 = vunpack.c.h.b16 %v409
  %v690 = vunpack.c.l.b16 %v410
  %v691 = vunpack.c.h.b16 %v410
  %v692 = vunpack.c.l.b16 %v411
  %v693 = vunpack.c.h.b16 %v411
  %v694 = vunpack.c.l.b16 %v412
  %v695 = vunpack.c.h.b16 %v412
  %v696 = vunpack.c.l.b16 %v413
  %v697 = vunpack.c.h.b16 %v413
  %v698 = vunpack.c.l.b16 %v414
  %v699 = vunpack.c.h.b16 %v414
  %v700 = vunpack.c.l.b16 %v415
  %v701 = vunpack.c.h.b16 %v415
  %v702 = vunpack.c.l.b16 %v416
  %v703 = vunpack.c.h.b16 %v416
  %v704 = vunpack.c.l.b16 %v417
  %v705 = vunpack.c.h.b16 %v417
  %v706 = vunpack.c.l.b16 %v418
  %v707 = vunpack.c.h.b16 %v418
  %v708 = vunpack.c.l.b16 %v419
  %v709 = vunpack.c.h.b16 %v419
  %v710 = vunpack.c.l.b16 %v420
  %v711 = vunpack.c.h.b16 %v420
  %v712 = vunpack.c.l.b16 %v421
  %v713 = vunpack.c.h.b16 %v421
  %v714 = vunpack.c.l.b16 %v422
  %v715 = vunpack.c.h.b16 %v422
  %v716 = vunpack.c.l.b16 %v423
  %v717 = vunpack.c.h.b16 %v423
  %v718 = vunpack.c.l.b16 %v424
  %v719 = vunpack.c.h.b16 %v424
  %v720 = vunpack.c.l.b16 %v425
  %v721 = vunpack.c.h.b16 %v425
  %v722 = vunpack.c.l.b16 %v426
  %v723 = vunpack.c.h.b16 %v426
  %v724 = vunpack.c.l.b16 %v427
  %v725 = vunpack.c.h.b16 %v427
  %v726 = vunpack.c.l.b16 %v428
  %v727 = vunpack.c.h.b16 %v428
  %v728 = vunpack.c.l.b16 %v429
  %v729 = vunpack.c.h.b16 %v429
  %v730 = vunpack.c.l.b16 %v430
  %v731 = vunpack.c.h.b16 %v430
  %v732 = vunpack.c.l.b16 %v431
  %v733 = vunpack.c.h.b16 %v431
  %v734 = vunpack.c.l.b16 %v432
  %v735 = vunpack.c.h.b16 %v432
  %v736 = vunpack.c.l.b16 %v433
  %v737 = vunpack.c.h.b16 %v433
  %v738 = vunpack.c.l.b16 %v434
  %v739 = vunpack.c.h.b16 %v434
  %v740 = vunpack.c.l.b16 %v435
  %v741 = vunpack.c.h.b16 %v435
  %v742 = vunpack.c.l.b16 %v436
  %v743 = vunpack.c.h.b16 %v436
  %v744 = vunpack.c.l.b16 %v437
  %v745 = vunpack.c.h.b16 %v437
  %v746 = vunpack.c.l.b16 %v438
  %v747 = vunpack.c.h.b16 %v438
  %v748 = vunpack.c.l.b16 %v439
  %v749 = vunpack.c.h.b16 %v439
  %v750 = vunpack.c.l.b16 %v440
  %v751 = vunpack.c.h.b16 %v440
  %v752 = vunpack.c.l.b16 %v441
  %v753 = vunpack.c.h.b16 %v441
  %v754 = vunpack.c.l.b16 %v442
  %v755 = vunpack.c.h.b16 %v442
  %v756 = vunpack.c.l.b16 %v443
  %v757 = vunpack.c.h.b16 %v443
  %v758 = vunpack.c.l.b16 %v444
  %v759 = vunpack.c.h.b16 %v444
  %v760 = vunpack.c.l.b16 %v445
  %v761 = vunpack.c.h.b16 %v445
  %v762 = vunpack.c.l.b16 %v446
  %v763 = vunpack.c.h.b16 %v446
  %v764 = vunpack.c.l.b16 %v447
  %v765 = vunpack.c.h.b16 %v447
  %v766 = vunpack.c.l.b16 %v448
  %v767 = vunpack.c.h.b16 %v448
  %v768 = vunpack.c.l.b16 %v449
  %v769 = vunpack.c.h.b16 %v449
  %v770 = vunpack.c.l.b16 %v450
  %v771 = vunpack.c.h.b16 %v450
  %v772 = vunpack.c.l.b16 %v451
  %v773 = vunpack.c.h.b16 %v451
  %v774 = vunpack.c.l.b16 %v452
  %v775 = vunpack.c.h.b16 %v452
  %v776 = vunpack.c.l.b16 %v453
  %v777 = vunpack.c.h.b16 %v453
  %v778 = vunpack.c.l.b16 %v454
  %v779 = vunpack.c.h.b16 %v454
  %v780 = vunpack.c.l.b16 %v455
  %v781 = vunpack.c.h.b16 %v455
  %v782 = vunpack.c.l.b16 %v456
  %v783 = vunpack.c.h.b16 %v456
  %v784 = vunpack.c.l.b16 %v457
  %v785 = vunpack.c.h.b16 %v457
  %v786 = vunpack.c.l.b16 %v458
  %v787 = vunpack.c.h.b16 %v458
  %v788 = vunpack.c.l.b16 %v459
  %v789 = vunpack.c.h.b16 %v459
  %v790 = vunpack.c.l.b16 %v460
  %v791 = vunpack.c.h.b16 %v460
  %v792 = vunpack.c.l.b16 %v461
  %v793 = vunpack.c.h.b16 %v461
  %v794 = vunpack.c.l.b16 %v462
  %v795 = vunpack.c.h.b16 %v462
  %v796 = vunpack.c.l.b16 %v463
  %v797 = vunpack.c.h.b16 %v463
  %v798 = vunpack.c.l.b16 %v464
  %v799 = vunpack.c.h.b16 %v464
  %v800 = vunpack.c.l.b16 %v465
  %v801 = vunpack.c.h.b16 %v465
  %v802 = vunpack.c.l.b16 %v466
  %v803 = vunpack.c.h.b16 %v466
  %v804 = vunpack.c.l.b16 %v467
  %v805 = vunpack.c.h.b16 %v467
  %v806 = vunpack.c.l.b16 %v468
  %v807 = vunpack.c.h.b16 %v468
  %v808 = vunpack.c.l.b16 %v469
  %v809 = vunpack.c.h.b16 %v469
  %v810 = vunpack.c.l.b16 %v470
  %v811 = vunpack.c.h.b16 %v470
  %v812 = vunpack.c.l.b16 %v471
  %v813 = vunpack.c.h.b16 %v471
  %v814 = vunpack.c.l.b16 %v472
  %v815 = vunpack.c.h.b16 %v472
  %v816 = vunpack.c.l.b16 %v473
  %v817 = vunpack.c.h.b16 %v473
  %v818 = vunpack.c.l.b16 %v474
  %v819 = vunpack.c.h.b16 %v474
  %v820 = vunpack.c.l.b16 %v475
  %v821 = vunpack.c.h.b16 %v475
  %v822 = vunpack.c.l.b16 %v476
  %v823 = vunpack.c.h.b16 %v476
  %v824 = vunpack.c.l.b16 %v477
  %v825 = vunpack.c.h.b16 %v477
  %v826 = vunpack.c.l.b16 %v478
  %v827 = vunpack.c.h.b16 %v478
  %v828 = vunpack.c.l.b16 %v479
  %v829 = vunpack.c.h.b16 %v479
  %v830 = vunpack.c.l.b16 %v480
  %v831 = vunpack.c.h.b16 %v480
  %v832 = vunpack.c.l.b16 %v481
  %v833 = vunpack.c.h.b16 %v481
  %v834 = vunpack.c.l.b16 %v482
  %v835 = vunpack.c.h.b16 %v482
  %v836 = vunpack.c.l.b16 %v483
  %v837 = vunpack.c.h.b16 %v483
  %v838 = vunpack.c.l.b16 %v484
  %v839 = vunpack.c.h.b16 %v484
  %v840 = vunpack.c.l.b16 %v485
  %v841 = vunpack.c.h.b16 %v485
  %v842 = vunpack.c.l.b16 %v486
  %v843 = vunpack.c.h.b16 %v486
  %v844 = vunpack.c.l.b16 %v487
  %v845 = vunpack.c.h.b16 %v487
  %v846 = vunpack.c.l.b16 %v488
  %v847 = vunpack.c.h.b16 %v488
  %v848 = vunpack.c.l.b16 %v489
  %v849 = vunpack.c.h.b16 %v489
  %v850 = vunpack.c.l.b16 %v490
  %v851 = vunpack.c.h.b16 %v490
  %v852 = vunpack.c.l.b16 %v491
  %v853 = vunpack.c.h.b16 %v491
  %v854 = vunpack.c.l.b16 %v492
  %v855 = vunpack.c.h.b16 %v492
  %v856 = vunpack.c.l.b16 %v493
  %v857 = vunpack.c.h.b16 %v493
  %v858 = vunpack.c.l.b16 %v494
  %v859 = vunpack.c.h.b16 %v494
  %v860 = vunpack.c.l.b16 %v495
  %v861 = vunpack.c.h.b16 %v495
  %v862 = vunpack.c.l.b16 %v496
  %v863 = vunpack.c.h.b16 %v496
  %v864 = vunpack.c.l.b16 %v497
  %v865 = vunpack.c.h.b16 %v497
  %v866 = vunpack.c.l.b16 %v498
  %v867 = vunpack.c.h.b16 %v498
  %v868 = vunpack.c.l.b16 %v499
  %v869 = vunpack.c.h.b16 %v499
  %v870 = vunpack.c.l.b16 %v500
  %v871 = vunpack.c.h.b16 %v500
  %v872 = vunpack.c.l.b16 %v501
  %v873 = vunpack.c.h.b16 %v501
  %v874 = vunpack.c.l.b16 %v502
  %v875 = vunpack.c.h.b16 %v502
  %v876 = vunpack.c.l.b16 %v503
  %v877 = vunpack.c.h.b16 %v503
  %v878 = vunpack.c.l.b16 %v504
  %v879 = vunpack.c.h.b16 %v504
  %v880 = vunpack.c.l.b16 %v505
  %v881 = vunpack.c.h.b16 %v505
  %v882 = vunpack.c.l.b16 %v506
  %v883 = vunpack.c.h.b16 %v506
  %v884 = vunpack.c.l.b16 %v507
  %v885 = vunpack.c.h.b16 %v507
  %v886 = vunpack.c.l.b16 %v508
  %v887 = vunpack.c.h.b16 %v508
  %v888 = vunpack.c.l.b16 %v509
  %v889 = vunpack.c.h.b16 %v509
  %v890 = vunpack.c.l.b16 %v510
  %v891 = vunpack.c.h.b16 %v510
  %v892 = vunpack.c.l.b16 %v511
  %v893 = vunpack.c.h.b16 %v511
  %v894 = vunpack.c.l.b16 %v512
  %v895 = vunpack.c.h.b16 %v512
  %v896 = vunpack.c.l.b16 %v513
  %v897 = vunpack.c.h.b16 %v513
  %v898 = vunpack.c.l.b16 %v514
  %v899 = vunpack.c.h.b16 %v514
  %v900 = vunpack.c.l.b16 %v515
  %v901 = vunpack.c.h.b16 %v515
  %v902 = vunpack.c.l.b16 %v516
  %v903 = vunpack.c.h.b16 %v516
  %v904 = vunpack.c.l.b16 %v517
  %v905 = vunpack.c.h.b16 %v517
  %v906 = vpack.c.b16 %v658, %v650
  %v907 = vpack.c.b16 %v659, %v651
  %v908 = vpack.c.b16 %v660, %v652
  %v909 = vpack.c.b16 %v661, %v653
  %v910 = vpack.c.b16 %v662, %v654
  %v911 = vpack.c.b16 %v663, %v655
  %v912 = vpack.c.b16 %v664, %v656
  %v913 = vpack.c.b16 %v665, %v657
  %v914 = vpack.c.b16 %v674, %v666
  %v915 = vpack.c.b16 %v675, %v667
  %v916 = vpack.c.b16 %v676, %v668
  %v917 = vpack.c.b16 %v677, %v669
  %v918 = vpack.c.b16 %v678, %v670
  %v919 = vpack.c.b16 %v679, %v671
  %v920 = vpack.c.b16 %v680, %v672
  %v921 = vpack.c.b16 %v681, %v673
  %v922 = vpack.c.b16 %v690, %v682
  %v923 = vpack.c.b16 %v691, %v683
  %v924 = vpack.c.b16 %v692, %v684
  %v925 = vpack.c.b16 %v693, %v685
  %v926 = vpack.c.b16 %v694, %v686
  %v927 = vpack.c.b16 %v695, %v687
  %v928 = vpack.c.b16 %v696, %v688
  %v929 = vpack.c.b16 %v697, %v689
  %v930 = vpack.c.b16 %v706, %v698
  %v931 = vpack.c.b16 %v707, %v699
  %v932 = vpack.c.b16 %v708, %v700
  %v933 = vpack.c.b16 %v709, %v701
  %v934 = vpack.c.b16 %v710, %v702
  %v935 = vpack.c.b16 %v711, %v703
  %v936 = vpack.c.b16 %v712, %v704
  %v937 = vpack.c.b16 %v713, %v705
  %v938 = vpack.c.b16 %v722, %v714
  %v939 = vpack.c.b16 %v723, %v715
  %v940 = vpack.c.b16 %v724, %v716
  %v941 = vpack.c.b16 %v725, %v717
  %v942 = vpack.c.b16 %v726, %v718
  %v943 = vpack.c.b16 %v727, %v719
  %v944 = vpack.c.b16 %v728, %v720
  %v945 = vpack.c.b16 %v729, %v721
  %v946 = vpack.c.b16 %v738, %v730
  %v947 = vpack.c.b16 %v739, %v731
  %v948 = vpack.c.b16 %v740, %v732
  %v949 = vpack.c.b16 %v741, %v733
  %v950 = vpack.c.b16 %v742, %v734
  %v951 = vpack.c.b16 %v743, %v735
  %v952 = vpack.c.b16 %v744, %v736
  %v953 = vpack.c.b16 %v745, %v737
  %v954 = vpack.c.b16 %v754, %v746
  %v955 = vpack.c.b16 %v755, %v747
  %v956 = vpack.c.b16 %v756, %v748
  %v957 = vpack.c.b16 %v757, %v749
  %v958 = vpack.c.b16 %v758, %v750
  %v959 = vpack.c.b16 %v759, %v751
  %v960 = vpack.c.b16 %v760, %v752
  %v961 = vpack.c.b16 %v761, %v753
  %v962 = vpack.c.b16 %v770, %v762
  %v963 = vpack.c.b16 %v771, %v763
  %v964 = vpack.c.b16 %v772, %v764
  %v965 = vpack.c.b16 %v773, %v765
  %v966 = vpack.c.b16 %v774, %v766
  %v967 = vpack.c.b16 %v775, %v767
  %v968 = vpack.c.b16 %v776, %v768
  %v969 = vpack.c.b16 %v777, %v769
  %v970 = vpack.c.b16 %v786, %v778
  %v971 = vpack.c.b16 %v787, %v779
  %v972 = vpack.c.b16 %v788, %v780
  %v973 = vpack.c.b16 %v789, %v781
  %v974 = vpack.c.b16 %v790, %v782
  %v975 = vpack.c.b16 %v791, %v783
  %v976 = vpack.c.b16 %v792, %v784
  %v977 = vpack.c.b16 %v793, %v785
  %v978 = vpack.c.b16 %v802, %v794
  %v979 = vpack.c.b16 %v803, %v795
  %v980 = vpack.c.b16 %v804, %v796
  %v981 = vpack.c.b16 %v805, %v797
  %v982 = vpack.c.b16 %v806, %v798
  %v983 = vpack.c.b16 %v807, %v799
  %v984 = vpack.c.b16 %v808, %v800
  %v985 = vpack.c.b16 %v809, %v801
  %v986 = vpack.c.b16 %v818, %v810
  %v987 = vpack.c.b16 %v819, %v811
  %v988 = vpack.c.b16 %v820, %v812
  %v989 = vpack.c.b16 %v821, %v813
  %v990 = vpack.c.b16 %v822, %v814
  %v991 = vpack.c.b16 %v823, %v815
  %v992 = vpack.c.b16 %v824, %v816
  %v993 = vpack.c.b16 %v825, %v817
  %v994 = vpack.c.b16 %v834, %v826
  %v995 = vpack.c.b16 %v835, %v827
  %v996 = vpack.c.b16 %v836, %v828
  %v997 = vpack.c.b16 %v837, %v829
  %v998 = vpack.c.b16 %v838, %v830
  %v999 = vpack.c.b16 %v839, %v831
  %v1000 = vpack.c.b16 %v840, %v832
  %v1001 = vpack.c.b16 %v841, %v833
  %v1002 = vpack.c.b16 %v850, %v842
  %v1003 = vpack.c.b16 %v851, %v843
  %v1004 = vpack.c.b16 %v852, %v844
  %v1005 = vpack.c.b16 %v853, %v845
  %v1006 = vpack.c.b16 %v854, %v846
  %v1007 = vpack.c.b16 %v855, %v847
  %v1008 = vpack.c.b16 %v856, %v848
  %v1009 = vpack.c.b16 %v857, %v849
  %v1010 = vpack.c.b16 %v866, %v858
  %v1011 = vpack.c.b16 %v867, %v859
  %v1012 = vpack.c.b16 %v868, %v860
  %v1013 = vpack.c.b16 %v869, %v861
  %v1014 = vpack.c.b16 %v870, %v862
  %v1015 = vpack.c.b16 %v871, %v863
  %v1016 = vpack.c.b16 %v872, %v864
  %v1017 = vpack.c.b16 %v873, %v865
  %v1018 = vpack.c.b16 %v882, %v874
  %v1019 = vpack.c.b16 %v883, %v875
  %v1020 = vpack.c.b16 %v884, %v876
  %v1021 = vpack.c.b16 %v885, %v877
  %v1022 = vpack.c.b16 %v886, %v878
  %v1023 = vpack.c.b16 %v887, %v879
  %v1024 = vpack.c.b16 %v888, %v880
  %v1025 = vpack.c.b16 %v889, %v881
  %v1026 = vpack.c.b16 %v898, %v890
  %v1027 = vpack.c.b16 %v899, %v891
  %v1028 = vpack.c.b16 %v900, %v892
  %v1029 = vpack.c.b16 %v901, %v893
  %v1030 = vpack.c.b16 %v902, %v894
  %v1031 = vpack.c.b16 %v903, %v895
  %v1032 = vpack.c.b16 %v904, %v896
  %v1033 = vpack.c.b16 %v905, %v897
  %1162 = vmatpush.bf16.msra.mxu0 %v962
  %1163 = vmatpush.bf16.msra.mxu0 %v954
  %1164 = vmatpush.bf16.msra.mxu0 %v946
  %1165 = vmatpush.bf16.msra.mxu0 %v938
  %1166 = vmatpush.bf16.msra.mxu0 %v930
  %1167 = vmatpush.bf16.msra.mxu0 %v922
  %1168 = vmatpush.bf16.msra.mxu0 %v914
  %1169 = vmatpush.bf16.msra.mxu0 %v906
  %1170 = vmatmul.bf16.gmra.mxu0 %v520
  %v1171 = vpop.f32.mrf.mxu0
  %v1172 = vadd.f32 %v157, %v1171
  %v1173 = vpop.f32.mrf.mxu0
  %1174 = vdwg.mxu0
  %1175 = vmatpush.bf16.msra.mxu0 %v1026
  %1176 = vmatpush.bf16.msra.mxu0 %v1018
  %1177 = vmatpush.bf16.msra.mxu0 %v1010
  %1178 = vmatpush.bf16.msra.mxu0 %v1002
  %1179 = vmatpush.bf16.msra.mxu0 %v994
  %1180 = vmatpush.bf16.msra.mxu0 %v986
  %1181 = vmatpush.bf16.msra.mxu0 %v978
  %1182 = vmatpush.bf16.msra.mxu0 %v970
  %1183 = vmatmul.bf16.gmra.mxu0 %v521
  %v1184 = vpop.f32.mrf.mxu0
  %v1185 = vadd.f32 %v1172, %v1184
  %v1186 = vpop.f32.mrf.mxu0
  %1187 = vdwg.mxu0
  %1188 = vmatpush.bf16.msra.mxu0 %v963
  %1189 = vmatpush.bf16.msra.mxu0 %v955
  %1190 = vmatpush.bf16.msra.mxu0 %v947
  %1191 = vmatpush.bf16.msra.mxu0 %v939
  %1192 = vmatpush.bf16.msra.mxu0 %v931
  %1193 = vmatpush.bf16.msra.mxu0 %v923
  %1194 = vmatpush.bf16.msra.mxu0 %v915
  %1195 = vmatpush.bf16.msra.mxu0 %v907
  %1196 = vmatmul.bf16.gmra.mxu0 %v520
  %v1197 = vpop.f32.mrf.mxu0
  %v1198 = vadd.f32 %v185, %v1197
  %v1199 = vpop.f32.mrf.mxu0
  %1200 = vdwg.mxu0
  %1201 = vmatpush.bf16.msra.mxu0 %v1027
  %1202 = vmatpush.bf16.msra.mxu0 %v1019
  %1203 = vmatpush.bf16.msra.mxu0 %v1011
  %1204 = vmatpush.bf16.msra.mxu0 %v1003
  %1205 = vmatpush.bf16.msra.mxu0 %v995
  %1206 = vmatpush.bf16.msra.mxu0 %v987
  %1207 = vmatpush.bf16.msra.mxu0 %v979
  %1208 = vmatpush.bf16.msra.mxu0 %v971
  %1209 = vmatmul.bf16.gmra.mxu0 %v521
  %v1210 = vpop.f32.mrf.mxu0
  %v1211 = vadd.f32 %v1198, %v1210
  %v1212 = vpop.f32.mrf.mxu0
  %1213 = vdwg.mxu0
  %1214 = vmatpush.bf16.msra.mxu0 %v964
  %1215 = vmatpush.bf16.msra.mxu0 %v956
  %1216 = vmatpush.bf16.msra.mxu0 %v948
  %1217 = vmatpush.bf16.msra.mxu0 %v940
  %1218 = vmatpush.bf16.msra.mxu0 %v932
  %1219 = vmatpush.bf16.msra.mxu0 %v924
  %1220 = vmatpush.bf16.msra.mxu0 %v916
  %1221 = vmatpush.bf16.msra.mxu0 %v908
  %1222 = vmatmul.bf16.gmra.mxu0 %v520
  %v1223 = vpop.f32.mrf.mxu0
  %v1224 = vadd.f32 %v214, %v1223
  %v1225 = vpop.f32.mrf.mxu0
  %1226 = vdwg.mxu0
  %1227 = vmatpush.bf16.msra.mxu0 %v1028
  %1228 = vmatpush.bf16.msra.mxu0 %v1020
  %1229 = vmatpush.bf16.msra.mxu0 %v1012
  %1230 = vmatpush.bf16.msra.mxu0 %v1004
  %1231 = vmatpush.bf16.msra.mxu0 %v996
  %1232 = vmatpush.bf16.msra.mxu0 %v988
  %1233 = vmatpush.bf16.msra.mxu0 %v980
  %1234 = vmatpush.bf16.msra.mxu0 %v972
  %1235 = vmatmul.bf16.gmra.mxu0 %v521
  %v1236 = vpop.f32.mrf.mxu0
  %v1237 = vadd.f32 %v1224, %v1236
  %v1238 = vpop.f32.mrf.mxu0
  %1239 = vdwg.mxu0
  %1240 = vmatpush.bf16.msra.mxu0 %v965
  %1241 = vmatpush.bf16.msra.mxu0 %v957
  %1242 = vmatpush.bf16.msra.mxu0 %v949
  %1243 = vmatpush.bf16.msra.mxu0 %v941
  %1244 = vmatpush.bf16.msra.mxu0 %v933
  %1245 = vmatpush.bf16.msra.mxu0 %v925
  %1246 = vmatpush.bf16.msra.mxu0 %v917
  %1247 = vmatpush.bf16.msra.mxu0 %v909
  %1248 = vmatmul.bf16.gmra.mxu0 %v520
  %v1249 = vpop.f32.mrf.mxu0
  %v1250 = vadd.f32 %v242, %v1249
  %v1251 = vpop.f32.mrf.mxu0
  %1252 = vdwg.mxu0
  %1253 = vmatpush.bf16.msra.mxu0 %v1029
  %1254 = vmatpush.bf16.msra.mxu0 %v1021
  %1255 = vmatpush.bf16.msra.mxu0 %v1013
  %1256 = vmatpush.bf16.msra.mxu0 %v1005
  %1257 = vmatpush.bf16.msra.mxu0 %v997
  %1258 = vmatpush.bf16.msra.mxu0 %v989
  %1259 = vmatpush.bf16.msra.mxu0 %v981
  %1260 = vmatpush.bf16.msra.mxu0 %v973
  %1261 = vmatmul.bf16.gmra.mxu0 %v521
  %v1262 = vpop.f32.mrf.mxu0
  %v1263 = vadd.f32 %v1250, %v1262
  %v1264 = vpop.f32.mrf.mxu0
  %1265 = vdwg.mxu0
  %1266 = vmatpush.bf16.msra.mxu0 %v966
  %1267 = vmatpush.bf16.msra.mxu0 %v958
  %1268 = vmatpush.bf16.msra.mxu0 %v950
  %1269 = vmatpush.bf16.msra.mxu0 %v942
  %1270 = vmatpush.bf16.msra.mxu0 %v934
  %1271 = vmatpush.bf16.msra.mxu0 %v926
  %1272 = vmatpush.bf16.msra.mxu0 %v918
  %1273 = vmatpush.bf16.msra.mxu0 %v910
  %1274 = vmatmul.bf16.gmra.mxu0 %v520
  %v1275 = vpop.f32.mrf.mxu0
  %v1276 = vadd.f32 %v270, %v1275
  %v1277 = vpop.f32.mrf.mxu0
  %1278 = vdwg.mxu0
  %1279 = vmatpush.bf16.msra.mxu0 %v1030
  %1280 = vmatpush.bf16.msra.mxu0 %v1022
  %1281 = vmatpush.bf16.msra.mxu0 %v1014
  %1282 = vmatpush.bf16.msra.mxu0 %v1006
  %1283 = vmatpush.bf16.msra.mxu0 %v998
  %1284 = vmatpush.bf16.msra.mxu0 %v990
  %1285 = vmatpush.bf16.msra.mxu0 %v982
  %1286 = vmatpush.bf16.msra.mxu0 %v974
  %1287 = vmatmul.bf16.gmra.mxu0 %v521
  %v1288 = vpop.f32.mrf.mxu0
  %v1289 = vadd.f32 %v1276, %v1288
  %v1290 = vpop.f32.mrf.mxu0
  %1291 = vdwg.mxu0
  %1292 = vmatpush.bf16.msra.mxu0 %v967
  %1293 = vmatpush.bf16.msra.mxu0 %v959
  %1294 = vmatpush.bf16.msra.mxu0 %v951
  %1295 = vmatpush.bf16.msra.mxu0 %v943
  %1296 = vmatpush.bf16.msra.mxu0 %v935
  %1297 = vmatpush.bf16.msra.mxu0 %v927
  %1298 = vmatpush.bf16.msra.mxu0 %v919
  %1299 = vmatpush.bf16.msra.mxu0 %v911
  %1300 = vmatmul.bf16.gmra.mxu0 %v520
  %v1301 = vpop.f32.mrf.mxu0
  %v1302 = vadd.f32 %v298, %v1301
  %v1303 = vpop.f32.mrf.mxu0
  %1304 = vdwg.mxu0
  %1305 = vmatpush.bf16.msra.mxu0 %v1031
  %1306 = vmatpush.bf16.msra.mxu0 %v1023
  %1307 = vmatpush.bf16.msra.mxu0 %v1015
  %1308 = vmatpush.bf16.msra.mxu0 %v1007
  %1309 = vmatpush.bf16.msra.mxu0 %v999
  %1310 = vmatpush.bf16.msra.mxu0 %v991
  %1311 = vmatpush.bf16.msra.mxu0 %v983
  %1312 = vmatpush.bf16.msra.mxu0 %v975
  %1313 = vmatmul.bf16.gmra.mxu0 %v521
  %v1314 = vpop.f32.mrf.mxu0
  %v1315 = vadd.f32 %v1302, %v1314
  %v1316 = vpop.f32.mrf.mxu0
  %1317 = vdwg.mxu0
  %1318 = vmatpush.bf16.msra.mxu0 %v968
  %1319 = vmatpush.bf16.msra.mxu0 %v960
  %1320 = vmatpush.bf16.msra.mxu0 %v952
  %1321 = vmatpush.bf16.msra.mxu0 %v944
  %1322 = vmatpush.bf16.msra.mxu0 %v936
  %1323 = vmatpush.bf16.msra.mxu0 %v928
  %1324 = vmatpush.bf16.msra.mxu0 %v920
  %1325 = vmatpush.bf16.msra.mxu0 %v912
  %1326 = vmatmul.bf16.gmra.mxu0 %v520
  %v1327 = vpop.f32.mrf.mxu0
  %v1328 = vadd.f32 %v327, %v1327
  %v1329 = vpop.f32.mrf.mxu0
  %1330 = vdwg.mxu0
  %1331 = vmatpush.bf16.msra.mxu0 %v1032
  %1332 = vmatpush.bf16.msra.mxu0 %v1024
  %1333 = vmatpush.bf16.msra.mxu0 %v1016
  %1334 = vmatpush.bf16.msra.mxu0 %v1008
  %1335 = vmatpush.bf16.msra.mxu0 %v1000
  %1336 = vmatpush.bf16.msra.mxu0 %v992
  %1337 = vmatpush.bf16.msra.mxu0 %v984
  %1338 = vmatpush.bf16.msra.mxu0 %v976
  %1339 = vmatmul.bf16.gmra.mxu0 %v521
  %v1340 = vpop.f32.mrf.mxu0
  %v1341 = vadd.f32 %v1328, %v1340
  %v1342 = vpop.f32.mrf.mxu0
  %1343 = vdwg.mxu0
  %1344 = vmatpush.bf16.msra.mxu0 %v969
  %1345 = vmatpush.bf16.msra.mxu0 %v961
  %1346 = vmatpush.bf16.msra.mxu0 %v953
  %1347 = vmatpush.bf16.msra.mxu0 %v945
  %1348 = vmatpush.bf16.msra.mxu0 %v937
  %1349 = vmatpush.bf16.msra.mxu0 %v929
  %1350 = vmatpush.bf16.msra.mxu0 %v921
  %1351 = vmatpush.bf16.msra.mxu0 %v913
  %1352 = vmatmul.bf16.gmra.mxu0 %v520
  %v1353 = vpop.f32.mrf.mxu0
  %v1354 = vadd.f32 %v355, %v1353
  %v1355 = vpop.f32.mrf.mxu0
  %1356 = vdwg.mxu0
  %1357 = vmatpush.bf16.msra.mxu0 %v1033
  %1358 = vmatpush.bf16.msra.mxu0 %v1025
  %1359 = vmatpush.bf16.msra.mxu0 %v1017
  %1360 = vmatpush.bf16.msra.mxu0 %v1009
  %1361 = vmatpush.bf16.msra.mxu0 %v1001
  %1362 = vmatpush.bf16.msra.mxu0 %v993
  %1363 = vmatpush.bf16.msra.mxu0 %v985
  %1364 = vmatpush.bf16.msra.mxu0 %v977
  %1365 = vmatmul.bf16.gmra.mxu0 %v521
  %v1366 = vpop.f32.mrf.mxu0
  %v1367 = vadd.f32 %v1354, %v1366
  %v1368 = vpop.f32.mrf.mxu0
  %1369 = vdwg.mxu0
  %v1370 = vmul.f32 %v1185, 0.5
  %v1371 = vmul.f32 %v1211, 0.5
  %v1372 = vmul.f32 %v1237, 0.5
  %v1373 = vmul.f32 %v1263, 0.5
  %v1374 = vmul.f32 %v1289, 0.5
  %v1375 = vmul.f32 %v1315, 0.5
  %v1376 = vtanh.pop %v1370
  %v1377 = vtanh.pop %v1371
  %v1378 = vtanh.pop %v1372
  %v1379 = vtanh.pop %v1373
  %v1380 = vtanh.pop %v1374
  %v1381 = vtanh.pop %v1375
  %v1382 = vmul.f32 %v1376, 0.5
  %v1383 = vmul.f32 %v1377, 0.5
  %v1384 = vmul.f32 %v1378, 0.5
  %v1385 = vmul.f32 %v1379, 0.5
  %v1386 = vmul.f32 %v1380, 0.5
  %v1387 = vmul.f32 %v1381, 0.5
  %v1388 = vadd.f32 %v1382, 0.5
  %v1389 = vadd.f32 %v1383, 0.5
  %v1390 = vadd.f32 %v1384, 0.5
  %v1391 = vadd.f32 %v1385, 0.5
  %v1392 = vadd.f32 %v1386, 0.5
  %v1393 = vadd.f32 %v1387, 0.5
  %v1394 = vtanh.pop %v1341
  %v1395 = vtanh.pop %v1367
  %v1396 = vmul.f32 %v1392, 0.0
  %v1397 = vmul.f32 %v1391, %v1395
  %v1398 = vadd.f32 %v1396, %v1397
  %v1399 = vtanh.pop %v1398
  %v1400 = vmul.f32 %v1393, %v1399
  %1401 = vst [vmem:[#allocation3 + $0x8] sm:$0xff] %v1400
  %v1402 = vmul.f32 %v1389, %v377
  %v1403 = vmul.f32 %v1388, %v1394
  %v1404 = vadd.f32 %v1402, %v1403
  %v1405 = vtanh.pop %v1404
  %v1406 = vmul.f32 %v1390, %v1405
  %1407 = vst [vmem:[#allocation3] sm:$0xff] %v1406
  %v1408 = vld [vmem:[#allocation3] sm:$0xff]
  %v1409 = vld [vmem:[#allocation3 + $0x8] sm:$0xff]
  %v1410 = vpack.c.bf16 %v1408, %v1408
  %v1411 = vpack.c.bf16 %v1409, %v1409
  %1412 = vmatpush.bf16.msra.mxu0 %v962
  %1413 = vmatpush.bf16.msra.mxu0 %v954
  %1414 = vmatpush.bf16.msra.mxu0 %v946
  %1415 = vmatpush.bf16.msra.mxu0 %v938
  %1416 = vmatpush.bf16.msra.mxu0 %v930
  %1417 = vmatpush.bf16.msra.mxu0 %v922
  %1418 = vmatpush.bf16.msra.mxu0 %v914
  %1419 = vmatpush.bf16.msra.mxu0 %v906
  %1420 = vmatmul.bf16.gmra.mxu0 %v1410
  %v1421 = vpop.f32.mrf.mxu0
  %v1422 = vadd.f32 %v160, %v1421
  %v1423 = vpop.f32.mrf.mxu0
  %1424 = vdwg.mxu0
  %1425 = vmatpush.bf16.msra.mxu0 %v1026
  %1426 = vmatpush.bf16.msra.mxu0 %v1018
  %1427 = vmatpush.bf16.msra.mxu0 %v1010
  %1428 = vmatpush.bf16.msra.mxu0 %v1002
  %1429 = vmatpush.bf16.msra.mxu0 %v994
  %1430 = vmatpush.bf16.msra.mxu0 %v986
  %1431 = vmatpush.bf16.msra.mxu0 %v978
  %1432 = vmatpush.bf16.msra.mxu0 %v970
  %1433 = vmatmul.bf16.gmra.mxu0 %v1411
  %v1434 = vpop.f32.mrf.mxu0
  %v1435 = vadd.f32 %v1422, %v1434
  %v1436 = vpop.f32.mrf.mxu0
  %1437 = vdwg.mxu0
  %1438 = vmatpush.bf16.msra.mxu0 %v963
  %1439 = vmatpush.bf16.msra.mxu0 %v955
  %1440 = vmatpush.bf16.msra.mxu0 %v947
  %1441 = vmatpush.bf16.msra.mxu0 %v939
  %1442 = vmatpush.bf16.msra.mxu0 %v931
  %1443 = vmatpush.bf16.msra.mxu0 %v923
  %1444 = vmatpush.bf16.msra.mxu0 %v915
  %1445 = vmatpush.bf16.msra.mxu0 %v907
  %1446 = vmatmul.bf16.gmra.mxu0 %v1410
  %v1447 = vpop.f32.mrf.mxu0
  %v1448 = vadd.f32 %v188, %v1447
  %v1449 = vpop.f32.mrf.mxu0
  %1450 = vdwg.mxu0
  %1451 = vmatpush.bf16.msra.mxu0 %v1027
  %1452 = vmatpush.bf16.msra.mxu0 %v1019
  %1453 = vmatpush.bf16.msra.mxu0 %v1011
  %1454 = vmatpush.bf16.msra.mxu0 %v1003
  %1455 = vmatpush.bf16.msra.mxu0 %v995
  %1456 = vmatpush.bf16.msra.mxu0 %v987
  %1457 = vmatpush.bf16.msra.mxu0 %v979
  %1458 = vmatpush.bf16.msra.mxu0 %v971
  %1459 = vmatmul.bf16.gmra.mxu0 %v1411
  %v1460 = vpop.f32.mrf.mxu0
  %v1461 = vadd.f32 %v1448, %v1460
  %v1462 = vpop.f32.mrf.mxu0
  %1463 = vdwg.mxu0
  %1464 = vmatpush.bf16.msra.mxu0 %v964
  %1465 = vmatpush.bf16.msra.mxu0 %v956
  %1466 = vmatpush.bf16.msra.mxu0 %v948
  %1467 = vmatpush.bf16.msra.mxu0 %v940
  %1468 = vmatpush.bf16.msra.mxu0 %v932
  %1469 = vmatpush.bf16.msra.mxu0 %v924
  %1470 = vmatpush.bf16.msra.mxu0 %v916
  %1471 = vmatpush.bf16.msra.mxu0 %v908
  %1472 = vmatmul.bf16.gmra.mxu0 %v1410
  %v1473 = vpop.f32.mrf.mxu0
  %v1474 = vadd.f32 %v217, %v1473
  %v1475 = vpop.f32.mrf.mxu0
  %1476 = vdwg.mxu0
  %1477 = vmatpush.bf16.msra.mxu0 %v1028
  %1478 = vmatpush.bf16.msra.mxu0 %v1020
  %1479 = vmatpush.bf16.msra.mxu0 %v1012
  %1480 = vmatpush.bf16.msra.mxu0 %v1004
  %1481 = vmatpush.bf16.msra.mxu0 %v996
  %1482 = vmatpush.bf16.msra.mxu0 %v988
  %1483 = vmatpush.bf16.msra.mxu0 %v980
  %1484 = vmatpush.bf16.msra.mxu0 %v972
  %1485 = vmatmul.bf16.gmra.mxu0 %v1411
  %v1486 = vpop.f32.mrf.mxu0
  %v1487 = vadd.f32 %v1474, %v1486
  %v1488 = vpop.f32.mrf.mxu0
  %1489 = vdwg.mxu0
  %1490 = vmatpush.bf16.msra.mxu0 %v965
  %1491 = vmatpush.bf16.msra.mxu0 %v957
  %1492 = vmatpush.bf16.msra.mxu0 %v949
  %1493 = vmatpush.bf16.msra.mxu0 %v941
  %1494 = vmatpush.bf16.msra.mxu0 %v933
  %1495 = vmatpush.bf16.msra.mxu0 %v925
  %1496 = vmatpush.bf16.msra.mxu0 %v917
  %1497 = vmatpush.bf16.msra.mxu0 %v909
  %1498 = vmatmul.bf16.gmra.mxu0 %v1410
  %v1499 = vpop.f32.mrf.mxu0
  %v1500 = vadd.f32 %v245, %v1499
  %v1501 = vpop.f32.mrf.mxu0
  %1502 = vdwg.mxu0
  %1503 = vmatpush.bf16.msra.mxu0 %v1029
  %1504 = vmatpush.bf16.msra.mxu0 %v1021
  %1505 = vmatpush.bf16.msra.mxu0 %v1013
  %1506 = vmatpush.bf16.msra.mxu0 %v1005
  %1507 = vmatpush.bf16.msra.mxu0 %v997
  %1508 = vmatpush.bf16.msra.mxu0 %v989
  %1509 = vmatpush.bf16.msra.mxu0 %v981
  %1510 = vmatpush.bf16.msra.mxu0 %v973
  %1511 = vmatmul.bf16.gmra.mxu0 %v1411
  %v1512 = vpop.f32.mrf.mxu0
  %v1513 = vadd.f32 %v1500, %v1512
  %v1514 = vpop.f32.mrf.mxu0
  %1515 = vdwg.mxu0
  %1516 = vmatpush.bf16.msra.mxu0 %v966
  %1517 = vmatpush.bf16.msra.mxu0 %v958
  %1518 = vmatpush.bf16.msra.mxu0 %v950
  %1519 = vmatpush.bf16.msra.mxu0 %v942
  %1520 = vmatpush.bf16.msra.mxu0 %v934
  %1521 = vmatpush.bf16.msra.mxu0 %v926
  %1522 = vmatpush.bf16.msra.mxu0 %v918
  %1523 = vmatpush.bf16.msra.mxu0 %v910
  %1524 = vmatmul.bf16.gmra.mxu0 %v1410
  %v1525 = vpop.f32.mrf.mxu0
  %v1526 = vadd.f32 %v273, %v1525
  %v1527 = vpop.f32.mrf.mxu0
  %1528 = vdwg.mxu0
  %1529 = vmatpush.bf16.msra.mxu0 %v1030
  %1530 = vmatpush.bf16.msra.mxu0 %v1022
  %1531 = vmatpush.bf16.msra.mxu0 %v1014
  %1532 = vmatpush.bf16.msra.mxu0 %v1006
  %1533 = vmatpush.bf16.msra.mxu0 %v998
  %1534 = vmatpush.bf16.msra.mxu0 %v990
  %1535 = vmatpush.bf16.msra.mxu0 %v982
  %1536 = vmatpush.bf16.msra.mxu0 %v974
  %1537 = vmatmul.bf16.gmra.mxu0 %v1411
  %v1538 = vpop.f32.mrf.mxu0
  %v1539 = vadd.f32 %v1526, %v1538
  %v1540 = vpop.f32.mrf.mxu0
  %1541 = vdwg.mxu0
  %1542 = vmatpush.bf16.msra.mxu0 %v967
  %1543 = vmatpush.bf16.msra.mxu0 %v959
  %1544 = vmatpush.bf16.msra.mxu0 %v951
  %1545 = vmatpush.bf16.msra.mxu0 %v943
  %1546 = vmatpush.bf16.msra.mxu0 %v935
  %1547 = vmatpush.bf16.msra.mxu0 %v927
  %1548 = vmatpush.bf16.msra.mxu0 %v919
  %1549 = vmatpush.bf16.msra.mxu0 %v911
  %1550 = vmatmul.bf16.gmra.mxu0 %v1410
  %v1551 = vpop.f32.mrf.mxu0
  %v1552 = vadd.f32 %v301, %v1551
  %v1553 = vpop.f32.mrf.mxu0
  %1554 = vdwg.mxu0
  %1555 = vmatpush.bf16.msra.mxu0 %v1031
  %1556 = vmatpush.bf16.msra.mxu0 %v1023
  %1557 = vmatpush.bf16.msra.mxu0 %v1015
  %1558 = vmatpush.bf16.msra.mxu0 %v1007
  %1559 = vmatpush.bf16.msra.mxu0 %v999
  %1560 = vmatpush.bf16.msra.mxu0 %v991
  %1561 = vmatpush.bf16.msra.mxu0 %v983
  %1562 = vmatpush.bf16.msra.mxu0 %v975
  %1563 = vmatmul.bf16.gmra.mxu0 %v1411
  %v1564 = vpop.f32.mrf.mxu0
  %v1565 = vadd.f32 %v1552, %v1564
  %v1566 = vpop.f32.mrf.mxu0
  %1567 = vdwg.mxu0
  %1568 = vmatpush.bf16.msra.mxu0 %v968
  %1569 = vmatpush.bf16.msra.mxu0 %v960
  %1570 = vmatpush.bf16.msra.mxu0 %v952
  %1571 = vmatpush.bf16.msra.mxu0 %v944
  %1572 = vmatpush.bf16.msra.mxu0 %v936
  %1573 = vmatpush.bf16.msra.mxu0 %v928
  %1574 = vmatpush.bf16.msra.mxu0 %v920
  %1575 = vmatpush.bf16.msra.mxu0 %v912
  %1576 = vmatmul.bf16.gmra.mxu0 %v1410
  %v1577 = vpop.f32.mrf.mxu0
  %v1578 = vadd.f32 %v330, %v1577
  %v1579 = vpop.f32.mrf.mxu0
  %1580 = vdwg.mxu0
  %1581 = vmatpush.bf16.msra.mxu0 %v1032
  %1582 = vmatpush.bf16.msra.mxu0 %v1024
  %1583 = vmatpush.bf16.msra.mxu0 %v1016
  %1584 = vmatpush.bf16.msra.mxu0 %v1008
  %1585 = vmatpush.bf16.msra.mxu0 %v1000
  %1586 = vmatpush.bf16.msra.mxu0 %v992
  %1587 = vmatpush.bf16.msra.mxu0 %v984
  %1588 = vmatpush.bf16.msra.mxu0 %v976
  %1589 = vmatmul.bf16.gmra.mxu0 %v1411
  %v1590 = vpop.f32.mrf.mxu0
  %v1591 = vadd.f32 %v1578, %v1590
  %v1592 = vpop.f32.mrf.mxu0
  %1593 = vdwg.mxu0
  %1594 = vmatpush.bf16.msra.mxu0 %v969
  %1595 = vmatpush.bf16.msra.mxu0 %v961
  %1596 = vmatpush.bf16.msra.mxu0 %v953
  %1597 = vmatpush.bf16.msra.mxu0 %v945
  %1598 = vmatpush.bf16.msra.mxu0 %v937
  %1599 = vmatpush.bf16.msra.mxu0 %v929
  %1600 = vmatpush.bf16.msra.mxu0 %v921
  %1601 = vmatpush.bf16.msra.mxu0 %v913
  %1602 = vmatmul.bf16.gmra.mxu0 %v1410
  %v1603 = vpop.f32.mrf.mxu0
  %v1604 = vadd.f32 %v358, %v1603
  %v1605 = vpop.f32.mrf.mxu0
  %1606 = vdwg.mxu0
  %1607 = vmatpush.bf16.msra.mxu0 %v1033
  %1608 = vmatpush.bf16.msra.mxu0 %v1025
  %1609 = vmatpush.bf16.msra.mxu0 %v1017
  %1610 = vmatpush.bf16.msra.mxu0 %v1009
  %1611 = vmatpush.bf16.msra.mxu0 %v1001
  %1612 = vmatpush.bf16.msra.mxu0 %v993
  %1613 = vmatpush.bf16.msra.mxu0 %v985
  %1614 = vmatpush.bf16.msra.mxu0 %v977
  %1615 = vmatmul.bf16.gmra.mxu0 %v1411
  %v1616 = vpop.f32.mrf.mxu0
  %v1617 = vadd.f32 %v1604, %v1616
  %v1618 = vpop.f32.mrf.mxu0
  %1619 = vdwg.mxu0
  %v1620 = vmul.f32 %v1435, 0.5
  %v1621 = vmul.f32 %v1461, 0.5
  %v1622 = vmul.f32 %v1487, 0.5
  %v1623 = vmul.f32 %v1513, 0.5
  %v1624 = vmul.f32 %v1539, 0.5
  %v1625 = vmul.f32 %v1565, 0.5
  %v1626 = vtanh.pop %v1620
  %v1627 = vtanh.pop %v1621
  %v1628 = vtanh.pop %v1622
  %v1629 = vtanh.pop %v1623
  %v1630 = vtanh.pop %v1624
  %v1631 = vtanh.pop %v1625
  %v1632 = vmul.f32 %v1626, 0.5
  %v1633 = vmul.f32 %v1627, 0.5
  %v1634 = vmul.f32 %v1628, 0.5
  %v1635 = vmul.f32 %v1629, 0.5
  %v1636 = vmul.f32 %v1630, 0.5
  %v1637 = vmul.f32 %v1631, 0.5
  %v1638 = vadd.f32 %v1632, 0.5
  %v1639 = vadd.f32 %v1633, 0.5
  %v1640 = vadd.f32 %v1634, 0.5
  %v1641 = vadd.f32 %v1635, 0.5
  %v1642 = vadd.f32 %v1636, 0.5
  %v1643 = vadd.f32 %v1637, 0.5
  %v1644 = vtanh.pop %v1591
  %v1645 = vtanh.pop %v1617
  %v1646 = vmul.f32 %v1642, %v1398
  %v1647 = vmul.f32 %v1641, %v1645
  %v1648 = vadd.f32 %v1646, %v1647
  %v1649 = vtanh.pop %v1648
  %v1650 = vmul.f32 %v1643, %v1649
  %1651 = vst [vmem:[#allocation3 + $0x8] sm:$0xff] %v1650
  %v1652 = vmul.f32 %v1639, %v1404
  %v1653 = vmul.f32 %v1638, %v1644
  %v1654 = vadd.f32 %v1652, %v1653
  %v1655 = vtanh.pop %v1654
  %v1656 = vmul.f32 %v1640, %v1655
  %1657 = vst [vmem:[#allocation3] sm:$0xff] %v1656
  %v1658 = vld [vmem:[#allocation3] sm:$0xff]
  %v1659 = vld [vmem:[#allocation3 + $0x8] sm:$0xff]
  %v1660 = vpack.c.bf16 %v1658, %v1658
  %v1661 = vpack.c.bf16 %v1659, %v1659
  %1662 = vmatpush.bf16.msra.mxu0 %v962
  %1663 = vmatpush.bf16.msra.mxu0 %v954
  %1664 = vmatpush.bf16.msra.mxu0 %v946
  %1665 = vmatpush.bf16.msra.mxu0 %v938
  %1666 = vmatpush.bf16.msra.mxu0 %v930
  %1667 = vmatpush.bf16.msra.mxu0 %v922
  %1668 = vmatpush.bf16.msra.mxu0 %v914
  %1669 = vmatpush.bf16.msra.mxu0 %v906
  %1670 = vmatmul.bf16.gmra.mxu0 %v1660
  %v1671 = vpop.f32.mrf.mxu0
  %v1672 = vadd.f32 %v162, %v1671
  %v1673 = vpop.f32.mrf.mxu0
  %1674 = vdwg.mxu0
  %1675 = vmatpush.bf16.msra.mxu0 %v1026
  %1676 = vmatpush.bf16.msra.mxu0 %v1018
  %1677 = vmatpush.bf16.msra.mxu0 %v1010
  %1678 = vmatpush.bf16.msra.mxu0 %v1002
  %1679 = vmatpush.bf16.msra.mxu0 %v994
  %1680 = vmatpush.bf16.msra.mxu0 %v986
  %1681 = vmatpush.bf16.msra.mxu0 %v978
  %1682 = vmatpush.bf16.msra.mxu0 %v970
  %1683 = vmatmul.bf16.gmra.mxu0 %v1661
  %v1684 = vpop.f32.mrf.mxu0
  %v1685 = vadd.f32 %v1672, %v1684
  %v1686 = vpop.f32.mrf.mxu0
  %1687 = vdwg.mxu0
  %1688 = vmatpush.bf16.msra.mxu0 %v963
  %1689 = vmatpush.bf16.msra.mxu0 %v955
  %1690 = vmatpush.bf16.msra.mxu0 %v947
  %1691 = vmatpush.bf16.msra.mxu0 %v939
  %1692 = vmatpush.bf16.msra.mxu0 %v931
  %1693 = vmatpush.bf16.msra.mxu0 %v923
  %1694 = vmatpush.bf16.msra.mxu0 %v915
  %1695 = vmatpush.bf16.msra.mxu0 %v907
  %1696 = vmatmul.bf16.gmra.mxu0 %v1660
  %v1697 = vpop.f32.mrf.mxu0
  %v1698 = vadd.f32 %v190, %v1697
  %v1699 = vpop.f32.mrf.mxu0
  %1700 = vdwg.mxu0
  %1701 = vmatpush.bf16.msra.mxu0 %v1027
  %1702 = vmatpush.bf16.msra.mxu0 %v1019
  %1703 = vmatpush.bf16.msra.mxu0 %v1011
  %1704 = vmatpush.bf16.msra.mxu0 %v1003
  %1705 = vmatpush.bf16.msra.mxu0 %v995
  %1706 = vmatpush.bf16.msra.mxu0 %v987
  %1707 = vmatpush.bf16.msra.mxu0 %v979
  %1708 = vmatpush.bf16.msra.mxu0 %v971
  %1709 = vmatmul.bf16.gmra.mxu0 %v1661
  %v1710 = vpop.f32.mrf.mxu0
  %v1711 = vadd.f32 %v1698, %v1710
  %v1712 = vpop.f32.mrf.mxu0
  %1713 = vdwg.mxu0
  %1714 = vmatpush.bf16.msra.mxu0 %v964
  %1715 = vmatpush.bf16.msra.mxu0 %v956
  %1716 = vmatpush.bf16.msra.mxu0 %v948
  %1717 = vmatpush.bf16.msra.mxu0 %v940
  %1718 = vmatpush.bf16.msra.mxu0 %v932
  %1719 = vmatpush.bf16.msra.mxu0 %v924
  %1720 = vmatpush.bf16.msra.mxu0 %v916
  %1721 = vmatpush.bf16.msra.mxu0 %v908
  %1722 = vmatmul.bf16.gmra.mxu0 %v1660
  %v1723 = vpop.f32.mrf.mxu0
  %v1724 = vadd.f32 %v219, %v1723
  %v1725 = vpop.f32.mrf.mxu0
  %1726 = vdwg.mxu0
  %1727 = vmatpush.bf16.msra.mxu0 %v1028
  %1728 = vmatpush.bf16.msra.mxu0 %v1020
  %1729 = vmatpush.bf16.msra.mxu0 %v1012
  %1730 = vmatpush.bf16.msra.mxu0 %v1004
  %1731 = vmatpush.bf16.msra.mxu0 %v996
  %1732 = vmatpush.bf16.msra.mxu0 %v988
  %1733 = vmatpush.bf16.msra.mxu0 %v980
  %1734 = vmatpush.bf16.msra.mxu0 %v972
  %1735 = vmatmul.bf16.gmra.mxu0 %v1661
  %v1736 = vpop.f32.mrf.mxu0
  %v1737 = vadd.f32 %v1724, %v1736
  %v1738 = vpop.f32.mrf.mxu0
  %1739 = vdwg.mxu0
  %1740 = vmatpush.bf16.msra.mxu0 %v965
  %1741 = vmatpush.bf16.msra.mxu0 %v957
  %1742 = vmatpush.bf16.msra.mxu0 %v949
  %1743 = vmatpush.bf16.msra.mxu0 %v941
  %1744 = vmatpush.bf16.msra.mxu0 %v933
  %1745 = vmatpush.bf16.msra.mxu0 %v925
  %1746 = vmatpush.bf16.msra.mxu0 %v917
  %1747 = vmatpush.bf16.msra.mxu0 %v909
  %1748 = vmatmul.bf16.gmra.mxu0 %v1660
  %v1749 = vpop.f32.mrf.mxu0
  %v1750 = vadd.f32 %v247, %v1749
  %v1751 = vpop.f32.mrf.mxu0
  %1752 = vdwg.mxu0
  %1753 = vmatpush.bf16.msra.mxu0 %v1029
  %1754 = vmatpush.bf16.msra.mxu0 %v1021
  %1755 = vmatpush.bf16.msra.mxu0 %v1013
  %1756 = vmatpush.bf16.msra.mxu0 %v1005
  %1757 = vmatpush.bf16.msra.mxu0 %v997
  %1758 = vmatpush.bf16.msra.mxu0 %v989
  %1759 = vmatpush.bf16.msra.mxu0 %v981
  %1760 = vmatpush.bf16.msra.mxu0 %v973
  %1761 = vmatmul.bf16.gmra.mxu0 %v1661
  %v1762 = vpop.f32.mrf.mxu0
  %v1763 = vadd.f32 %v1750, %v1762
  %v1764 = vpop.f32.mrf.mxu0
  %1765 = vdwg.mxu0
  %1766 = vmatpush.bf16.msra.mxu0 %v966
  %1767 = vmatpush.bf16.msra.mxu0 %v958
  %1768 = vmatpush.bf16.msra.mxu0 %v950
  %1769 = vmatpush.bf16.msra.mxu0 %v942
  %1770 = vmatpush.bf16.msra.mxu0 %v934
  %1771 = vmatpush.bf16.msra.mxu0 %v926
  %1772 = vmatpush.bf16.msra.mxu0 %v918
  %1773 = vmatpush.bf16.msra.mxu0 %v910
  %1774 = vmatmul.bf16.gmra.mxu0 %v1660
  %v1775 = vpop.f32.mrf.mxu0
  %v1776 = vadd.f32 %v275, %v1775
  %v1777 = vpop.f32.mrf.mxu0
  %1778 = vdwg.mxu0
  %1779 = vmatpush.bf16.msra.mxu0 %v1030
  %1780 = vmatpush.bf16.msra.mxu0 %v1022
  %1781 = vmatpush.bf16.msra.mxu0 %v1014
  %1782 = vmatpush.bf16.msra.mxu0 %v1006
  %1783 = vmatpush.bf16.msra.mxu0 %v998
  %1784 = vmatpush.bf16.msra.mxu0 %v990
  %1785 = vmatpush.bf16.msra.mxu0 %v982
  %1786 = vmatpush.bf16.msra.mxu0 %v974
  %1787 = vmatmul.bf16.gmra.mxu0 %v1661
  %v1788 = vpop.f32.mrf.mxu0
  %v1789 = vadd.f32 %v1776, %v1788
  %v1790 = vpop.f32.mrf.mxu0
  %1791 = vdwg.mxu0
  %1792 = vmatpush.bf16.msra.mxu0 %v967
  %1793 = vmatpush.bf16.msra.mxu0 %v959
  %1794 = vmatpush.bf16.msra.mxu0 %v951
  %1795 = vmatpush.bf16.msra.mxu0 %v943
  %1796 = vmatpush.bf16.msra.mxu0 %v935
  %1797 = vmatpush.bf16.msra.mxu0 %v927
  %1798 = vmatpush.bf16.msra.mxu0 %v919
  %1799 = vmatpush.bf16.msra.mxu0 %v911
  %1800 = vmatmul.bf16.gmra.mxu0 %v1660
  %v1801 = vpop.f32.mrf.mxu0
  %v1802 = vadd.f32 %v303, %v1801
  %v1803 = vpop.f32.mrf.mxu0
  %1804 = vdwg.mxu0
  %1805 = vmatpush.bf16.msra.mxu0 %v1031
  %1806 = vmatpush.bf16.msra.mxu0 %v1023
  %1807 = vmatpush.bf16.msra.mxu0 %v1015
  %1808 = vmatpush.bf16.msra.mxu0 %v1007
  %1809 = vmatpush.bf16.msra.mxu0 %v999
  %1810 = vmatpush.bf16.msra.mxu0 %v991
  %1811 = vmatpush.bf16.msra.mxu0 %v983
  %1812 = vmatpush.bf16.msra.mxu0 %v975
  %1813 = vmatmul.bf16.gmra.mxu0 %v1661
  %v1814 = vpop.f32.mrf.mxu0
  %v1815 = vadd.f32 %v1802, %v1814
  %v1816 = vpop.f32.mrf.mxu0
  %1817 = vdwg.mxu0
  %1818 = vmatpush.bf16.msra.mxu0 %v968
  %1819 = vmatpush.bf16.msra.mxu0 %v960
  %1820 = vmatpush.bf16.msra.mxu0 %v952
  %1821 = vmatpush.bf16.msra.mxu0 %v944
  %1822 = vmatpush.bf16.msra.mxu0 %v936
  %1823 = vmatpush.bf16.msra.mxu0 %v928
  %1824 = vmatpush.bf16.msra.mxu0 %v920
  %1825 = vmatpush.bf16.msra.mxu0 %v912
  %1826 = vmatmul.bf16.gmra.mxu0 %v1660
  %v1827 = vpop.f32.mrf.mxu0
  %v1828 = vadd.f32 %v332, %v1827
  %v1829 = vpop.f32.mrf.mxu0
  %1830 = vdwg.mxu0
  %1831 = vmatpush.bf16.msra.mxu0 %v1032
  %1832 = vmatpush.bf16.msra.mxu0 %v1024
  %1833 = vmatpush.bf16.msra.mxu0 %v1016
  %1834 = vmatpush.bf16.msra.mxu0 %v1008
  %1835 = vmatpush.bf16.msra.mxu0 %v1000
  %1836 = vmatpush.bf16.msra.mxu0 %v992
  %1837 = vmatpush.bf16.msra.mxu0 %v984
  %1838 = vmatpush.bf16.msra.mxu0 %v976
  %1839 = vmatmul.bf16.gmra.mxu0 %v1661
  %v1840 = vpop.f32.mrf.mxu0
  %v1841 = vadd.f32 %v1828, %v1840
  %v1842 = vpop.f32.mrf.mxu0
  %1843 = vdwg.mxu0
  %1844 = vmatpush.bf16.msra.mxu0 %v969
  %1845 = vmatpush.bf16.msra.mxu0 %v961
  %1846 = vmatpush.bf16.msra.mxu0 %v953
  %1847 = vmatpush.bf16.msra.mxu0 %v945
  %1848 = vmatpush.bf16.msra.mxu0 %v937
  %1849 = vmatpush.bf16.msra.mxu0 %v929
  %1850 = vmatpush.bf16.msra.mxu0 %v921
  %1851 = vmatpush.bf16.msra.mxu0 %v913
  %1852 = vmatmul.bf16.gmra.mxu0 %v1660
  %v1853 = vpop.f32.mrf.mxu0
  %v1854 = vadd.f32 %v360, %v1853
  %v1855 = vpop.f32.mrf.mxu0
  %1856 = vdwg.mxu0
  %1857 = vmatpush.bf16.msra.mxu0 %v1033
  %1858 = vmatpush.bf16.msra.mxu0 %v1025
  %1859 = vmatpush.bf16.msra.mxu0 %v1017
  %1860 = vmatpush.bf16.msra.mxu0 %v1009
  %1861 = vmatpush.bf16.msra.mxu0 %v1001
  %1862 = vmatpush.bf16.msra.mxu0 %v993
  %1863 = vmatpush.bf16.msra.mxu0 %v985
  %1864 = vmatpush.bf16.msra.mxu0 %v977
  %1865 = vmatmul.bf16.gmra.mxu0 %v1661
  %v1866 = vpop.f32.mrf.mxu0
  %v1867 = vadd.f32 %v1854, %v1866
  %v1868 = vpop.f32.mrf.mxu0
  %1869 = vdwg.mxu0
  %v1870 = vmul.f32 %v1685, 0.5
  %v1871 = vmul.f32 %v1711, 0.5
  %v1872 = vmul.f32 %v1737, 0.5
  %v1873 = vmul.f32 %v1763, 0.5
  %v1874 = vmul.f32 %v1789, 0.5
  %v1875 = vmul.f32 %v1815, 0.5
  %v1876 = vtanh.pop %v1870
  %v1877 = vtanh.pop %v1871
  %v1878 = vtanh.pop %v1872
  %v1879 = vtanh.pop %v1873
  %v1880 = vtanh.pop %v1874
  %v1881 = vtanh.pop %v1875
  %v1882 = vmul.f32 %v1876, 0.5
  %v1883 = vmul.f32 %v1877, 0.5
  %v1884 = vmul.f32 %v1878, 0.5
  %v1885 = vmul.f32 %v1879, 0.5
  %v1886 = vmul.f32 %v1880, 0.5
  %v1887 = vmul.f32 %v1881, 0.5
  %v1888 = vadd.f32 %v1882, 0.5
  %v1889 = vadd.f32 %v1883, 0.5
  %v1890 = vadd.f32 %v1884, 0.5
  %v1891 = vadd.f32 %v1885, 0.5
  %v1892 = vadd.f32 %v1886, 0.5
  %v1893 = vadd.f32 %v1887, 0.5
  %v1894 = vtanh.pop %v1841
  %v1895 = vtanh.pop %v1867
  %v1896 = vmul.f32 %v1892, %v1648
  %v1897 = vmul.f32 %v1891, %v1895
  %v1898 = vadd.f32 %v1896, %v1897
  %v1899 = vtanh.pop %v1898
  %v1900 = vmul.f32 %v1893, %v1899
  %1901 = vst [vmem:[#allocation3 + $0x8] sm:$0xff] %v1900
  %v1902 = vmul.f32 %v1889, %v1654
  %v1903 = vmul.f32 %v1888, %v1894
  %v1904 = vadd.f32 %v1902, %v1903
  %v1905 = vtanh.pop %v1904
  %v1906 = vmul.f32 %v1890, %v1905
  %1907 = vst [vmem:[#allocation3] sm:$0xff] %v1906
  %v1908 = vld [vmem:[#allocation3] sm:$0xff]
  %v1909 = vld [vmem:[#allocation3 + $0x8] sm:$0xff]
  %v1910 = vpack.c.bf16 %v1908, %v1908
  %v1911 = vpack.c.bf16 %v1909, %v1909
  %1912 = vmatpush.bf16.msra.mxu0 %v962
  %1913 = vmatpush.bf16.msra.mxu0 %v954
  %1914 = vmatpush.bf16.msra.mxu0 %v946
  %1915 = vmatpush.bf16.msra.mxu0 %v938
  %1916 = vmatpush.bf16.msra.mxu0 %v930
  %1917 = vmatpush.bf16.msra.mxu0 %v922
  %1918 = vmatpush.bf16.msra.mxu0 %v914
  %1919 = vmatpush.bf16.msra.mxu0 %v906
  %1920 = vmatmul.bf16.gmra.mxu0 %v1910
  %v1921 = vpop.f32.mrf.mxu0
  %v1922 = vadd.f32 %v165, %v1921
  %v1923 = vpop.f32.mrf.mxu0
  %1924 = vdwg.mxu0
  %1925 = vmatpush.bf16.msra.mxu0 %v1026
  %1926 = vmatpush.bf16.msra.mxu0 %v1018
  %1927 = vmatpush.bf16.msra.mxu0 %v1010
  %1928 = vmatpush.bf16.msra.mxu0 %v1002
  %1929 = vmatpush.bf16.msra.mxu0 %v994
  %1930 = vmatpush.bf16.msra.mxu0 %v986
  %1931 = vmatpush.bf16.msra.mxu0 %v978
  %1932 = vmatpush.bf16.msra.mxu0 %v970
  %1933 = vmatmul.bf16.gmra.mxu0 %v1911
  %v1934 = vpop.f32.mrf.mxu0
  %v1935 = vadd.f32 %v1922, %v1934
  %v1936 = vpop.f32.mrf.mxu0
  %1937 = vdwg.mxu0
  %1938 = vmatpush.bf16.msra.mxu0 %v963
  %1939 = vmatpush.bf16.msra.mxu0 %v955
  %1940 = vmatpush.bf16.msra.mxu0 %v947
  %1941 = vmatpush.bf16.msra.mxu0 %v939
  %1942 = vmatpush.bf16.msra.mxu0 %v931
  %1943 = vmatpush.bf16.msra.mxu0 %v923
  %1944 = vmatpush.bf16.msra.mxu0 %v915
  %1945 = vmatpush.bf16.msra.mxu0 %v907
  %1946 = vmatmul.bf16.gmra.mxu0 %v1910
  %v1947 = vpop.f32.mrf.mxu0
  %v1948 = vadd.f32 %v193, %v1947
  %v1949 = vpop.f32.mrf.mxu0
  %1950 = vdwg.mxu0
  %1951 = vmatpush.bf16.msra.mxu0 %v1027
  %1952 = vmatpush.bf16.msra.mxu0 %v1019
  %1953 = vmatpush.bf16.msra.mxu0 %v1011
  %1954 = vmatpush.bf16.msra.mxu0 %v1003
  %1955 = vmatpush.bf16.msra.mxu0 %v995
  %1956 = vmatpush.bf16.msra.mxu0 %v987
  %1957 = vmatpush.bf16.msra.mxu0 %v979
  %1958 = vmatpush.bf16.msra.mxu0 %v971
  %1959 = vmatmul.bf16.gmra.mxu0 %v1911
  %v1960 = vpop.f32.mrf.mxu0
  %v1961 = vadd.f32 %v1948, %v1960
  %v1962 = vpop.f32.mrf.mxu0
  %1963 = vdwg.mxu0
  %1964 = vmatpush.bf16.msra.mxu0 %v964
  %1965 = vmatpush.bf16.msra.mxu0 %v956
  %1966 = vmatpush.bf16.msra.mxu0 %v948
  %1967 = vmatpush.bf16.msra.mxu0 %v940
  %1968 = vmatpush.bf16.msra.mxu0 %v932
  %1969 = vmatpush.bf16.msra.mxu0 %v924
  %1970 = vmatpush.bf16.msra.mxu0 %v916
  %1971 = vmatpush.bf16.msra.mxu0 %v908
  %1972 = vmatmul.bf16.gmra.mxu0 %v1910
  %v1973 = vpop.f32.mrf.mxu0
  %v1974 = vadd.f32 %v222, %v1973
  %v1975 = vpop.f32.mrf.mxu0
  %1976 = vdwg.mxu0
  %1977 = vmatpush.bf16.msra.mxu0 %v1028
  %1978 = vmatpush.bf16.msra.mxu0 %v1020
  %1979 = vmatpush.bf16.msra.mxu0 %v1012
  %1980 = vmatpush.bf16.msra.mxu0 %v1004
  %1981 = vmatpush.bf16.msra.mxu0 %v996
  %1982 = vmatpush.bf16.msra.mxu0 %v988
  %1983 = vmatpush.bf16.msra.mxu0 %v980
  %1984 = vmatpush.bf16.msra.mxu0 %v972
  %1985 = vmatmul.bf16.gmra.mxu0 %v1911
  %v1986 = vpop.f32.mrf.mxu0
  %v1987 = vadd.f32 %v1974, %v1986
  %v1988 = vpop.f32.mrf.mxu0
  %1989 = vdwg.mxu0
  %1990 = vmatpush.bf16.msra.mxu0 %v965
  %1991 = vmatpush.bf16.msra.mxu0 %v957
  %1992 = vmatpush.bf16.msra.mxu0 %v949
  %1993 = vmatpush.bf16.msra.mxu0 %v941
  %1994 = vmatpush.bf16.msra.mxu0 %v933
  %1995 = vmatpush.bf16.msra.mxu0 %v925
  %1996 = vmatpush.bf16.msra.mxu0 %v917
  %1997 = vmatpush.bf16.msra.mxu0 %v909
  %1998 = vmatmul.bf16.gmra.mxu0 %v1910
  %v1999 = vpop.f32.mrf.mxu0
  %v2000 = vadd.f32 %v250, %v1999
  %v2001 = vpop.f32.mrf.mxu0
  %2002 = vdwg.mxu0
  %2003 = vmatpush.bf16.msra.mxu0 %v1029
  %2004 = vmatpush.bf16.msra.mxu0 %v1021
  %2005 = vmatpush.bf16.msra.mxu0 %v1013
  %2006 = vmatpush.bf16.msra.mxu0 %v1005
  %2007 = vmatpush.bf16.msra.mxu0 %v997
  %2008 = vmatpush.bf16.msra.mxu0 %v989
  %2009 = vmatpush.bf16.msra.mxu0 %v981
  %2010 = vmatpush.bf16.msra.mxu0 %v973
  %2011 = vmatmul.bf16.gmra.mxu0 %v1911
  %v2012 = vpop.f32.mrf.mxu0
  %v2013 = vadd.f32 %v2000, %v2012
  %v2014 = vpop.f32.mrf.mxu0
  %2015 = vdwg.mxu0
  %2016 = vmatpush.bf16.msra.mxu0 %v966
  %2017 = vmatpush.bf16.msra.mxu0 %v958
  %2018 = vmatpush.bf16.msra.mxu0 %v950
  %2019 = vmatpush.bf16.msra.mxu0 %v942
  %2020 = vmatpush.bf16.msra.mxu0 %v934
  %2021 = vmatpush.bf16.msra.mxu0 %v926
  %2022 = vmatpush.bf16.msra.mxu0 %v918
  %2023 = vmatpush.bf16.msra.mxu0 %v910
  %2024 = vmatmul.bf16.gmra.mxu0 %v1910
  %v2025 = vpop.f32.mrf.mxu0
  %v2026 = vadd.f32 %v278, %v2025
  %v2027 = vpop.f32.mrf.mxu0
  %2028 = vdwg.mxu0
  %2029 = vmatpush.bf16.msra.mxu0 %v1030
  %2030 = vmatpush.bf16.msra.mxu0 %v1022
  %2031 = vmatpush.bf16.msra.mxu0 %v1014
  %2032 = vmatpush.bf16.msra.mxu0 %v1006
  %2033 = vmatpush.bf16.msra.mxu0 %v998
  %2034 = vmatpush.bf16.msra.mxu0 %v990
  %2035 = vmatpush.bf16.msra.mxu0 %v982
  %2036 = vmatpush.bf16.msra.mxu0 %v974
  %2037 = vmatmul.bf16.gmra.mxu0 %v1911
  %v2038 = vpop.f32.mrf.mxu0
  %v2039 = vadd.f32 %v2026, %v2038
  %v2040 = vpop.f32.mrf.mxu0
  %2041 = vdwg.mxu0
  %2042 = vmatpush.bf16.msra.mxu0 %v967
  %2043 = vmatpush.bf16.msra.mxu0 %v959
  %2044 = vmatpush.bf16.msra.mxu0 %v951
  %2045 = vmatpush.bf16.msra.mxu0 %v943
  %2046 = vmatpush.bf16.msra.mxu0 %v935
  %2047 = vmatpush.bf16.msra.mxu0 %v927
  %2048 = vmatpush.bf16.msra.mxu0 %v919
  %2049 = vmatpush.bf16.msra.mxu0 %v911
  %2050 = vmatmul.bf16.gmra.mxu0 %v1910
  %v2051 = vpop.f32.mrf.mxu0
  %v2052 = vadd.f32 %v306, %v2051
  %v2053 = vpop.f32.mrf.mxu0
  %2054 = vdwg.mxu0
  %2055 = vmatpush.bf16.msra.mxu0 %v1031
  %2056 = vmatpush.bf16.msra.mxu0 %v1023
  %2057 = vmatpush.bf16.msra.mxu0 %v1015
  %2058 = vmatpush.bf16.msra.mxu0 %v1007
  %2059 = vmatpush.bf16.msra.mxu0 %v999
  %2060 = vmatpush.bf16.msra.mxu0 %v991
  %2061 = vmatpush.bf16.msra.mxu0 %v983
  %2062 = vmatpush.bf16.msra.mxu0 %v975
  %2063 = vmatmul.bf16.gmra.mxu0 %v1911
  %v2064 = vpop.f32.mrf.mxu0
  %v2065 = vadd.f32 %v2052, %v2064
  %v2066 = vpop.f32.mrf.mxu0
  %2067 = vdwg.mxu0
  %2068 = vmatpush.bf16.msra.mxu0 %v968
  %2069 = vmatpush.bf16.msra.mxu0 %v960
  %2070 = vmatpush.bf16.msra.mxu0 %v952
  %2071 = vmatpush.bf16.msra.mxu0 %v944
  %2072 = vmatpush.bf16.msra.mxu0 %v936
  %2073 = vmatpush.bf16.msra.mxu0 %v928
  %2074 = vmatpush.bf16.msra.mxu0 %v920
  %2075 = vmatpush.bf16.msra.mxu0 %v912
  %2076 = vmatmul.bf16.gmra.mxu0 %v1910
  %v2077 = vpop.f32.mrf.mxu0
  %v2078 = vadd.f32 %v335, %v2077
  %v2079 = vpop.f32.mrf.mxu0
  %2080 = vdwg.mxu0
  %2081 = vmatpush.bf16.msra.mxu0 %v1032
  %2082 = vmatpush.bf16.msra.mxu0 %v1024
  %2083 = vmatpush.bf16.msra.mxu0 %v1016
  %2084 = vmatpush.bf16.msra.mxu0 %v1008
  %2085 = vmatpush.bf16.msra.mxu0 %v1000
  %2086 = vmatpush.bf16.msra.mxu0 %v992
  %2087 = vmatpush.bf16.msra.mxu0 %v984
  %2088 = vmatpush.bf16.msra.mxu0 %v976
  %2089 = vmatmul.bf16.gmra.mxu0 %v1911
  %v2090 = vpop.f32.mrf.mxu0
  %v2091 = vadd.f32 %v2078, %v2090
  %v2092 = vpop.f32.mrf.mxu0
  %2093 = vdwg.mxu0
  %2094 = vmatpush.bf16.msra.mxu0 %v969
  %2095 = vmatpush.bf16.msra.mxu0 %v961
  %2096 = vmatpush.bf16.msra.mxu0 %v953
  %2097 = vmatpush.bf16.msra.mxu0 %v945
  %2098 = vmatpush.bf16.msra.mxu0 %v937
  %2099 = vmatpush.bf16.msra.mxu0 %v929
  %2100 = vmatpush.bf16.msra.mxu0 %v921
  %2101 = vmatpush.bf16.msra.mxu0 %v913
  %2102 = vmatmul.bf16.gmra.mxu0 %v1910
  %v2103 = vpop.f32.mrf.mxu0
  %v2104 = vadd.f32 %v363, %v2103
  %v2105 = vpop.f32.mrf.mxu0
  %2106 = vdwg.mxu0
  %2107 = vmatpush.bf16.msra.mxu0 %v1033
  %2108 = vmatpush.bf16.msra.mxu0 %v1025
  %2109 = vmatpush.bf16.msra.mxu0 %v1017
  %2110 = vmatpush.bf16.msra.mxu0 %v1009
  %2111 = vmatpush.bf16.msra.mxu0 %v1001
  %2112 = vmatpush.bf16.msra.mxu0 %v993
  %2113 = vmatpush.bf16.msra.mxu0 %v985
  %2114 = vmatpush.bf16.msra.mxu0 %v977
  %2115 = vmatmul.bf16.gmra.mxu0 %v1911
  %v2116 = vpop.f32.mrf.mxu0
  %v2117 = vadd.f32 %v2104, %v2116
  %v2118 = vpop.f32.mrf.mxu0
  %2119 = vdwg.mxu0
  %v2120 = vmul.f32 %v1935, 0.5
  %v2121 = vmul.f32 %v1961, 0.5
  %v2122 = vmul.f32 %v1987, 0.5
  %v2123 = vmul.f32 %v2013, 0.5
  %v2124 = vmul.f32 %v2039, 0.5
  %v2125 = vmul.f32 %v2065, 0.5
  %v2126 = vtanh.pop %v2120
  %v2127 = vtanh.pop %v2121
  %v2128 = vtanh.pop %v2122
  %v2129 = vtanh.pop %v2123
  %v2130 = vtanh.pop %v2124
  %v2131 = vtanh.pop %v2125
  %v2132 = vmul.f32 %v2126, 0.5
  %v2133 = vmul.f32 %v2127, 0.5
  %v2134 = vmul.f32 %v2128, 0.5
  %v2135 = vmul.f32 %v2129, 0.5
  %v2136 = vmul.f32 %v2130, 0.5
  %v2137 = vmul.f32 %v2131, 0.5
  %v2138 = vadd.f32 %v2132, 0.5
  %v2139 = vadd.f32 %v2133, 0.5
  %v2140 = vadd.f32 %v2134, 0.5
  %v2141 = vadd.f32 %v2135, 0.5
  %v2142 = vadd.f32 %v2136, 0.5
  %v2143 = vadd.f32 %v2137, 0.5
  %v2144 = vtanh.pop %v2091
  %v2145 = vtanh.pop %v2117
  %v2146 = vmul.f32 %v2142, %v1898
  %v2147 = vmul.f32 %v2141, %v2145
  %v2148 = vadd.f32 %v2146, %v2147
  %v2149 = vtanh.pop %v2148
  %v2150 = vmul.f32 %v2143, %v2149
  %2151 = vst [vmem:[#allocation3 + $0x8] sm:$0xff] %v2150
  %v2152 = vmul.f32 %v2139, %v1904
  %v2153 = vmul.f32 %v2138, %v2144
  %v2154 = vadd.f32 %v2152, %v2153
  %v2155 = vtanh.pop %v2154
  %v2156 = vmul.f32 %v2140, %v2155
  %2157 = vst [vmem:[#allocation3] sm:$0xff] %v2156
  %v2158 = vld [vmem:[#allocation3] sm:$0xff]
  %v2159 = vld [vmem:[#allocation3 + $0x8] sm:$0xff]
  %v2160 = vpack.c.bf16 %v2158, %v2158
  %v2161 = vpack.c.bf16 %v2159, %v2159
  %2162 = vmatpush.bf16.msra.mxu0 %v962
  %2163 = vmatpush.bf16.msra.mxu0 %v954
  %2164 = vmatpush.bf16.msra.mxu0 %v946
  %2165 = vmatpush.bf16.msra.mxu0 %v938
  %2166 = vmatpush.bf16.msra.mxu0 %v930
  %2167 = vmatpush.bf16.msra.mxu0 %v922
  %2168 = vmatpush.bf16.msra.mxu0 %v914
  %2169 = vmatpush.bf16.msra.mxu0 %v906
  %2170 = vmatmul.bf16.gmra.mxu0 %v2160
  %v2171 = vpop.f32.mrf.mxu0
  %v2172 = vadd.f32 %v167, %v2171
  %v2173 = vpop.f32.mrf.mxu0
  %2174 = vdwg.mxu0
  %2175 = vmatpush.bf16.msra.mxu0 %v1026
  %2176 = vmatpush.bf16.msra.mxu0 %v1018
  %2177 = vmatpush.bf16.msra.mxu0 %v1010
  %2178 = vmatpush.bf16.msra.mxu0 %v1002
  %2179 = vmatpush.bf16.msra.mxu0 %v994
  %2180 = vmatpush.bf16.msra.mxu0 %v986
  %2181 = vmatpush.bf16.msra.mxu0 %v978
  %2182 = vmatpush.bf16.msra.mxu0 %v970
  %2183 = vmatmul.bf16.gmra.mxu0 %v2161
  %v2184 = vpop.f32.mrf.mxu0
  %v2185 = vadd.f32 %v2172, %v2184
  %v2186 = vpop.f32.mrf.mxu0
  %2187 = vdwg.mxu0
  %2188 = vmatpush.bf16.msra.mxu0 %v963
  %2189 = vmatpush.bf16.msra.mxu0 %v955
  %2190 = vmatpush.bf16.msra.mxu0 %v947
  %2191 = vmatpush.bf16.msra.mxu0 %v939
  %2192 = vmatpush.bf16.msra.mxu0 %v931
  %2193 = vmatpush.bf16.msra.mxu0 %v923
  %2194 = vmatpush.bf16.msra.mxu0 %v915
  %2195 = vmatpush.bf16.msra.mxu0 %v907
  %2196 = vmatmul.bf16.gmra.mxu0 %v2160
  %v2197 = vpop.f32.mrf.mxu0
  %v2198 = vadd.f32 %v195, %v2197
  %v2199 = vpop.f32.mrf.mxu0
  %2200 = vdwg.mxu0
  %2201 = vmatpush.bf16.msra.mxu0 %v1027
  %2202 = vmatpush.bf16.msra.mxu0 %v1019
  %2203 = vmatpush.bf16.msra.mxu0 %v1011
  %2204 = vmatpush.bf16.msra.mxu0 %v1003
  %2205 = vmatpush.bf16.msra.mxu0 %v995
  %2206 = vmatpush.bf16.msra.mxu0 %v987
  %2207 = vmatpush.bf16.msra.mxu0 %v979
  %2208 = vmatpush.bf16.msra.mxu0 %v971
  %2209 = vmatmul.bf16.gmra.mxu0 %v2161
  %v2210 = vpop.f32.mrf.mxu0
  %v2211 = vadd.f32 %v2198, %v2210
  %v2212 = vpop.f32.mrf.mxu0
  %2213 = vdwg.mxu0
  %2214 = vmatpush.bf16.msra.mxu0 %v964
  %2215 = vmatpush.bf16.msra.mxu0 %v956
  %2216 = vmatpush.bf16.msra.mxu0 %v948
  %2217 = vmatpush.bf16.msra.mxu0 %v940
  %2218 = vmatpush.bf16.msra.mxu0 %v932
  %2219 = vmatpush.bf16.msra.mxu0 %v924
  %2220 = vmatpush.bf16.msra.mxu0 %v916
  %2221 = vmatpush.bf16.msra.mxu0 %v908
  %2222 = vmatmul.bf16.gmra.mxu0 %v2160
  %v2223 = vpop.f32.mrf.mxu0
  %v2224 = vadd.f32 %v224, %v2223
  %v2225 = vpop.f32.mrf.mxu0
  %2226 = vdwg.mxu0
  %2227 = vmatpush.bf16.msra.mxu0 %v1028
  %2228 = vmatpush.bf16.msra.mxu0 %v1020
  %2229 = vmatpush.bf16.msra.mxu0 %v1012
  %2230 = vmatpush.bf16.msra.mxu0 %v1004
  %2231 = vmatpush.bf16.msra.mxu0 %v996
  %2232 = vmatpush.bf16.msra.mxu0 %v988
  %2233 = vmatpush.bf16.msra.mxu0 %v980
  %2234 = vmatpush.bf16.msra.mxu0 %v972
  %2235 = vmatmul.bf16.gmra.mxu0 %v2161
  %v2236 = vpop.f32.mrf.mxu0
  %v2237 = vadd.f32 %v2224, %v2236
  %v2238 = vpop.f32.mrf.mxu0
  %2239 = vdwg.mxu0
  %2240 = vmatpush.bf16.msra.mxu0 %v965
  %2241 = vmatpush.bf16.msra.mxu0 %v957
  %2242 = vmatpush.bf16.msra.mxu0 %v949
  %2243 = vmatpush.bf16.msra.mxu0 %v941
  %2244 = vmatpush.bf16.msra.mxu0 %v933
  %2245 = vmatpush.bf16.msra.mxu0 %v925
  %2246 = vmatpush.bf16.msra.mxu0 %v917
  %2247 = vmatpush.bf16.msra.mxu0 %v909
  %2248 = vmatmul.bf16.gmra.mxu0 %v2160
  %v2249 = vpop.f32.mrf.mxu0
  %v2250 = vadd.f32 %v252, %v2249
  %v2251 = vpop.f32.mrf.mxu0
  %2252 = vdwg.mxu0
  %2253 = vmatpush.bf16.msra.mxu0 %v1029
  %2254 = vmatpush.bf16.msra.mxu0 %v1021
  %2255 = vmatpush.bf16.msra.mxu0 %v1013
  %2256 = vmatpush.bf16.msra.mxu0 %v1005
  %2257 = vmatpush.bf16.msra.mxu0 %v997
  %2258 = vmatpush.bf16.msra.mxu0 %v989
  %2259 = vmatpush.bf16.msra.mxu0 %v981
  %2260 = vmatpush.bf16.msra.mxu0 %v973
  %2261 = vmatmul.bf16.gmra.mxu0 %v2161
  %v2262 = vpop.f32.mrf.mxu0
  %v2263 = vadd.f32 %v2250, %v2262
  %v2264 = vpop.f32.mrf.mxu0
  %2265 = vdwg.mxu0
  %2266 = vmatpush.bf16.msra.mxu0 %v966
  %2267 = vmatpush.bf16.msra.mxu0 %v958
  %2268 = vmatpush.bf16.msra.mxu0 %v950
  %2269 = vmatpush.bf16.msra.mxu0 %v942
  %2270 = vmatpush.bf16.msra.mxu0 %v934
  %2271 = vmatpush.bf16.msra.mxu0 %v926
  %2272 = vmatpush.bf16.msra.mxu0 %v918
  %2273 = vmatpush.bf16.msra.mxu0 %v910
  %2274 = vmatmul.bf16.gmra.mxu0 %v2160
  %v2275 = vpop.f32.mrf.mxu0
  %v2276 = vadd.f32 %v280, %v2275
  %v2277 = vpop.f32.mrf.mxu0
  %2278 = vdwg.mxu0
  %2279 = vmatpush.bf16.msra.mxu0 %v1030
  %2280 = vmatpush.bf16.msra.mxu0 %v1022
  %2281 = vmatpush.bf16.msra.mxu0 %v1014
  %2282 = vmatpush.bf16.msra.mxu0 %v1006
  %2283 = vmatpush.bf16.msra.mxu0 %v998
  %2284 = vmatpush.bf16.msra.mxu0 %v990
  %2285 = vmatpush.bf16.msra.mxu0 %v982
  %2286 = vmatpush.bf16.msra.mxu0 %v974
  %2287 = vmatmul.bf16.gmra.mxu0 %v2161
  %v2288 = vpop.f32.mrf.mxu0
  %v2289 = vadd.f32 %v2276, %v2288
  %v2290 = vpop.f32.mrf.mxu0
  %2291 = vdwg.mxu0
  %2292 = vmatpush.bf16.msra.mxu0 %v967
  %2293 = vmatpush.bf16.msra.mxu0 %v959
  %2294 = vmatpush.bf16.msra.mxu0 %v951
  %2295 = vmatpush.bf16.msra.mxu0 %v943
  %2296 = vmatpush.bf16.msra.mxu0 %v935
  %2297 = vmatpush.bf16.msra.mxu0 %v927
  %2298 = vmatpush.bf16.msra.mxu0 %v919
  %2299 = vmatpush.bf16.msra.mxu0 %v911
  %2300 = vmatmul.bf16.gmra.mxu0 %v2160
  %v2301 = vpop.f32.mrf.mxu0
  %v2302 = vadd.f32 %v308, %v2301
  %v2303 = vpop.f32.mrf.mxu0
  %2304 = vdwg.mxu0
  %2305 = vmatpush.bf16.msra.mxu0 %v1031
  %2306 = vmatpush.bf16.msra.mxu0 %v1023
  %2307 = vmatpush.bf16.msra.mxu0 %v1015
  %2308 = vmatpush.bf16.msra.mxu0 %v1007
  %2309 = vmatpush.bf16.msra.mxu0 %v999
  %2310 = vmatpush.bf16.msra.mxu0 %v991
  %2311 = vmatpush.bf16.msra.mxu0 %v983
  %2312 = vmatpush.bf16.msra.mxu0 %v975
  %2313 = vmatmul.bf16.gmra.mxu0 %v2161
  %v2314 = vpop.f32.mrf.mxu0
  %v2315 = vadd.f32 %v2302, %v2314
  %v2316 = vpop.f32.mrf.mxu0
  %2317 = vdwg.mxu0
  %2318 = vmatpush.bf16.msra.mxu0 %v968
  %2319 = vmatpush.bf16.msra.mxu0 %v960
  %2320 = vmatpush.bf16.msra.mxu0 %v952
  %2321 = vmatpush.bf16.msra.mxu0 %v944
  %2322 = vmatpush.bf16.msra.mxu0 %v936
  %2323 = vmatpush.bf16.msra.mxu0 %v928
  %2324 = vmatpush.bf16.msra.mxu0 %v920
  %2325 = vmatpush.bf16.msra.mxu0 %v912
  %2326 = vmatmul.bf16.gmra.mxu0 %v2160
  %v2327 = vpop.f32.mrf.mxu0
  %v2328 = vadd.f32 %v337, %v2327
  %v2329 = vpop.f32.mrf.mxu0
  %2330 = vdwg.mxu0
  %2331 = vmatpush.bf16.msra.mxu0 %v1032
  %2332 = vmatpush.bf16.msra.mxu0 %v1024
  %2333 = vmatpush.bf16.msra.mxu0 %v1016
  %2334 = vmatpush.bf16.msra.mxu0 %v1008
  %2335 = vmatpush.bf16.msra.mxu0 %v1000
  %2336 = vmatpush.bf16.msra.mxu0 %v992
  %2337 = vmatpush.bf16.msra.mxu0 %v984
  %2338 = vmatpush.bf16.msra.mxu0 %v976
  %2339 = vmatmul.bf16.gmra.mxu0 %v2161
  %v2340 = vpop.f32.mrf.mxu0
  %v2341 = vadd.f32 %v2328, %v2340
  %v2342 = vpop.f32.mrf.mxu0
  %2343 = vdwg.mxu0
  %2344 = vmatpush.bf16.msra.mxu0 %v969
  %2345 = vmatpush.bf16.msra.mxu0 %v961
  %2346 = vmatpush.bf16.msra.mxu0 %v953
  %2347 = vmatpush.bf16.msra.mxu0 %v945
  %2348 = vmatpush.bf16.msra.mxu0 %v937
  %2349 = vmatpush.bf16.msra.mxu0 %v929
  %2350 = vmatpush.bf16.msra.mxu0 %v921
  %2351 = vmatpush.bf16.msra.mxu0 %v913
  %2352 = vmatmul.bf16.gmra.mxu0 %v2160
  %v2353 = vpop.f32.mrf.mxu0
  %v2354 = vadd.f32 %v365, %v2353
  %v2355 = vpop.f32.mrf.mxu0
  %2356 = vdwg.mxu0
  %2357 = vmatpush.bf16.msra.mxu0 %v1033
  %2358 = vmatpush.bf16.msra.mxu0 %v1025
  %2359 = vmatpush.bf16.msra.mxu0 %v1017
  %2360 = vmatpush.bf16.msra.mxu0 %v1009
  %2361 = vmatpush.bf16.msra.mxu0 %v1001
  %2362 = vmatpush.bf16.msra.mxu0 %v993
  %2363 = vmatpush.bf16.msra.mxu0 %v985
  %2364 = vmatpush.bf16.msra.mxu0 %v977
  %2365 = vmatmul.bf16.gmra.mxu0 %v2161
  %v2366 = vpop.f32.mrf.mxu0
  %v2367 = vadd.f32 %v2354, %v2366
  %v2368 = vpop.f32.mrf.mxu0
  %2369 = vdwg.mxu0
  %v2370 = vmul.f32 %v2185, 0.5
  %v2371 = vmul.f32 %v2211, 0.5
  %v2372 = vmul.f32 %v2237, 0.5
  %v2373 = vmul.f32 %v2263, 0.5
  %v2374 = vmul.f32 %v2289, 0.5
  %v2375 = vmul.f32 %v2315, 0.5
  %v2376 = vtanh.pop %v2370
  %v2377 = vtanh.pop %v2371
  %v2378 = vtanh.pop %v2372
  %v2379 = vtanh.pop %v2373
  %v2380 = vtanh.pop %v2374
  %v2381 = vtanh.pop %v2375
  %v2382 = vmul.f32 %v2376, 0.5
  %v2383 = vmul.f32 %v2377, 0.5
  %v2384 = vmul.f32 %v2378, 0.5
  %v2385 = vmul.f32 %v2379, 0.5
  %v2386 = vmul.f32 %v2380, 0.5
  %v2387 = vmul.f32 %v2381, 0.5
  %v2388 = vadd.f32 %v2382, 0.5
  %v2389 = vadd.f32 %v2383, 0.5
  %v2390 = vadd.f32 %v2384, 0.5
  %v2391 = vadd.f32 %v2385, 0.5
  %v2392 = vadd.f32 %v2386, 0.5
  %v2393 = vadd.f32 %v2387, 0.5
  %v2394 = vtanh.pop %v2341
  %v2395 = vtanh.pop %v2367
  %v2396 = vmul.f32 %v2392, %v2148
  %v2397 = vmul.f32 %v2391, %v2395
  %v2398 = vadd.f32 %v2396, %v2397
  %v2399 = vtanh.pop %v2398
  %v2400 = vmul.f32 %v2393, %v2399
  %2401 = vst [vmem:[#allocation3 + $0x8] sm:$0xff] %v2400
  %v2402 = vmul.f32 %v2389, %v2154
  %v2403 = vmul.f32 %v2388, %v2394
  %v2404 = vadd.f32 %v2402, %v2403
  %v2405 = vtanh.pop %v2404
  %v2406 = vmul.f32 %v2390, %v2405
  %2407 = vst [vmem:[#allocation3] sm:$0xff] %v2406
  %v2408 = vld [vmem:[#allocation3] sm:$0xff]
  %v2409 = vld [vmem:[#allocation3 + $0x8] sm:$0xff]
  %v2410 = vpack.c.bf16 %v2408, %v2408
  %v2411 = vpack.c.bf16 %v2409, %v2409
  %2412 = vmatpush.bf16.msra.mxu0 %v962
  %2413 = vmatpush.bf16.msra.mxu0 %v954
  %2414 = vmatpush.bf16.msra.mxu0 %v946
  %2415 = vmatpush.bf16.msra.mxu0 %v938
  %2416 = vmatpush.bf16.msra.mxu0 %v930
  %2417 = vmatpush.bf16.msra.mxu0 %v922
  %2418 = vmatpush.bf16.msra.mxu0 %v914
  %2419 = vmatpush.bf16.msra.mxu0 %v906
  %2420 = vmatmul.bf16.gmra.mxu0 %v2410
  %v2421 = vpop.f32.mrf.mxu0
  %v2422 = vadd.f32 %v170, %v2421
  %v2423 = vpop.f32.mrf.mxu0
  %2424 = vdwg.mxu0
  %2425 = vmatpush.bf16.msra.mxu0 %v1026
  %2426 = vmatpush.bf16.msra.mxu0 %v1018
  %2427 = vmatpush.bf16.msra.mxu0 %v1010
  %2428 = vmatpush.bf16.msra.mxu0 %v1002
  %2429 = vmatpush.bf16.msra.mxu0 %v994
  %2430 = vmatpush.bf16.msra.mxu0 %v986
  %2431 = vmatpush.bf16.msra.mxu0 %v978
  %2432 = vmatpush.bf16.msra.mxu0 %v970
  %2433 = vmatmul.bf16.gmra.mxu0 %v2411
  %v2434 = vpop.f32.mrf.mxu0
  %v2435 = vadd.f32 %v2422, %v2434
  %v2436 = vpop.f32.mrf.mxu0
  %2437 = vdwg.mxu0
  %2438 = vmatpush.bf16.msra.mxu0 %v963
  %2439 = vmatpush.bf16.msra.mxu0 %v955
  %2440 = vmatpush.bf16.msra.mxu0 %v947
  %2441 = vmatpush.bf16.msra.mxu0 %v939
  %2442 = vmatpush.bf16.msra.mxu0 %v931
  %2443 = vmatpush.bf16.msra.mxu0 %v923
  %2444 = vmatpush.bf16.msra.mxu0 %v915
  %2445 = vmatpush.bf16.msra.mxu0 %v907
  %2446 = vmatmul.bf16.gmra.mxu0 %v2410
  %v2447 = vpop.f32.mrf.mxu0
  %v2448 = vadd.f32 %v198, %v2447
  %v2449 = vpop.f32.mrf.mxu0
  %2450 = vdwg.mxu0
  %2451 = vmatpush.bf16.msra.mxu0 %v1027
  %2452 = vmatpush.bf16.msra.mxu0 %v1019
  %2453 = vmatpush.bf16.msra.mxu0 %v1011
  %2454 = vmatpush.bf16.msra.mxu0 %v1003
  %2455 = vmatpush.bf16.msra.mxu0 %v995
  %2456 = vmatpush.bf16.msra.mxu0 %v987
  %2457 = vmatpush.bf16.msra.mxu0 %v979
  %2458 = vmatpush.bf16.msra.mxu0 %v971
  %2459 = vmatmul.bf16.gmra.mxu0 %v2411
  %v2460 = vpop.f32.mrf.mxu0
  %v2461 = vadd.f32 %v2448, %v2460
  %v2462 = vpop.f32.mrf.mxu0
  %2463 = vdwg.mxu0
  %2464 = vmatpush.bf16.msra.mxu0 %v964
  %2465 = vmatpush.bf16.msra.mxu0 %v956
  %2466 = vmatpush.bf16.msra.mxu0 %v948
  %2467 = vmatpush.bf16.msra.mxu0 %v940
  %2468 = vmatpush.bf16.msra.mxu0 %v932
  %2469 = vmatpush.bf16.msra.mxu0 %v924
  %2470 = vmatpush.bf16.msra.mxu0 %v916
  %2471 = vmatpush.bf16.msra.mxu0 %v908
  %2472 = vmatmul.bf16.gmra.mxu0 %v2410
  %v2473 = vpop.f32.mrf.mxu0
  %v2474 = vadd.f32 %v227, %v2473
  %v2475 = vpop.f32.mrf.mxu0
  %2476 = vdwg.mxu0
  %2477 = vmatpush.bf16.msra.mxu0 %v1028
  %2478 = vmatpush.bf16.msra.mxu0 %v1020
  %2479 = vmatpush.bf16.msra.mxu0 %v1012
  %2480 = vmatpush.bf16.msra.mxu0 %v1004
  %2481 = vmatpush.bf16.msra.mxu0 %v996
  %2482 = vmatpush.bf16.msra.mxu0 %v988
  %2483 = vmatpush.bf16.msra.mxu0 %v980
  %2484 = vmatpush.bf16.msra.mxu0 %v972
  %2485 = vmatmul.bf16.gmra.mxu0 %v2411
  %v2486 = vpop.f32.mrf.mxu0
  %v2487 = vadd.f32 %v2474, %v2486
  %v2488 = vpop.f32.mrf.mxu0
  %2489 = vdwg.mxu0
  %2490 = vmatpush.bf16.msra.mxu0 %v965
  %2491 = vmatpush.bf16.msra.mxu0 %v957
  %2492 = vmatpush.bf16.msra.mxu0 %v949
  %2493 = vmatpush.bf16.msra.mxu0 %v941
  %2494 = vmatpush.bf16.msra.mxu0 %v933
  %2495 = vmatpush.bf16.msra.mxu0 %v925
  %2496 = vmatpush.bf16.msra.mxu0 %v917
  %2497 = vmatpush.bf16.msra.mxu0 %v909
  %2498 = vmatmul.bf16.gmra.mxu0 %v2410
  %v2499 = vpop.f32.mrf.mxu0
  %v2500 = vadd.f32 %v255, %v2499
  %v2501 = vpop.f32.mrf.mxu0
  %2502 = vdwg.mxu0
  %2503 = vmatpush.bf16.msra.mxu0 %v1029
  %2504 = vmatpush.bf16.msra.mxu0 %v1021
  %2505 = vmatpush.bf16.msra.mxu0 %v1013
  %2506 = vmatpush.bf16.msra.mxu0 %v1005
  %2507 = vmatpush.bf16.msra.mxu0 %v997
  %2508 = vmatpush.bf16.msra.mxu0 %v989
  %2509 = vmatpush.bf16.msra.mxu0 %v981
  %2510 = vmatpush.bf16.msra.mxu0 %v973
  %2511 = vmatmul.bf16.gmra.mxu0 %v2411
  %v2512 = vpop.f32.mrf.mxu0
  %v2513 = vadd.f32 %v2500, %v2512
  %v2514 = vpop.f32.mrf.mxu0
  %2515 = vdwg.mxu0
  %2516 = vmatpush.bf16.msra.mxu0 %v966
  %2517 = vmatpush.bf16.msra.mxu0 %v958
  %2518 = vmatpush.bf16.msra.mxu0 %v950
  %2519 = vmatpush.bf16.msra.mxu0 %v942
  %2520 = vmatpush.bf16.msra.mxu0 %v934
  %2521 = vmatpush.bf16.msra.mxu0 %v926
  %2522 = vmatpush.bf16.msra.mxu0 %v918
  %2523 = vmatpush.bf16.msra.mxu0 %v910
  %2524 = vmatmul.bf16.gmra.mxu0 %v2410
  %v2525 = vpop.f32.mrf.mxu0
  %v2526 = vadd.f32 %v283, %v2525
  %v2527 = vpop.f32.mrf.mxu0
  %2528 = vdwg.mxu0
  %2529 = vmatpush.bf16.msra.mxu0 %v1030
  %2530 = vmatpush.bf16.msra.mxu0 %v1022
  %2531 = vmatpush.bf16.msra.mxu0 %v1014
  %2532 = vmatpush.bf16.msra.mxu0 %v1006
  %2533 = vmatpush.bf16.msra.mxu0 %v998
  %2534 = vmatpush.bf16.msra.mxu0 %v990
  %2535 = vmatpush.bf16.msra.mxu0 %v982
  %2536 = vmatpush.bf16.msra.mxu0 %v974
  %2537 = vmatmul.bf16.gmra.mxu0 %v2411
  %v2538 = vpop.f32.mrf.mxu0
  %v2539 = vadd.f32 %v2526, %v2538
  %v2540 = vpop.f32.mrf.mxu0
  %2541 = vdwg.mxu0
  %2542 = vmatpush.bf16.msra.mxu0 %v967
  %2543 = vmatpush.bf16.msra.mxu0 %v959
  %2544 = vmatpush.bf16.msra.mxu0 %v951
  %2545 = vmatpush.bf16.msra.mxu0 %v943
  %2546 = vmatpush.bf16.msra.mxu0 %v935
  %2547 = vmatpush.bf16.msra.mxu0 %v927
  %2548 = vmatpush.bf16.msra.mxu0 %v919
  %2549 = vmatpush.bf16.msra.mxu0 %v911
  %2550 = vmatmul.bf16.gmra.mxu0 %v2410
  %v2551 = vpop.f32.mrf.mxu0
  %v2552 = vadd.f32 %v311, %v2551
  %v2553 = vpop.f32.mrf.mxu0
  %2554 = vdwg.mxu0
  %2555 = vmatpush.bf16.msra.mxu0 %v1031
  %2556 = vmatpush.bf16.msra.mxu0 %v1023
  %2557 = vmatpush.bf16.msra.mxu0 %v1015
  %2558 = vmatpush.bf16.msra.mxu0 %v1007
  %2559 = vmatpush.bf16.msra.mxu0 %v999
  %2560 = vmatpush.bf16.msra.mxu0 %v991
  %2561 = vmatpush.bf16.msra.mxu0 %v983
  %2562 = vmatpush.bf16.msra.mxu0 %v975
  %2563 = vmatmul.bf16.gmra.mxu0 %v2411
  %v2564 = vpop.f32.mrf.mxu0
  %v2565 = vadd.f32 %v2552, %v2564
  %v2566 = vpop.f32.mrf.mxu0
  %2567 = vdwg.mxu0
  %2568 = vmatpush.bf16.msra.mxu0 %v968
  %2569 = vmatpush.bf16.msra.mxu0 %v960
  %2570 = vmatpush.bf16.msra.mxu0 %v952
  %2571 = vmatpush.bf16.msra.mxu0 %v944
  %2572 = vmatpush.bf16.msra.mxu0 %v936
  %2573 = vmatpush.bf16.msra.mxu0 %v928
  %2574 = vmatpush.bf16.msra.mxu0 %v920
  %2575 = vmatpush.bf16.msra.mxu0 %v912
  %2576 = vmatmul.bf16.gmra.mxu0 %v2410
  %v2577 = vpop.f32.mrf.mxu0
  %v2578 = vadd.f32 %v340, %v2577
  %v2579 = vpop.f32.mrf.mxu0
  %2580 = vdwg.mxu0
  %2581 = vmatpush.bf16.msra.mxu0 %v1032
  %2582 = vmatpush.bf16.msra.mxu0 %v1024
  %2583 = vmatpush.bf16.msra.mxu0 %v1016
  %2584 = vmatpush.bf16.msra.mxu0 %v1008
  %2585 = vmatpush.bf16.msra.mxu0 %v1000
  %2586 = vmatpush.bf16.msra.mxu0 %v992
  %2587 = vmatpush.bf16.msra.mxu0 %v984
  %2588 = vmatpush.bf16.msra.mxu0 %v976
  %2589 = vmatmul.bf16.gmra.mxu0 %v2411
  %v2590 = vpop.f32.mrf.mxu0
  %v2591 = vadd.f32 %v2578, %v2590
  %v2592 = vpop.f32.mrf.mxu0
  %2593 = vdwg.mxu0
  %2594 = vmatpush.bf16.msra.mxu0 %v969
  %2595 = vmatpush.bf16.msra.mxu0 %v961
  %2596 = vmatpush.bf16.msra.mxu0 %v953
  %2597 = vmatpush.bf16.msra.mxu0 %v945
  %2598 = vmatpush.bf16.msra.mxu0 %v937
  %2599 = vmatpush.bf16.msra.mxu0 %v929
  %2600 = vmatpush.bf16.msra.mxu0 %v921
  %2601 = vmatpush.bf16.msra.mxu0 %v913
  %2602 = vmatmul.bf16.gmra.mxu0 %v2410
  %v2603 = vpop.f32.mrf.mxu0
  %v2604 = vadd.f32 %v368, %v2603
  %v2605 = vpop.f32.mrf.mxu0
  %2606 = vdwg.mxu0
  %2607 = vmatpush.bf16.msra.mxu0 %v1033
  %2608 = vmatpush.bf16.msra.mxu0 %v1025
  %2609 = vmatpush.bf16.msra.mxu0 %v1017
  %2610 = vmatpush.bf16.msra.mxu0 %v1009
  %2611 = vmatpush.bf16.msra.mxu0 %v1001
  %2612 = vmatpush.bf16.msra.mxu0 %v993
  %2613 = vmatpush.bf16.msra.mxu0 %v985
  %2614 = vmatpush.bf16.msra.mxu0 %v977
  %2615 = vmatmul.bf16.gmra.mxu0 %v2411
  %v2616 = vpop.f32.mrf.mxu0
  %v2617 = vadd.f32 %v2604, %v2616
  %v2618 = vpop.f32.mrf.mxu0
  %2619 = vdwg.mxu0
  %v2620 = vmul.f32 %v2435, 0.5
  %v2621 = vmul.f32 %v2461, 0.5
  %v2622 = vmul.f32 %v2487, 0.5
  %v2623 = vmul.f32 %v2513, 0.5
  %v2624 = vmul.f32 %v2539, 0.5
  %v2625 = vmul.f32 %v2565, 0.5
  %v2626 = vtanh.pop %v2620
  %v2627 = vtanh.pop %v2621
  %v2628 = vtanh.pop %v2622
  %v2629 = vtanh.pop %v2623
  %v2630 = vtanh.pop %v2624
  %v2631 = vtanh.pop %v2625
  %v2632 = vmul.f32 %v2626, 0.5
  %v2633 = vmul.f32 %v2627, 0.5
  %v2634 = vmul.f32 %v2628, 0.5
  %v2635 = vmul.f32 %v2629, 0.5
  %v2636 = vmul.f32 %v2630, 0.5
  %v2637 = vmul.f32 %v2631, 0.5
  %v2638 = vadd.f32 %v2632, 0.5
  %v2639 = vadd.f32 %v2633, 0.5
  %v2640 = vadd.f32 %v2634, 0.5
  %v2641 = vadd.f32 %v2635, 0.5
  %v2642 = vadd.f32 %v2636, 0.5
  %v2643 = vadd.f32 %v2637, 0.5
  %v2644 = vtanh.pop %v2591
  %v2645 = vtanh.pop %v2617
  %v2646 = vmul.f32 %v2642, %v2398
  %v2647 = vmul.f32 %v2641, %v2645
  %v2648 = vadd.f32 %v2646, %v2647
  %v2649 = vtanh.pop %v2648
  %v2650 = vmul.f32 %v2643, %v2649
  %2651 = vst [vmem:[#allocation3 + $0x8] sm:$0xff] %v2650
  %v2652 = vmul.f32 %v2639, %v2404
  %v2653 = vmul.f32 %v2638, %v2644
  %v2654 = vadd.f32 %v2652, %v2653
  %v2655 = vtanh.pop %v2654
  %v2656 = vmul.f32 %v2640, %v2655
  %2657 = vst [vmem:[#allocation3] sm:$0xff] %v2656
  %v2658 = vld [vmem:[#allocation3] sm:$0xff]
  %v2659 = vld [vmem:[#allocation3 + $0x8] sm:$0xff]
  %v2660 = vpack.c.bf16 %v2658, %v2658
  %v2661 = vpack.c.bf16 %v2659, %v2659
  %2662 = vmatpush.bf16.msra.mxu0 %v962
  %2663 = vmatpush.bf16.msra.mxu0 %v954
  %2664 = vmatpush.bf16.msra.mxu0 %v946
  %2665 = vmatpush.bf16.msra.mxu0 %v938
  %2666 = vmatpush.bf16.msra.mxu0 %v930
  %2667 = vmatpush.bf16.msra.mxu0 %v922
  %2668 = vmatpush.bf16.msra.mxu0 %v914
  %2669 = vmatpush.bf16.msra.mxu0 %v906
  %2670 = vmatmul.bf16.gmra.mxu0 %v2660
  %v2671 = vpop.f32.mrf.mxu0
  %v2672 = vadd.f32 %v172, %v2671
  %v2673 = vpop.f32.mrf.mxu0
  %2674 = vdwg.mxu0
  %2675 = vmatpush.bf16.msra.mxu0 %v1026
  %2676 = vmatpush.bf16.msra.mxu0 %v1018
  %2677 = vmatpush.bf16.msra.mxu0 %v1010
  %2678 = vmatpush.bf16.msra.mxu0 %v1002
  %2679 = vmatpush.bf16.msra.mxu0 %v994
  %2680 = vmatpush.bf16.msra.mxu0 %v986
  %2681 = vmatpush.bf16.msra.mxu0 %v978
  %2682 = vmatpush.bf16.msra.mxu0 %v970
  %2683 = vmatmul.bf16.gmra.mxu0 %v2661
  %v2684 = vpop.f32.mrf.mxu0
  %v2685 = vadd.f32 %v2672, %v2684
  %v2686 = vpop.f32.mrf.mxu0
  %2687 = vdwg.mxu0
  %2688 = vmatpush.bf16.msra.mxu0 %v963
  %2689 = vmatpush.bf16.msra.mxu0 %v955
  %2690 = vmatpush.bf16.msra.mxu0 %v947
  %2691 = vmatpush.bf16.msra.mxu0 %v939
  %2692 = vmatpush.bf16.msra.mxu0 %v931
  %2693 = vmatpush.bf16.msra.mxu0 %v923
  %2694 = vmatpush.bf16.msra.mxu0 %v915
  %2695 = vmatpush.bf16.msra.mxu0 %v907
  %2696 = vmatmul.bf16.gmra.mxu0 %v2660
  %v2697 = vpop.f32.mrf.mxu0
  %v2698 = vadd.f32 %v200, %v2697
  %v2699 = vpop.f32.mrf.mxu0
  %2700 = vdwg.mxu0
  %2701 = vmatpush.bf16.msra.mxu0 %v1027
  %2702 = vmatpush.bf16.msra.mxu0 %v1019
  %2703 = vmatpush.bf16.msra.mxu0 %v1011
  %2704 = vmatpush.bf16.msra.mxu0 %v1003
  %2705 = vmatpush.bf16.msra.mxu0 %v995
  %2706 = vmatpush.bf16.msra.mxu0 %v987
  %2707 = vmatpush.bf16.msra.mxu0 %v979
  %2708 = vmatpush.bf16.msra.mxu0 %v971
  %2709 = vmatmul.bf16.gmra.mxu0 %v2661
  %v2710 = vpop.f32.mrf.mxu0
  %v2711 = vadd.f32 %v2698, %v2710
  %v2712 = vpop.f32.mrf.mxu0
  %2713 = vdwg.mxu0
  %2714 = vmatpush.bf16.msra.mxu0 %v964
  %2715 = vmatpush.bf16.msra.mxu0 %v956
  %2716 = vmatpush.bf16.msra.mxu0 %v948
  %2717 = vmatpush.bf16.msra.mxu0 %v940
  %2718 = vmatpush.bf16.msra.mxu0 %v932
  %2719 = vmatpush.bf16.msra.mxu0 %v924
  %2720 = vmatpush.bf16.msra.mxu0 %v916
  %2721 = vmatpush.bf16.msra.mxu0 %v908
  %2722 = vmatmul.bf16.gmra.mxu0 %v2660
  %v2723 = vpop.f32.mrf.mxu0
  %v2724 = vadd.f32 %v229, %v2723
  %v2725 = vpop.f32.mrf.mxu0
  %2726 = vdwg.mxu0
  %2727 = vmatpush.bf16.msra.mxu0 %v1028
  %2728 = vmatpush.bf16.msra.mxu0 %v1020
  %2729 = vmatpush.bf16.msra.mxu0 %v1012
  %2730 = vmatpush.bf16.msra.mxu0 %v1004
  %2731 = vmatpush.bf16.msra.mxu0 %v996
  %2732 = vmatpush.bf16.msra.mxu0 %v988
  %2733 = vmatpush.bf16.msra.mxu0 %v980
  %2734 = vmatpush.bf16.msra.mxu0 %v972
  %2735 = vmatmul.bf16.gmra.mxu0 %v2661
  %v2736 = vpop.f32.mrf.mxu0
  %v2737 = vadd.f32 %v2724, %v2736
  %v2738 = vpop.f32.mrf.mxu0
  %2739 = vdwg.mxu0
  %2740 = vmatpush.bf16.msra.mxu0 %v965
  %2741 = vmatpush.bf16.msra.mxu0 %v957
  %2742 = vmatpush.bf16.msra.mxu0 %v949
  %2743 = vmatpush.bf16.msra.mxu0 %v941
  %2744 = vmatpush.bf16.msra.mxu0 %v933
  %2745 = vmatpush.bf16.msra.mxu0 %v925
  %2746 = vmatpush.bf16.msra.mxu0 %v917
  %2747 = vmatpush.bf16.msra.mxu0 %v909
  %2748 = vmatmul.bf16.gmra.mxu0 %v2660
  %v2749 = vpop.f32.mrf.mxu0
  %v2750 = vadd.f32 %v257, %v2749
  %v2751 = vpop.f32.mrf.mxu0
  %2752 = vdwg.mxu0
  %2753 = vmatpush.bf16.msra.mxu0 %v1029
  %2754 = vmatpush.bf16.msra.mxu0 %v1021
  %2755 = vmatpush.bf16.msra.mxu0 %v1013
  %2756 = vmatpush.bf16.msra.mxu0 %v1005
  %2757 = vmatpush.bf16.msra.mxu0 %v997
  %2758 = vmatpush.bf16.msra.mxu0 %v989
  %2759 = vmatpush.bf16.msra.mxu0 %v981
  %2760 = vmatpush.bf16.msra.mxu0 %v973
  %2761 = vmatmul.bf16.gmra.mxu0 %v2661
  %v2762 = vpop.f32.mrf.mxu0
  %v2763 = vadd.f32 %v2750, %v2762
  %v2764 = vpop.f32.mrf.mxu0
  %2765 = vdwg.mxu0
  %2766 = vmatpush.bf16.msra.mxu0 %v966
  %2767 = vmatpush.bf16.msra.mxu0 %v958
  %2768 = vmatpush.bf16.msra.mxu0 %v950
  %2769 = vmatpush.bf16.msra.mxu0 %v942
  %2770 = vmatpush.bf16.msra.mxu0 %v934
  %2771 = vmatpush.bf16.msra.mxu0 %v926
  %2772 = vmatpush.bf16.msra.mxu0 %v918
  %2773 = vmatpush.bf16.msra.mxu0 %v910
  %2774 = vmatmul.bf16.gmra.mxu0 %v2660
  %v2775 = vpop.f32.mrf.mxu0
  %v2776 = vadd.f32 %v285, %v2775
  %v2777 = vpop.f32.mrf.mxu0
  %2778 = vdwg.mxu0
  %2779 = vmatpush.bf16.msra.mxu0 %v1030
  %2780 = vmatpush.bf16.msra.mxu0 %v1022
  %2781 = vmatpush.bf16.msra.mxu0 %v1014
  %2782 = vmatpush.bf16.msra.mxu0 %v1006
  %2783 = vmatpush.bf16.msra.mxu0 %v998
  %2784 = vmatpush.bf16.msra.mxu0 %v990
  %2785 = vmatpush.bf16.msra.mxu0 %v982
  %2786 = vmatpush.bf16.msra.mxu0 %v974
  %2787 = vmatmul.bf16.gmra.mxu0 %v2661
  %v2788 = vpop.f32.mrf.mxu0
  %v2789 = vadd.f32 %v2776, %v2788
  %v2790 = vpop.f32.mrf.mxu0
  %2791 = vdwg.mxu0
  %2792 = vmatpush.bf16.msra.mxu0 %v967
  %2793 = vmatpush.bf16.msra.mxu0 %v959
  %2794 = vmatpush.bf16.msra.mxu0 %v951
  %2795 = vmatpush.bf16.msra.mxu0 %v943
  %2796 = vmatpush.bf16.msra.mxu0 %v935
  %2797 = vmatpush.bf16.msra.mxu0 %v927
  %2798 = vmatpush.bf16.msra.mxu0 %v919
  %2799 = vmatpush.bf16.msra.mxu0 %v911
  %2800 = vmatmul.bf16.gmra.mxu0 %v2660
  %v2801 = vpop.f32.mrf.mxu0
  %v2802 = vadd.f32 %v313, %v2801
  %v2803 = vpop.f32.mrf.mxu0
  %2804 = vdwg.mxu0
  %2805 = vmatpush.bf16.msra.mxu0 %v1031
  %2806 = vmatpush.bf16.msra.mxu0 %v1023
  %2807 = vmatpush.bf16.msra.mxu0 %v1015
  %2808 = vmatpush.bf16.msra.mxu0 %v1007
  %2809 = vmatpush.bf16.msra.mxu0 %v999
  %2810 = vmatpush.bf16.msra.mxu0 %v991
  %2811 = vmatpush.bf16.msra.mxu0 %v983
  %2812 = vmatpush.bf16.msra.mxu0 %v975
  %2813 = vmatmul.bf16.gmra.mxu0 %v2661
  %v2814 = vpop.f32.mrf.mxu0
  %v2815 = vadd.f32 %v2802, %v2814
  %v2816 = vpop.f32.mrf.mxu0
  %2817 = vdwg.mxu0
  %2818 = vmatpush.bf16.msra.mxu0 %v968
  %2819 = vmatpush.bf16.msra.mxu0 %v960
  %2820 = vmatpush.bf16.msra.mxu0 %v952
  %2821 = vmatpush.bf16.msra.mxu0 %v944
  %2822 = vmatpush.bf16.msra.mxu0 %v936
  %2823 = vmatpush.bf16.msra.mxu0 %v928
  %2824 = vmatpush.bf16.msra.mxu0 %v920
  %2825 = vmatpush.bf16.msra.mxu0 %v912
  %2826 = vmatmul.bf16.gmra.mxu0 %v2660
  %v2827 = vpop.f32.mrf.mxu0
  %v2828 = vadd.f32 %v342, %v2827
  %v2829 = vpop.f32.mrf.mxu0
  %2830 = vdwg.mxu0
  %2831 = vmatpush.bf16.msra.mxu0 %v1032
  %2832 = vmatpush.bf16.msra.mxu0 %v1024
  %2833 = vmatpush.bf16.msra.mxu0 %v1016
  %2834 = vmatpush.bf16.msra.mxu0 %v1008
  %2835 = vmatpush.bf16.msra.mxu0 %v1000
  %2836 = vmatpush.bf16.msra.mxu0 %v992
  %2837 = vmatpush.bf16.msra.mxu0 %v984
  %2838 = vmatpush.bf16.msra.mxu0 %v976
  %2839 = vmatmul.bf16.gmra.mxu0 %v2661
  %v2840 = vpop.f32.mrf.mxu0
  %v2841 = vadd.f32 %v2828, %v2840
  %v2842 = vpop.f32.mrf.mxu0
  %2843 = vdwg.mxu0
  %2844 = vmatpush.bf16.msra.mxu0 %v969
  %2845 = vmatpush.bf16.msra.mxu0 %v961
  %2846 = vmatpush.bf16.msra.mxu0 %v953
  %2847 = vmatpush.bf16.msra.mxu0 %v945
  %2848 = vmatpush.bf16.msra.mxu0 %v937
  %2849 = vmatpush.bf16.msra.mxu0 %v929
  %2850 = vmatpush.bf16.msra.mxu0 %v921
  %2851 = vmatpush.bf16.msra.mxu0 %v913
  %2852 = vmatmul.bf16.gmra.mxu0 %v2660
  %v2853 = vpop.f32.mrf.mxu0
  %v2854 = vadd.f32 %v370, %v2853
  %v2855 = vpop.f32.mrf.mxu0
  %2856 = vdwg.mxu0
  %2857 = vmatpush.bf16.msra.mxu0 %v1033
  %2858 = vmatpush.bf16.msra.mxu0 %v1025
  %2859 = vmatpush.bf16.msra.mxu0 %v1017
  %2860 = vmatpush.bf16.msra.mxu0 %v1009
  %2861 = vmatpush.bf16.msra.mxu0 %v1001
  %2862 = vmatpush.bf16.msra.mxu0 %v993
  %2863 = vmatpush.bf16.msra.mxu0 %v985
  %2864 = vmatpush.bf16.msra.mxu0 %v977
  %2865 = vmatmul.bf16.gmra.mxu0 %v2661
  %v2866 = vpop.f32.mrf.mxu0
  %v2867 = vadd.f32 %v2854, %v2866
  %v2868 = vpop.f32.mrf.mxu0
  %2869 = vdwg.mxu0
  %v2870 = vmul.f32 %v2685, 0.5
  %v2871 = vmul.f32 %v2711, 0.5
  %v2872 = vmul.f32 %v2737, 0.5
  %v2873 = vmul.f32 %v2763, 0.5
  %v2874 = vmul.f32 %v2789, 0.5
  %v2875 = vmul.f32 %v2815, 0.5
  %v2876 = vtanh.pop %v2870
  %v2877 = vtanh.pop %v2871
  %v2878 = vtanh.pop %v2872
  %v2879 = vtanh.pop %v2873
  %v2880 = vtanh.pop %v2874
  %v2881 = vtanh.pop %v2875
  %v2882 = vmul.f32 %v2876, 0.5
  %v2883 = vmul.f32 %v2877, 0.5
  %v2884 = vmul.f32 %v2878, 0.5
  %v2885 = vmul.f32 %v2879, 0.5
  %v2886 = vmul.f32 %v2880, 0.5
  %v2887 = vmul.f32 %v2881, 0.5
  %v2888 = vadd.f32 %v2882, 0.5
  %v2889 = vadd.f32 %v2883, 0.5
  %v2890 = vadd.f32 %v2884, 0.5
  %v2891 = vadd.f32 %v2885, 0.5
  %v2892 = vadd.f32 %v2886, 0.5
  %v2893 = vadd.f32 %v2887, 0.5
  %v2894 = vtanh.pop %v2841
  %v2895 = vtanh.pop %v2867
  %v2896 = vmul.f32 %v2892, %v2648
  %v2897 = vmul.f32 %v2891, %v2895
  %v2898 = vadd.f32 %v2896, %v2897
  %v2899 = vtanh.pop %v2898
  %v2900 = vmul.f32 %v2893, %v2899
  %2901 = vst [vmem:[#allocation3 + $0x8] sm:$0xff] %v2900
  %v2902 = vmul.f32 %v2889, %v2654
  %v2903 = vmul.f32 %v2888, %v2894
  %v2904 = vadd.f32 %v2902, %v2903
  %v2905 = vtanh.pop %v2904
  %v2906 = vmul.f32 %v2890, %v2905
  %2907 = vst [vmem:[#allocation3] sm:$0xff] %v2906
  %v2908 = vld [vmem:[#allocation3] sm:$0xff]
  %v2909 = vld [vmem:[#allocation3 + $0x8] sm:$0xff]
  %v2910 = vpack.c.bf16 %v2908, %v2908
  %v2911 = vpack.c.bf16 %v2909, %v2909
  %2912 = vmatpush.bf16.msra.mxu0 %v965
  %2913 = vmatpush.bf16.msra.mxu0 %v957
  %2914 = vmatpush.bf16.msra.mxu0 %v949
  %2915 = vmatpush.bf16.msra.mxu0 %v941
  %2916 = vmatpush.bf16.msra.mxu0 %v933
  %2917 = vmatpush.bf16.msra.mxu0 %v925
  %2918 = vmatpush.bf16.msra.mxu0 %v917
  %2919 = vmatpush.bf16.msra.mxu0 %v909
  %2920 = vmatmul.bf16.gmra.mxu0 %v2910
  %v2921 = vpop.f32.mrf.mxu0
  %v2922 = vadd.f32 %v257, %v2921
  %v2923 = vpop.f32.mrf.mxu0
  %2924 = vdwg.mxu0
  %2925 = vmatpush.bf16.msra.mxu0 %v1029
  %2926 = vmatpush.bf16.msra.mxu0 %v1021
  %2927 = vmatpush.bf16.msra.mxu0 %v1013
  %2928 = vmatpush.bf16.msra.mxu0 %v1005
  %2929 = vmatpush.bf16.msra.mxu0 %v997
  %2930 = vmatpush.bf16.msra.mxu0 %v989
  %2931 = vmatpush.bf16.msra.mxu0 %v981
  %2932 = vmatpush.bf16.msra.mxu0 %v973
  %2933 = vmatmul.bf16.gmra.mxu0 %v2911
  %v2934 = vpop.f32.mrf.mxu0
  %v2935 = vadd.f32 %v2922, %v2934
  %v2936 = vpop.f32.mrf.mxu0
  %2937 = vdwg.mxu0
  %2938 = vmatpush.bf16.msra.mxu0 %v966
  %2939 = vmatpush.bf16.msra.mxu0 %v958
  %2940 = vmatpush.bf16.msra.mxu0 %v950
  %2941 = vmatpush.bf16.msra.mxu0 %v942
  %2942 = vmatpush.bf16.msra.mxu0 %v934
  %2943 = vmatpush.bf16.msra.mxu0 %v926
  %2944 = vmatpush.bf16.msra.mxu0 %v918
  %2945 = vmatpush.bf16.msra.mxu0 %v910
  %2946 = vmatmul.bf16.gmra.mxu0 %v2910
  %v2947 = vpop.f32.mrf.mxu0
  %v2948 = vadd.f32 %v285, %v2947
  %v2949 = vpop.f32.mrf.mxu0
  %2950 = vdwg.mxu0
  %2951 = vmatpush.bf16.msra.mxu0 %v1030
  %2952 = vmatpush.bf16.msra.mxu0 %v1022
  %2953 = vmatpush.bf16.msra.mxu0 %v1014
  %2954 = vmatpush.bf16.msra.mxu0 %v1006
  %2955 = vmatpush.bf16.msra.mxu0 %v998
  %2956 = vmatpush.bf16.msra.mxu0 %v990
  %2957 = vmatpush.bf16.msra.mxu0 %v982
  %2958 = vmatpush.bf16.msra.mxu0 %v974
  %2959 = vmatmul.bf16.gmra.mxu0 %v2911
  %v2960 = vpop.f32.mrf.mxu0
  %v2961 = vadd.f32 %v2948, %v2960
  %v2962 = vpop.f32.mrf.mxu0
  %2963 = vdwg.mxu0
  %2964 = vmatpush.bf16.msra.mxu0 %v967
  %2965 = vmatpush.bf16.msra.mxu0 %v959
  %2966 = vmatpush.bf16.msra.mxu0 %v951
  %2967 = vmatpush.bf16.msra.mxu0 %v943
  %2968 = vmatpush.bf16.msra.mxu0 %v935
  %2969 = vmatpush.bf16.msra.mxu0 %v927
  %2970 = vmatpush.bf16.msra.mxu0 %v919
  %2971 = vmatpush.bf16.msra.mxu0 %v911
  %2972 = vmatmul.bf16.gmra.mxu0 %v2910
  %v2973 = vpop.f32.mrf.mxu0
  %v2974 = vadd.f32 %v313, %v2973
  %v2975 = vpop.f32.mrf.mxu0
  %2976 = vdwg.mxu0
  %2977 = vmatpush.bf16.msra.mxu0 %v1031
  %2978 = vmatpush.bf16.msra.mxu0 %v1023
  %2979 = vmatpush.bf16.msra.mxu0 %v1015
  %2980 = vmatpush.bf16.msra.mxu0 %v1007
  %2981 = vmatpush.bf16.msra.mxu0 %v999
  %2982 = vmatpush.bf16.msra.mxu0 %v991
  %2983 = vmatpush.bf16.msra.mxu0 %v983
  %2984 = vmatpush.bf16.msra.mxu0 %v975
  %2985 = vmatmul.bf16.gmra.mxu0 %v2911
  %v2986 = vpop.f32.mrf.mxu0
  %v2987 = vadd.f32 %v2974, %v2986
  %v2988 = vpop.f32.mrf.mxu0
  %2989 = vdwg.mxu0
  %2990 = vmatpush.bf16.msra.mxu0 %v969
  %2991 = vmatpush.bf16.msra.mxu0 %v961
  %2992 = vmatpush.bf16.msra.mxu0 %v953
  %2993 = vmatpush.bf16.msra.mxu0 %v945
  %2994 = vmatpush.bf16.msra.mxu0 %v937
  %2995 = vmatpush.bf16.msra.mxu0 %v929
  %2996 = vmatpush.bf16.msra.mxu0 %v921
  %2997 = vmatpush.bf16.msra.mxu0 %v913
  %2998 = vmatmul.bf16.gmra.mxu0 %v2910
  %v2999 = vpop.f32.mrf.mxu0
  %v3000 = vadd.f32 %v370, %v2999
  %v3001 = vpop.f32.mrf.mxu0
  %3002 = vdwg.mxu0
  %3003 = vmatpush.bf16.msra.mxu0 %v1033
  %3004 = vmatpush.bf16.msra.mxu0 %v1025
  %3005 = vmatpush.bf16.msra.mxu0 %v1017
  %3006 = vmatpush.bf16.msra.mxu0 %v1009
  %3007 = vmatpush.bf16.msra.mxu0 %v1001
  %3008 = vmatpush.bf16.msra.mxu0 %v993
  %3009 = vmatpush.bf16.msra.mxu0 %v985
  %3010 = vmatpush.bf16.msra.mxu0 %v977
  %3011 = vmatmul.bf16.gmra.mxu0 %v2911
  %v3012 = vpop.f32.mrf.mxu0
  %v3013 = vadd.f32 %v3000, %v3012
  %v3014 = vpop.f32.mrf.mxu0
  %3015 = vdwg.mxu0
  %v3016 = vmul.f32 %v2935, 0.5
  %v3017 = vmul.f32 %v2961, 0.5
  %v3018 = vmul.f32 %v2987, 0.5
  %v3019 = vtanh.pop %v3016
  %v3020 = vtanh.pop %v3017
  %v3021 = vtanh.pop %v3018
  %v3022 = vmul.f32 %v3019, 0.5
  %v3023 = vmul.f32 %v3020, 0.5
  %v3024 = vmul.f32 %v3021, 0.5
  %v3025 = vadd.f32 %v3022, 0.5
  %v3026 = vadd.f32 %v3023, 0.5
  %v3027 = vadd.f32 %v3024, 0.5
  %v3028 = vtanh.pop %v3013
  %v3029 = vmul.f32 %v3026, %v2898
  %v3030 = vmul.f32 %v3025, %v3028
  %v3031 = vadd.f32 %v3029, %v3030
  %v3032 = vtanh.pop %v3031
  %v3033 = vmul.f32 %v3027, %v3032
  %3034 = vst [vmem:[#allocation3 + $0x8] sm:$0xff] %v3033
  %v3035 = vld [vmem:[#allocation3 + $0x8] sm:$0xff]
  %v3036 = vpack.c.bf16 %v3035, %v3035
  %v3037 = vld [vmem:[%s4] sm:$0xf]
  %v3038 = vld [vmem:[%s4 + $0x4] sm:$0xf]
  %v3039 = vld [vmem:[%s4 + $0x8] sm:$0xf]
  %v3040 = vld [vmem:[%s4 + $0xc] sm:$0xf]
  %v3041 = vld [vmem:[%s4 + $0x10] sm:$0xf]
  %v3042 = vld [vmem:[%s4 + $0x14] sm:$0xf]
  %v3043 = vld [vmem:[%s4 + $0x18] sm:$0xf]
  %v3044 = vld [vmem:[%s4 + $0x1c] sm:$0xf]
  %v3045 = vld [vmem:[%s4 + $0x20] sm:$0xf]
  %v3046 = vld [vmem:[%s4 + $0x24] sm:$0xf]
  %v3047 = vld [vmem:[%s4 + $0x28] sm:$0xf]
  %v3048 = vld [vmem:[%s4 + $0x2c] sm:$0xf]
  %v3049 = vld [vmem:[%s4 + $0x30] sm:$0xf]
  %v3050 = vld [vmem:[%s4 + $0x34] sm:$0xf]
  %v3051 = vld [vmem:[%s4 + $0x38] sm:$0xf]
  %v3052 = vld [vmem:[%s4 + $0x3c] sm:$0xf]
  %v3053 = vld [vmem:[#allocation5] sm:$0x1]
  %v3055 = vperm.slane %v3053, 0
  %v3073 = vunpack.c.l.b16 %v3037
  %v3074 = vunpack.c.l.b16 %v3038
  %v3075 = vunpack.c.l.b16 %v3039
  %v3076 = vunpack.c.l.b16 %v3040
  %v3077 = vunpack.c.l.b16 %v3041
  %v3078 = vunpack.c.l.b16 %v3042
  %v3079 = vunpack.c.l.b16 %v3043
  %v3080 = vunpack.c.l.b16 %v3044
  %v3081 = vunpack.c.l.b16 %v3045
  %v3082 = vunpack.c.l.b16 %v3046
  %v3083 = vunpack.c.l.b16 %v3047
  %v3084 = vunpack.c.l.b16 %v3048
  %v3085 = vunpack.c.l.b16 %v3049
  %v3086 = vunpack.c.l.b16 %v3050
  %v3087 = vunpack.c.l.b16 %v3051
  %v3088 = vunpack.c.l.b16 %v3052
  %v3089 = vpack.c.b16 %v3074, %v3073
  %v3090 = vpack.c.b16 %v3076, %v3075
  %v3091 = vpack.c.b16 %v3078, %v3077
  %v3092 = vpack.c.b16 %v3080, %v3079
  %v3093 = vpack.c.b16 %v3082, %v3081
  %v3094 = vpack.c.b16 %v3084, %v3083
  %v3095 = vpack.c.b16 %v3086, %v3085
  %v3096 = vpack.c.b16 %v3088, %v3087
  %3105 = vmatpush.bf16.msra.mxu0 %v3096
  %3106 = vmatpush.bf16.msra.mxu0 %v3095
  %3107 = vmatpush.bf16.msra.mxu0 %v3094
  %3108 = vmatpush.bf16.msra.mxu0 %v3093
  %3109 = vmatpush.bf16.msra.mxu0 %v3092
  %3110 = vmatpush.bf16.msra.mxu0 %v3091
  %3111 = vmatpush.bf16.msra.mxu0 %v3090
  %3112 = vmatpush.bf16.msra.mxu0 %v3089
  %3113 = vmatmul.bf16.gmra.mxu0 %v3036
  %v3114 = vpop.f32.mrf.mxu0
  %v3115 = vadd.f32 %v3055, %v3114
  %v3116 = vpop.f32.mrf.mxu0
  %3117 = vdwg.mxu0
  %vm3118 = vcmask 7168
  %3119 = vst.msk [vmem:[%s6] sm:$0xff] %vm3118, %v3115
  // Predicated region
  $region26: #{tpu_custom_call.1} parent=0 // pred_check
    _
  $region27: #{tpu_custom_call.1} parent=0 // pred_check_branch
    %3121 = sbr.rel (0) target = $region29
  $region28: #{tpu_custom_call.1} parent=0 // pred_region
    _
  $region29: #{tpu_custom_call.1} parent=0 // pred_fallthru
    _
  // Predicated region
  $region30: #{tpu_custom_call.1} parent=0 // pred_check
    _
  $region31: #{tpu_custom_call.1} parent=0 // pred_check_branch
    %3123 = sbr.rel (0) target = $region33
  $region32: #{tpu_custom_call.1} parent=0 // pred_region
    _
  $region33: #{tpu_custom_call.1} parent=0 // pred_fallthru
    _
  %3124 = vsyncmov [#allocation4]
  %s3125 = vpop.sfrf %3124
  %p3126 = scmp.eq.s32.totalorder %s3125, 0
  %p3127 = pneg %p3126
  %3129 = shalt.err (%p3127)

</llo_original>
